<compile_context>
chip_gen: v5e
topology: v5e:2x2
jax: 0.10.0
libtpu: 0.0.40
codegen_flags: <defaults>
</compile_context>

<pallas_src>
import functools

import jax
import jax.numpy as jnp
from jax import lax
from jax.experimental import pallas as pl
from jax.experimental.pallas import tpu as pltpu

ZONEOUT_RATE = 0.1
LANE = 128


def _round_up(x, m):
    return (x + m - 1) // m * m


def _permute_pad_gates(w, H, Hp):
    """Reorder LSTM gate blocks (i,f,g,o) -> (i,f,o,g) and zero-pad each gate's
    columns from H to Hp so every gate slice is 128-lane aligned."""
    i, f, g, o = jnp.split(w, 4, axis=-1)
    pad = [(0, 0)] * (w.ndim - 1) + [(0, Hp - H)]
    return jnp.concatenate([jnp.pad(x, pad) for x in (i, f, o, g)], axis=-1)


def _pad_rows(w, rows):
    return jnp.pad(w, ((0, rows - w.shape[0]),) + ((0, 0),) * (w.ndim - 1))


def decoder_kernel(memory_ref, hlen_ref,
                   w_mem_ref, b_att_ref, v_att_ref,
                   wcat0_ref, w1q_ref, b1_ref, wheads_ref,
                   packed_ref,
                   zcs_ref, attw_ref,
                   *, num_steps, zoneout, Hp, out_dim, pack_width):
    f32, bf16 = jnp.float32, jnp.bfloat16
    memory = memory_ref[...]                 # (Bb, S, Ep); lanes E..Ep-2 == 0, lane Ep-1 == 1
    Bb, S, _ = memory.shape
    A = w_mem_ref.shape[1]
    H3, H4 = 3 * Hp, 4 * Hp
    zo, zo1 = zoneout, 1.0 - zoneout

    # ---- step-invariant precompute (hoisted out of the recurrence) ----
    pre_mem = (jnp.dot(memory.reshape(Bb * S, memory.shape[2]), w_mem_ref[...],
                       preferred_element_type=f32).reshape(Bb, S, A)
               + b_att_ref[...][None, :, :])                       # (Bb, S, A)
    pos = lax.broadcasted_iota(jnp.int32, (Bb, S), 1)
    neg_bias = jnp.where(pos < hlen_ref[...].reshape(Bb, 1), 0.0, -1e30)
    v_att = v_att_ref[...][None, :, :]                             # (1, 1, A)
    wcat0 = wcat0_ref[...]                                         # (Ep+Hp, 4Hp)  bf16
    w1q = w1q_ref[...]                                             # (2Hp, 4Hp+A)  bf16
    b1b = jnp.broadcast_to(b1_ref[...], (Bb, H4))                  # hoisted broadcast (f32)

    def lstm_tail(gates, c_prev):
        # gate columns grouped (i, f, o | g): one wide sigmoid + one tanh.
        sg = jax.nn.sigmoid(gates[:, :H3])
        i, f, o = sg[:, :Hp], sg[:, Hp:2 * Hp], sg[:, 2 * Hp:H3]
        g = jnp.tanh(gates[:, H3:])
        c_new = f * c_prev + i * g
        return o * jnp.tanh(c_new), c_new

    def step(t, carry):
        z0, c0, z1, c1, cum_w, q = carry

        # --- additive content attention (stand-in for attention_mechanism)
        tanh_in = jnp.tanh(pre_mem + q[:, None, :])                # (Bb, S, A)   EUP
        e = jnp.sum(tanh_in * v_att, axis=-1) + neg_bias           # (Bb, S)      VPU/XLU
        e = e - jnp.max(e, axis=1, keepdims=True)
        w_unn = jnp.exp(e)
        denom = jnp.maximum(jnp.sum(w_unn, axis=1, keepdims=True), 1e-30)
        att_w = w_unn * (1.0 / denom)      # exact normalize (rows sum to 1)
        # attention context on VPU/XLU (keeps the MXU FIFO free for the LSTMs);
        # lane Ep-1 of att_c becomes the constant 1 (bias carrier).
        att_c = jnp.sum(att_w[:, :, None] * memory, axis=1)        # (Bb, Ep)

        # --- LSTM0: fused [att_c | h] matmul; prenet output + both LSTM0
        # biases are folded into wcat0 row Ep-1 (picked up by the constant lane).
        x0 = jnp.concatenate([att_c, z0], axis=1).astype(bf16)     # (Bb, Ep+Hp)
        h0, cc0 = lstm_tail(jnp.dot(x0, wcat0, preferred_element_type=f32), c0)
        z0n = zo * z0 + zo1 * h0                                   # eval-mode zoneout
        c0n = zo * c0 + zo1 * cc0

        # --- LSTM1: fused [x | h] matmul; extra columns give next step's query.
        x1 = jnp.concatenate([z0n, z1], axis=1).astype(bf16)       # (Bb, 2Hp)
        r1 = jnp.dot(x1, w1q, preferred_element_type=f32)          # (Bb, 4Hp+A)
        h1, cc1 = lstm_tail(r1[:, :H4] + b1b, c1)
        q_next = r1[:, H4:]                                        # z0n @ w_q
        z1n = zo * z1 + zo1 * h1
        c1n = zo * c1 + zo1 * cc1

        # --- stash rows (batch-major) for the post-loop output heads.
        zcs = jnp.concatenate([z1n, att_c], axis=1)                # (Bb, Hp+Ep) f32
        for b in range(Bb):
            r = b * num_steps + t
            zcs_ref[pl.ds(r, 1), :] = zcs[b:b + 1]
            attw_ref[pl.ds(r, 1), :] = att_w[b:b + 1]

        # cumulate_att_w=True bookkeeping (unused by the stand-in attention)
        return (z0n, c0n, z1n, c1n, cum_w + att_w, q_next)

    init = (jnp.zeros((Bb, Hp), f32), jnp.zeros((Bb, Hp), f32),
            jnp.zeros((Bb, Hp), f32), jnp.zeros((Bb, Hp), f32),
            jnp.zeros((Bb, S), f32), jnp.zeros((Bb, A), f32))
    lax.fori_loop(0, num_steps, step, init, unroll=min(num_steps, 8))

    # ---- hoisted output heads: ONE matmul for all steps, off the recurrence.
    # (feat_out | stop_out fused; stop bias folded into the constant-1 row;
    #  prob_out dropped: the torch module computes but discards the logits.)
    zcs_all = zcs_ref[...]                                         # (T*Bb, Hp+Ep) f32
    head = jnp.dot(zcs_all, wheads_ref[...], preferred_element_type=f32)
    stop = jax.nn.sigmoid(head[:, out_dim:out_dim + 1])
    attw_all = attw_ref[...]                                       # (T*Bb, S)
    pad = jnp.zeros((num_steps * Bb, pack_width - (out_dim + 1 + S)), f32)
    packed = jnp.concatenate([head[:, :out_dim], stop, attw_all, pad], axis=1)
    # single dense lane-aligned store of the whole call's output.
    packed_ref[...] = packed.reshape(Bb, num_steps, pack_width)


def _prepare_weights(params, E, H):
    """Fold / fuse / pad the torch-layout parameters into the kernel's layout."""
    Hp = _round_up(H, LANE)
    Ep = _round_up(E + 1, LANE)          # +1: room for the constant-1 lane
    f32, bf16 = jnp.float32, jnp.bfloat16
    H4 = 4 * Hp

    # LSTM0 -----------------------------------------------------------------
    wih0 = _permute_pad_gates(params["wih0"], H, Hp)                     # (E+P1, 4Hp)
    whh0 = _permute_pad_gates(_pad_rows(params["whh0"], Hp), H, Hp)      # (Hp, 4Hp)
    b0 = _permute_pad_gates(params["bih0"] + params["bhh0"], H, Hp)      # (1, 4Hp)
    w_p2g = wih0[E:]                                                     # prenet rows

    # eval-path prenet fold: prenet input is identically zero, so its output
    # (and hence the whole LSTM0 gate offset) is a constant.  (w_p0 drops out.)
    p = jnp.maximum(params["b_p0"], 0.0)
    p = jnp.maximum(jnp.dot(p, params["w_p1"]) + params["b_p1"], 0.0)
    gconst0 = jnp.dot(p, w_p2g) + b0                                     # (1, 4Hp)

    # rows seen by x0 = [att_c(Ep) | z0(Hp)]; row Ep-1 is hit by the constant 1.
    att_rows = jnp.concatenate(
        [wih0[:E], jnp.zeros((Ep - E - 1, H4), f32), gconst0], axis=0)   # (Ep, 4Hp)
    wcat0 = jnp.concatenate([att_rows, whh0], axis=0).astype(bf16)       # (Ep+Hp, 4Hp)

    # LSTM1 fused with whh1, plus w_q appended as extra columns (next query).
    wih1 = _permute_pad_gates(_pad_rows(params["wih1"], Hp), H, Hp)
    whh1 = _permute_pad_gates(_pad_rows(params["whh1"], Hp), H, Hp)
    wq = _pad_rows(params["w_q"], Hp)                                    # (Hp, A)
    A = wq.shape[1]
    w1q = jnp.concatenate(
        [jnp.concatenate([wih1, whh1], axis=0),
         jnp.concatenate([wq, jnp.zeros((Hp, A), f32)], axis=0)],
        axis=1).astype(bf16)                                             # (2Hp, 4Hp+A)
    b1 = _permute_pad_gates(params["bih1"] + params["bhh1"], H, Hp)      # (1, 4Hp) f32

    # output heads: feat_out (no bias) | stop_out; stop bias folded into the
    # constant-1 row.  Kept f32 (single post-loop matmul, off the hot path).
    wf, ws = params["wf"], params["ws"]
    od = wf.shape[1]
    hrows = jnp.concatenate([_pad_rows(wf[:H], Hp), _pad_rows(ws[:H], Hp)], axis=1)
    crows = jnp.concatenate([wf[H:], ws[H:]], axis=1)                    # (E, od+1)
    bias_row = jnp.concatenate([jnp.zeros((1, od), f32), params["bs"]], axis=1)
    wheads = jnp.concatenate(
        [hrows, crows, jnp.zeros((Ep - E - 1, od + 1), f32), bias_row],
        axis=0)                                                          # (Hp+Ep, od+1)

    # attention memory projection, zero rows for the padded / constant lanes.
    w_mem = _pad_rows(params["w_mem"], Ep)                               # (Ep, A)

    weights = (w_mem, params["b_att"], params["v_att"], wcat0, w1q, b1, wheads)
    return weights, Hp, Ep


def _default_batch_split():
    # Multi-TensorCore parts (v7x, v4/v5p megacore) can shard the independent
    # batch rows across cores via a "parallel" grid axis.  On single-TC
    # v5e/v6e a batch grid would just serialize the latency-bound recurrence,
    # so keep the whole batch in one grid step there.
    try:
        kind = jax.devices()[0].device_kind.lower()
    except Exception:
        return 1
    return 2 if any(tag in kind for tag in ("v7", "7x", "v4", "v5p")) else 1


def decoder_forward(memory, memory_length, params, num_steps,
                    zoneout=ZONEOUT_RATE, batch_split=None):
    """Returns (before_outs, stops, att_ws), matching the torch module's return."""
    B, S, E = memory.shape
    H = params["whh0"].shape[0]
    rf = params["wp"].shape[1]
    assert rf == 1  # TODO(synk): reduction_factor > 1 not implemented
    out_dim = params["wf"].shape[1] // rf

    weights, Hp, Ep = _prepare_weights(params, E, H)
    pack_width = _round_up(out_dim + 1 + S, LANE)

    # pad memory to Ep lanes; the last lane is a constant 1 that carries the
    # folded LSTM0 gate offset / stop bias through att_c (att_w rows sum to 1).
    f32 = jnp.float32
    memory_p = jnp.concatenate(
        [memory.astype(f32),
         jnp.zeros((B, S, Ep - E - 1), f32),
         jnp.ones((B, S, 1), f32)], axis=-1)
    hlens3 = memory_length.reshape(B, 1, 1).astype(jnp.int32)

    n_split = _default_batch_split() if batch_split is None else batch_split
    if n_split < 1 or B % n_split:
        n_split = 1
    Bb = B // n_split

    def full_spec(x):
        return pl.BlockSpec(x.shape, lambda g, _nd=x.ndim: (0,) * _nd)

    kernel = functools.partial(
        decoder_kernel, num_steps=num_steps, zoneout=zoneout, Hp=Hp,
        out_dim=out_dim, pack_width=pack_width)

    packed = pl.pallas_call(
        kernel,
        out_shape=jax.ShapeDtypeStruct((B, num_steps, pack_width), f32),
        grid=(n_split,),
        in_specs=[pl.BlockSpec((Bb, S, Ep), lambda g: (g, 0, 0)),
                  pl.BlockSpec((Bb, 1, 1), lambda g: (g, 0, 0))]
                 + [full_spec(w) for w in weights],
        out_specs=pl.BlockSpec((Bb, num_steps, pack_width), lambda g: (g, 0, 0)),
        scratch_shapes=[pltpu.VMEM((num_steps * Bb, Hp + Ep), f32),
                        pltpu.VMEM((num_steps * Bb, S), f32)],
        compiler_params=pltpu.CompilerParams(
            dimension_semantics=("parallel",)),
    )(memory_p, hlens3, *weights)

    # glue: reproduce the module's cat/transpose bookkeeping (reduction_factor=1)
    before_outs = packed[:, :, :out_dim]                           # (B, T, out_dim)
    stops = packed[:, :, out_dim]                                  # (B, T)
    att_ws = packed[:, :, out_dim + 1:out_dim + 1 + S]             # (B, T, S)
    return before_outs, stops, att_ws


def init_params(key, *, E=32, A=32, out_dim=16, P=(32, 32), H=64, rf=1):
    ks = jax.random.split(key, 21)

    def w(k, shape, scale=0.1):
        return (scale * jax.random.normal(k, shape)).astype(jnp.float32)

    return {
        # attention (additive): W_mem, W_q, bias, score vector v
        "w_mem": w(ks[0], (E, A)),
        "w_q":   w(ks[1], (H, A)),
        "b_att": w(ks[2], (1, A)),
        "v_att": w(ks[3], (1, A)),
        # prenet: Linear(out_dim->P0), Linear(P0->P1)
        "w_p0":  w(ks[4], (out_dim, P[0])),
        "b_p0":  w(ks[5], (1, P[0])),
        "w_p1":  w(ks[6], (P[0], P[1])),
        "b_p1":  w(ks[7], (1, P[1])),
        # LSTMCell 0: input = input_dim(E) + prenet_units[-1]
        "wih0":  w(ks[8], (E + P[1], 4 * H)),
        "whh0":  w(ks[9], (H, 4 * H)),
        "bih0":  w(ks[10], (1, 4 * H)),
        "bhh0":  w(ks[11], (1, 4 * H)),
        # LSTMCell 1
        "wih1":  w(ks[12], (H, 4 * H)),
        "whh1":  w(ks[13], (H, 4 * H)),
        "bih1":  w(ks[14], (1, 4 * H)),
        "bhh1":  w(ks[15], (1, 4 * H)),
        # feat_out (no bias), prob_out, stop_out  (input = input_dim + H, use_concate)
        "wf":    w(ks[16], (H + E, out_dim * rf)),
        "wp":    w(ks[17], (H + E, rf)),
        "bp":    w(ks[18], (1, rf)),
        "ws":    w(ks[19], (H + E, 1)),
        "bs":    w(ks[20], (1, 1)),
    }


if __name__ == "__main__":
    key = jax.random.PRNGKey(0)
    kp, km = jax.random.split(key)

    # small shapes consistent with the module:
    #   B=2, encoder steps S=8, encoder/memory dim (=input_dim) E=32,
    #   output_dim=16, prenet_units=[32,32], decoder_rnn_units=64, rf=1
    B, S, E = 2, 8, 32
    OUT_DIM, H, A = 16, 64, 32

    params = init_params(kp, E=E, A=A, out_dim=OUT_DIM, P=(32, 32), H=H, rf=1)
    memory = (0.5 * jax.random.normal(km, (B, S, E))).astype(jnp.float32)
    memory_length = jnp.array([[S], [S - 2]], dtype=jnp.int32)   # (B, 1)

    # constructor choice: stop_threshold=1.5 (>1) => sigmoid(stop) never exceeds it,
    # so the eval loop runs exactly max_iters+1 steps; pick max_iters=5 -> T=6.
    max_iters = 5
    num_steps = max_iters + 1

    before_outs, stops, att_ws = decoder_forward(memory, memory_length, params, num_steps)
    jax.block_until_ready((before_outs, stops, att_ws))

    assert before_outs.shape == (B, num_steps, OUT_DIM)
    assert stops.shape == (B, num_steps)
    assert att_ws.shape == (B, num_steps, S)
    assert bool(jnp.all(jnp.isfinite(before_outs)))
    assert bool(jnp.all(jnp.isfinite(stops)))
    # attention weights are a masked softmax -> rows sum to 1
    assert bool(jnp.all(jnp.abs(jnp.sum(att_ws, axis=-1) - 1.0) < 1e-4))

    print("KERNEL_OK")
</pallas_src>

<mosaic_0001>
module attributes {stable_mosaic.version = 11 : i64} {
  func.func @decoder_kernel(%arg0: i32, %arg1: memref<2x8x128xf32, #tpu.memory_space<vmem>>, %arg2: memref<2x1x1xi32, #tpu.memory_space<vmem>>, %arg3: memref<128x32xf32, #tpu.memory_space<vmem>>, %arg4: memref<1x32xf32, #tpu.memory_space<vmem>>, %arg5: memref<1x32xf32, #tpu.memory_space<vmem>>, %arg6: memref<256x512xbf16, #tpu.memory_space<vmem>>, %arg7: memref<256x544xbf16, #tpu.memory_space<vmem>>, %arg8: memref<1x512xf32, #tpu.memory_space<vmem>>, %arg9: memref<256x17xf32, #tpu.memory_space<vmem>>, %arg10: memref<2x6x128xf32, #tpu.memory_space<vmem>>, %arg11: memref<12x256xf32, #tpu.memory_space<vmem>>, %arg12: memref<12x8xf32, #tpu.memory_space<vmem>>) attributes {dimension_semantics = [#tpu.dimension_semantics<parallel>], iteration_bounds = array<i64: 1>, scalar_prefetch = 0 : i64, scratch_operands = 2 : i64, tpu.core_type = #tpu.core_type<tc>, window_params = [{transform_indices = @transform_0, window_bounds = array<i64: 2, 8, 128>}, {transform_indices = @transform_1, window_bounds = array<i64: 2, 1, 1>}, {pipeline_mode = #tpu.pipeline_mode<synchronous>, transform_indices = @transform_2, window_bounds = array<i64: 128, 32>}, {pipeline_mode = #tpu.pipeline_mode<synchronous>, transform_indices = @transform_3, window_bounds = array<i64: 1, 32>}, {pipeline_mode = #tpu.pipeline_mode<synchronous>, transform_indices = @transform_4, window_bounds = array<i64: 1, 32>}, {pipeline_mode = #tpu.pipeline_mode<synchronous>, transform_indices = @transform_5, window_bounds = array<i64: 256, 512>}, {pipeline_mode = #tpu.pipeline_mode<synchronous>, transform_indices = @transform_6, window_bounds = array<i64: 256, 544>}, {pipeline_mode = #tpu.pipeline_mode<synchronous>, transform_indices = @transform_7, window_bounds = array<i64: 1, 512>}, {pipeline_mode = #tpu.pipeline_mode<synchronous>, transform_indices = @transform_8, window_bounds = array<i64: 256, 17>}, {transform_indices = @transform_9, window_bounds = array<i64: 2, 6, 128>}]} {
    %c0 = arith.constant 0 : index
    %c0_0 = arith.constant 0 : index
    %c0_1 = arith.constant 0 : index
    %0 = vector.load %arg1[%c0, %c0_0, %c0_1] : memref<2x8x128xf32, #tpu.memory_space<vmem>>, vector<2x8x128xf32>
    %1 = vector.shape_cast %0 : vector<2x8x128xf32> to vector<16x128xf32>
    %c0_2 = arith.constant 0 : index
    %c0_3 = arith.constant 0 : index
    %2 = vector.load %arg3[%c0_2, %c0_3] : memref<128x32xf32, #tpu.memory_space<vmem>>, vector<128x32xf32>
    %cst = arith.constant dense<0.000000e+00> : vector<16x32xf32>
    %3 = tpu.matmul %1, %2, %cst {dimension_numbers = #tpu.dot_dimension_numbers<[1], [0], [0], [1], [0, 0, 1, 1], [], []>} : vector<16x128xf32>, vector<128x32xf32>, vector<16x32xf32> -> vector<16x32xf32>
    %4 = vector.shape_cast %3 : vector<16x32xf32> to vector<2x8x32xf32>
    %c0_4 = arith.constant 0 : index
    %c0_5 = arith.constant 0 : index
    %5 = vector.load %arg4[%c0_4, %c0_5] : memref<1x32xf32, #tpu.memory_space<vmem>>, vector<1x32xf32>
    %6 = vector.shape_cast %5 : vector<1x32xf32> to vector<1x1x32xf32>
    %7 = vector.broadcast %6 : vector<1x1x32xf32> to vector<2x8x32xf32>
    %8 = arith.addf %4, %7 : vector<2x8x32xf32>
    %9 = tpu.iota {dimensions = array<i32: 1>} : vector<2x8xi32>
    %c0_6 = arith.constant 0 : index
    %c0_7 = arith.constant 0 : index
    %c0_8 = arith.constant 0 : index
    %10 = vector.load %arg2[%c0_6, %c0_7, %c0_8] : memref<2x1x1xi32, #tpu.memory_space<vmem>>, vector<2x1x1xi32>
    %11 = vector.shape_cast %10 : vector<2x1x1xi32> to vector<2x1xi32>
    %12 = vector.broadcast %11 : vector<2x1xi32> to vector<2x8xi32>
    %13 = arith.cmpi slt, %9, %12 : vector<2x8xi32>
    %cst_9 = arith.constant 0.000000e+00 : f32
    %cst_10 = arith.constant -1.000000e+30 : f32
    %14 = vector.broadcast %cst_9 : f32 to vector<2x8xf32>
    %15 = vector.broadcast %cst_10 : f32 to vector<2x8xf32>
    %16 = arith.select %13, %14, %15 : vector<2x8xi1>, vector<2x8xf32>
    %c0_11 = arith.constant 0 : index
    %c0_12 = arith.constant 0 : index
    %17 = vector.load %arg5[%c0_11, %c0_12] : memref<1x32xf32, #tpu.memory_space<vmem>>, vector<1x32xf32>
    %18 = vector.shape_cast %17 : vector<1x32xf32> to vector<1x1x32xf32>
    %c0_13 = arith.constant 0 : index
    %c0_14 = arith.constant 0 : index
    %19 = vector.load %arg6[%c0_13, %c0_14] : memref<256x512xbf16, #tpu.memory_space<vmem>>, vector<256x512xbf16>
    %c0_15 = arith.constant 0 : index
    %c0_16 = arith.constant 0 : index
    %20 = vector.load %arg7[%c0_15, %c0_16] : memref<256x544xbf16, #tpu.memory_space<vmem>>, vector<256x544xbf16>
    %c0_17 = arith.constant 0 : index
    %c0_18 = arith.constant 0 : index
    %21 = vector.load %arg8[%c0_17, %c0_18] : memref<1x512xf32, #tpu.memory_space<vmem>>, vector<1x512xf32>
    %22 = vector.shape_cast %21 : vector<1x512xf32> to vector<1x512xf32>
    %23 = vector.broadcast %22 : vector<1x512xf32> to vector<2x512xf32>
    %cst_19 = arith.constant 0.000000e+00 : f32
    %24 = vector.broadcast %cst_19 : f32 to vector<2x128xf32>
    %cst_20 = arith.constant 0.000000e+00 : f32
    %25 = vector.broadcast %cst_20 : f32 to vector<2x128xf32>
    %cst_21 = arith.constant 0.000000e+00 : f32
    %26 = vector.broadcast %cst_21 : f32 to vector<2x128xf32>
    %cst_22 = arith.constant 0.000000e+00 : f32
    %27 = vector.broadcast %cst_22 : f32 to vector<2x128xf32>
    %cst_23 = arith.constant 0.000000e+00 : f32
    %28 = vector.broadcast %cst_23 : f32 to vector<2x32xf32>
    %c0_i32 = arith.constant 0 : i32
    %29 = vector.shape_cast %28 : vector<2x32xf32> to vector<2x1x32xf32>
    %30 = vector.broadcast %29 : vector<2x1x32xf32> to vector<2x8x32xf32>
    %31 = arith.addf %8, %30 : vector<2x8x32xf32>
    %32 = math.tanh %31 : vector<2x8x32xf32>
    %33 = vector.broadcast %18 : vector<1x1x32xf32> to vector<2x8x32xf32>
    %34 = arith.mulf %32, %33 : vector<2x8x32xf32>
    %cst_24 = arith.constant dense<0.000000e+00> : vector<2x8xf32>
    %35 = vector.multi_reduction <add>, %34, %cst_24 [2] : vector<2x8x32xf32> to vector<2x8xf32>
    %36 = arith.addf %35, %16 : vector<2x8xf32>
    %cst_25 = arith.constant dense<0xFF800000> : vector<2xf32>
    %37 = vector.multi_reduction <maximumf>, %36, %cst_25 [1] : vector<2x8xf32> to vector<2xf32>
    %38 = vector.shape_cast %37 : vector<2xf32> to vector<2x1xf32>
    %39 = vector.broadcast %38 : vector<2x1xf32> to vector<2x8xf32>
    %40 = arith.subf %36, %39 : vector<2x8xf32>
    %41 = math.exp %40 : vector<2x8xf32>
    %cst_26 = arith.constant dense<0.000000e+00> : vector<2xf32>
    %42 = vector.multi_reduction <add>, %41, %cst_26 [1] : vector<2x8xf32> to vector<2xf32>
    %43 = vector.shape_cast %42 : vector<2xf32> to vector<2x1xf32>
    %cst_27 = arith.constant 1.000000e-30 : f32
    %44 = vector.broadcast %cst_27 : f32 to vector<2x1xf32>
    %45 = arith.maximumf %43, %44 : vector<2x1xf32>
    %cst_28 = arith.constant 1.000000e+00 : f32
    %46 = vector.broadcast %cst_28 : f32 to vector<2x1xf32>
    %47 = arith.divf %46, %45 : vector<2x1xf32>
    %48 = vector.broadcast %47 : vector<2x1xf32> to vector<2x8xf32>
    %49 = arith.mulf %41, %48 : vector<2x8xf32>
    %50 = vector.shape_cast %49 : vector<2x8xf32> to vector<2x8x1xf32>
    %51 = vector.broadcast %50 : vector<2x8x1xf32> to vector<2x8x128xf32>
    %52 = arith.mulf %51, %0 : vector<2x8x128xf32>
    %cst_29 = arith.constant dense<0.000000e+00> : vector<2x128xf32>
    %53 = vector.multi_reduction <add>, %52, %cst_29 [1] : vector<2x8x128xf32> to vector<2x128xf32>
    %54 = tpu.concatenate %53, %24 in 1 : vector<2x128xf32>, vector<2x128xf32> -> vector<2x256xf32>
    %55 = arith.truncf %54 : vector<2x256xf32> to vector<2x256xbf16>
    %cst_30 = arith.constant dense<0.000000e+00> : vector<2x512xf32>
    %56 = tpu.matmul %55, %19, %cst_30 {dimension_numbers = #tpu.dot_dimension_numbers<[1], [0], [0], [1], [0, 0, 1, 1], [], []>} : vector<2x256xbf16>, vector<256x512xbf16>, vector<2x512xf32> -> vector<2x512xf32>
    %57 = vector.extract_strided_slice %56 {offsets = [0, 0], sizes = [2, 384], strides = [1, 1]} : vector<2x512xf32> to vector<2x384xf32>
    %58 = arith.negf %57 : vector<2x384xf32>
    %59 = math.exp %58 : vector<2x384xf32>
    %cst_31 = arith.constant 1.000000e+00 : f32
    %60 = vector.broadcast %cst_31 : f32 to vector<2x384xf32>
    %61 = arith.addf %60, %59 : vector<2x384xf32>
    %62 = arith.divf %60, %61 : vector<2x384xf32>
    %63 = vector.extract_strided_slice %62 {offsets = [0, 0], sizes = [2, 128], strides = [1, 1]} : vector<2x384xf32> to vector<2x128xf32>
    %64 = vector.extract_strided_slice %62 {offsets = [0, 128], sizes = [2, 128], strides = [1, 1]} : vector<2x384xf32> to vector<2x128xf32>
    %65 = vector.extract_strided_slice %62 {offsets = [0, 256], sizes = [2, 128], strides = [1, 1]} : vector<2x384xf32> to vector<2x128xf32>
    %66 = vector.extract_strided_slice %56 {offsets = [0, 384], sizes = [2, 128], strides = [1, 1]} : vector<2x512xf32> to vector<2x128xf32>
    %67 = math.tanh %66 : vector<2x128xf32>
    %68 = arith.mulf %64, %25 : vector<2x128xf32>
    %69 = arith.mulf %63, %67 : vector<2x128xf32>
    %70 = arith.addf %68, %69 : vector<2x128xf32>
    %71 = math.tanh %70 : vector<2x128xf32>
    %72 = arith.mulf %65, %71 : vector<2x128xf32>
    %cst_32 = arith.constant 1.000000e-01 : f32
    %73 = vector.broadcast %cst_32 : f32 to vector<2x128xf32>
    %74 = arith.mulf %73, %24 : vector<2x128xf32>
    %cst_33 = arith.constant 0.899999976 : f32
    %75 = vector.broadcast %cst_33 : f32 to vector<2x128xf32>
    %76 = arith.mulf %75, %72 : vector<2x128xf32>
    %77 = arith.addf %74, %76 : vector<2x128xf32>
    %cst_34 = arith.constant 1.000000e-01 : f32
    %78 = vector.broadcast %cst_34 : f32 to vector<2x128xf32>
    %79 = arith.mulf %78, %25 : vector<2x128xf32>
    %cst_35 = arith.constant 0.899999976 : f32
    %80 = vector.broadcast %cst_35 : f32 to vector<2x128xf32>
    %81 = arith.mulf %80, %70 : vector<2x128xf32>
    %82 = arith.addf %79, %81 : vector<2x128xf32>
    %83 = tpu.concatenate %77, %26 in 1 : vector<2x128xf32>, vector<2x128xf32> -> vector<2x256xf32>
    %84 = arith.truncf %83 : vector<2x256xf32> to vector<2x256xbf16>
    %cst_36 = arith.constant dense<0.000000e+00> : vector<2x544xf32>
    %85 = tpu.matmul %84, %20, %cst_36 {dimension_numbers = #tpu.dot_dimension_numbers<[1], [0], [0], [1], [0, 0, 1, 1], [], []>} : vector<2x256xbf16>, vector<256x544xbf16>, vector<2x544xf32> -> vector<2x544xf32>
    %86 = vector.extract_strided_slice %85 {offsets = [0, 0], sizes = [2, 512], strides = [1, 1]} : vector<2x544xf32> to vector<2x512xf32>
    %87 = arith.addf %86, %23 : vector<2x512xf32>
    %88 = vector.extract_strided_slice %87 {offsets = [0, 0], sizes = [2, 384], strides = [1, 1]} : vector<2x512xf32> to vector<2x384xf32>
    %89 = arith.negf %88 : vector<2x384xf32>
    %90 = math.exp %89 : vector<2x384xf32>
    %cst_37 = arith.constant 1.000000e+00 : f32
    %91 = vector.broadcast %cst_37 : f32 to vector<2x384xf32>
    %92 = arith.addf %91, %90 : vector<2x384xf32>
    %93 = arith.divf %91, %92 : vector<2x384xf32>
    %94 = vector.extract_strided_slice %93 {offsets = [0, 0], sizes = [2, 128], strides = [1, 1]} : vector<2x384xf32> to vector<2x128xf32>
    %95 = vector.extract_strided_slice %93 {offsets = [0, 128], sizes = [2, 128], strides = [1, 1]} : vector<2x384xf32> to vector<2x128xf32>
    %96 = vector.extract_strided_slice %93 {offsets = [0, 256], sizes = [2, 128], strides = [1, 1]} : vector<2x384xf32> to vector<2x128xf32>
    %97 = vector.extract_strided_slice %87 {offsets = [0, 384], sizes = [2, 128], strides = [1, 1]} : vector<2x512xf32> to vector<2x128xf32>
    %98 = math.tanh %97 : vector<2x128xf32>
    %99 = arith.mulf %95, %27 : vector<2x128xf32>
    %100 = arith.mulf %94, %98 : vector<2x128xf32>
    %101 = arith.addf %99, %100 : vector<2x128xf32>
    %102 = math.tanh %101 : vector<2x128xf32>
    %103 = arith.mulf %96, %102 : vector<2x128xf32>
    %104 = vector.extract_strided_slice %85 {offsets = [0, 512], sizes = [2, 32], strides = [1, 1]} : vector<2x544xf32> to vector<2x32xf32>
    %cst_38 = arith.constant 1.000000e-01 : f32
    %105 = vector.broadcast %cst_38 : f32 to vector<2x128xf32>
    %106 = arith.mulf %105, %26 : vector<2x128xf32>
    %cst_39 = arith.constant 0.899999976 : f32
    %107 = vector.broadcast %cst_39 : f32 to vector<2x128xf32>
    %108 = arith.mulf %107, %103 : vector<2x128xf32>
    %109 = arith.addf %106, %108 : vector<2x128xf32>
    %cst_40 = arith.constant 1.000000e-01 : f32
    %110 = vector.broadcast %cst_40 : f32 to vector<2x128xf32>
    %111 = arith.mulf %110, %27 : vector<2x128xf32>
    %cst_41 = arith.constant 0.899999976 : f32
    %112 = vector.broadcast %cst_41 : f32 to vector<2x128xf32>
    %113 = arith.mulf %112, %101 : vector<2x128xf32>
    %114 = arith.addf %111, %113 : vector<2x128xf32>
    %115 = tpu.concatenate %109, %53 in 1 : vector<2x128xf32>, vector<2x128xf32> -> vector<2x256xf32>
    %c0_i32_42 = arith.constant 0 : i32
    %116 = arith.addi %c0_i32_42, %c0_i32 : i32
    %117 = vector.extract_strided_slice %115 {offsets = [0, 0], sizes = [1, 256], strides = [1, 1]} : vector<2x256xf32> to vector<1x256xf32>
    %118 = arith.index_cast %116 : i32 to index
    %c0_43 = arith.constant 0 : index
    %119 = vector.load %arg11[%118, %c0_43] : memref<12x256xf32, #tpu.memory_space<vmem>>, vector<1x256xf32>
    tpu.vector_store %arg11[%118, %c0_43], %117 {strides = array<i32>} : memref<12x256xf32, #tpu.memory_space<vmem>>, vector<1x256xf32>,
    %120 = vector.extract_strided_slice %49 {offsets = [0, 0], sizes = [1, 8], strides = [1, 1]} : vector<2x8xf32> to vector<1x8xf32>
    %121 = arith.index_cast %116 : i32 to index
    %c0_44 = arith.constant 0 : index
    %122 = vector.load %arg12[%121, %c0_44] : memref<12x8xf32, #tpu.memory_space<vmem>>, vector<1x8xf32>
    tpu.vector_store %arg12[%121, %c0_44], %120 {strides = array<i32>} : memref<12x8xf32, #tpu.memory_space<vmem>>, vector<1x8xf32>,
    %c6_i32 = arith.constant 6 : i32
    %123 = arith.addi %c6_i32, %c0_i32 : i32
    %124 = vector.extract_strided_slice %115 {offsets = [1, 0], sizes = [1, 256], strides = [1, 1]} : vector<2x256xf32> to vector<1x256xf32>
    %125 = arith.index_cast %123 : i32 to index
    %c0_45 = arith.constant 0 : index
    %126 = vector.load %arg11[%125, %c0_45] : memref<12x256xf32, #tpu.memory_space<vmem>>, vector<1x256xf32>
    tpu.vector_store %arg11[%125, %c0_45], %124 {strides = array<i32>} : memref<12x256xf32, #tpu.memory_space<vmem>>, vector<1x256xf32>,
    %127 = vector.extract_strided_slice %49 {offsets = [1, 0], sizes = [1, 8], strides = [1, 1]} : vector<2x8xf32> to vector<1x8xf32>
    %128 = arith.index_cast %123 : i32 to index
    %c0_46 = arith.constant 0 : index
    %129 = vector.load %arg12[%128, %c0_46] : memref<12x8xf32, #tpu.memory_space<vmem>>, vector<1x8xf32>
    tpu.vector_store %arg12[%128, %c0_46], %127 {strides = array<i32>} : memref<12x8xf32, #tpu.memory_space<vmem>>, vector<1x8xf32>,
    %c1_i32 = arith.constant 1 : i32
    %130 = vector.shape_cast %104 : vector<2x32xf32> to vector<2x1x32xf32>
    %131 = vector.broadcast %130 : vector<2x1x32xf32> to vector<2x8x32xf32>
    %132 = arith.addf %8, %131 : vector<2x8x32xf32>
    %133 = math.tanh %132 : vector<2x8x32xf32>
    %134 = vector.broadcast %18 : vector<1x1x32xf32> to vector<2x8x32xf32>
    %135 = arith.mulf %133, %134 : vector<2x8x32xf32>
    %cst_47 = arith.constant dense<0.000000e+00> : vector<2x8xf32>
    %136 = vector.multi_reduction <add>, %135, %cst_47 [2] : vector<2x8x32xf32> to vector<2x8xf32>
    %137 = arith.addf %136, %16 : vector<2x8xf32>
    %cst_48 = arith.constant dense<0xFF800000> : vector<2xf32>
    %138 = vector.multi_reduction <maximumf>, %137, %cst_48 [1] : vector<2x8xf32> to vector<2xf32>
    %139 = vector.shape_cast %138 : vector<2xf32> to vector<2x1xf32>
    %140 = vector.broadcast %139 : vector<2x1xf32> to vector<2x8xf32>
    %141 = arith.subf %137, %140 : vector<2x8xf32>
    %142 = math.exp %141 : vector<2x8xf32>
    %cst_49 = arith.constant dense<0.000000e+00> : vector<2xf32>
    %143 = vector.multi_reduction <add>, %142, %cst_49 [1] : vector<2x8xf32> to vector<2xf32>
    %144 = vector.shape_cast %143 : vector<2xf32> to vector<2x1xf32>
    %cst_50 = arith.constant 1.000000e-30 : f32
    %145 = vector.broadcast %cst_50 : f32 to vector<2x1xf32>
    %146 = arith.maximumf %144, %145 : vector<2x1xf32>
    %cst_51 = arith.constant 1.000000e+00 : f32
    %147 = vector.broadcast %cst_51 : f32 to vector<2x1xf32>
    %148 = arith.divf %147, %146 : vector<2x1xf32>
    %149 = vector.broadcast %148 : vector<2x1xf32> to vector<2x8xf32>
    %150 = arith.mulf %142, %149 : vector<2x8xf32>
    %151 = vector.shape_cast %150 : vector<2x8xf32> to vector<2x8x1xf32>
    %152 = vector.broadcast %151 : vector<2x8x1xf32> to vector<2x8x128xf32>
    %153 = arith.mulf %152, %0 : vector<2x8x128xf32>
    %cst_52 = arith.constant dense<0.000000e+00> : vector<2x128xf32>
    %154 = vector.multi_reduction <add>, %153, %cst_52 [1] : vector<2x8x128xf32> to vector<2x128xf32>
    %155 = tpu.concatenate %154, %77 in 1 : vector<2x128xf32>, vector<2x128xf32> -> vector<2x256xf32>
    %156 = arith.truncf %155 : vector<2x256xf32> to vector<2x256xbf16>
    %cst_53 = arith.constant dense<0.000000e+00> : vector<2x512xf32>
    %157 = tpu.matmul %156, %19, %cst_53 {dimension_numbers = #tpu.dot_dimension_numbers<[1], [0], [0], [1], [0, 0, 1, 1], [], []>} : vector<2x256xbf16>, vector<256x512xbf16>, vector<2x512xf32> -> vector<2x512xf32>
    %158 = vector.extract_strided_slice %157 {offsets = [0, 0], sizes = [2, 384], strides = [1, 1]} : vector<2x512xf32> to vector<2x384xf32>
    %159 = arith.negf %158 : vector<2x384xf32>
    %160 = math.exp %159 : vector<2x384xf32>
    %cst_54 = arith.constant 1.000000e+00 : f32
    %161 = vector.broadcast %cst_54 : f32 to vector<2x384xf32>
    %162 = arith.addf %161, %160 : vector<2x384xf32>
    %163 = arith.divf %161, %162 : vector<2x384xf32>
    %164 = vector.extract_strided_slice %163 {offsets = [0, 0], sizes = [2, 128], strides = [1, 1]} : vector<2x384xf32> to vector<2x128xf32>
    %165 = vector.extract_strided_slice %163 {offsets = [0, 128], sizes = [2, 128], strides = [1, 1]} : vector<2x384xf32> to vector<2x128xf32>
    %166 = vector.extract_strided_slice %163 {offsets = [0, 256], sizes = [2, 128], strides = [1, 1]} : vector<2x384xf32> to vector<2x128xf32>
    %167 = vector.extract_strided_slice %157 {offsets = [0, 384], sizes = [2, 128], strides = [1, 1]} : vector<2x512xf32> to vector<2x128xf32>
    %168 = math.tanh %167 : vector<2x128xf32>
    %169 = arith.mulf %165, %82 : vector<2x128xf32>
    %170 = arith.mulf %164, %168 : vector<2x128xf32>
    %171 = arith.addf %169, %170 : vector<2x128xf32>
    %172 = math.tanh %171 : vector<2x128xf32>
    %173 = arith.mulf %166, %172 : vector<2x128xf32>
    %cst_55 = arith.constant 1.000000e-01 : f32
    %174 = vector.broadcast %cst_55 : f32 to vector<2x128xf32>
    %175 = arith.mulf %174, %77 : vector<2x128xf32>
    %cst_56 = arith.constant 0.899999976 : f32
    %176 = vector.broadcast %cst_56 : f32 to vector<2x128xf32>
    %177 = arith.mulf %176, %173 : vector<2x128xf32>
    %178 = arith.addf %175, %177 : vector<2x128xf32>
    %cst_57 = arith.constant 1.000000e-01 : f32
    %179 = vector.broadcast %cst_57 : f32 to vector<2x128xf32>
    %180 = arith.mulf %179, %82 : vector<2x128xf32>
    %cst_58 = arith.constant 0.899999976 : f32
    %181 = vector.broadcast %cst_58 : f32 to vector<2x128xf32>
    %182 = arith.mulf %181, %171 : vector<2x128xf32>
    %183 = arith.addf %180, %182 : vector<2x128xf32>
    %184 = tpu.concatenate %178, %109 in 1 : vector<2x128xf32>, vector<2x128xf32> -> vector<2x256xf32>
    %185 = arith.truncf %184 : vector<2x256xf32> to vector<2x256xbf16>
    %cst_59 = arith.constant dense<0.000000e+00> : vector<2x544xf32>
    %186 = tpu.matmul %185, %20, %cst_59 {dimension_numbers = #tpu.dot_dimension_numbers<[1], [0], [0], [1], [0, 0, 1, 1], [], []>} : vector<2x256xbf16>, vector<256x544xbf16>, vector<2x544xf32> -> vector<2x544xf32>
    %187 = vector.extract_strided_slice %186 {offsets = [0, 0], sizes = [2, 512], strides = [1, 1]} : vector<2x544xf32> to vector<2x512xf32>
    %188 = arith.addf %187, %23 : vector<2x512xf32>
    %189 = vector.extract_strided_slice %188 {offsets = [0, 0], sizes = [2, 384], strides = [1, 1]} : vector<2x512xf32> to vector<2x384xf32>
    %190 = arith.negf %189 : vector<2x384xf32>
    %191 = math.exp %190 : vector<2x384xf32>
    %cst_60 = arith.constant 1.000000e+00 : f32
    %192 = vector.broadcast %cst_60 : f32 to vector<2x384xf32>
    %193 = arith.addf %192, %191 : vector<2x384xf32>
    %194 = arith.divf %192, %193 : vector<2x384xf32>
    %195 = vector.extract_strided_slice %194 {offsets = [0, 0], sizes = [2, 128], strides = [1, 1]} : vector<2x384xf32> to vector<2x128xf32>
    %196 = vector.extract_strided_slice %194 {offsets = [0, 128], sizes = [2, 128], strides = [1, 1]} : vector<2x384xf32> to vector<2x128xf32>
    %197 = vector.extract_strided_slice %194 {offsets = [0, 256], sizes = [2, 128], strides = [1, 1]} : vector<2x384xf32> to vector<2x128xf32>
    %198 = vector.extract_strided_slice %188 {offsets = [0, 384], sizes = [2, 128], strides = [1, 1]} : vector<2x512xf32> to vector<2x128xf32>
    %199 = math.tanh %198 : vector<2x128xf32>
    %200 = arith.mulf %196, %114 : vector<2x128xf32>
    %201 = arith.mulf %195, %199 : vector<2x128xf32>
    %202 = arith.addf %200, %201 : vector<2x128xf32>
    %203 = math.tanh %202 : vector<2x128xf32>
    %204 = arith.mulf %197, %203 : vector<2x128xf32>
    %205 = vector.extract_strided_slice %186 {offsets = [0, 512], sizes = [2, 32], strides = [1, 1]} : vector<2x544xf32> to vector<2x32xf32>
    %cst_61 = arith.constant 1.000000e-01 : f32
    %206 = vector.broadcast %cst_61 : f32 to vector<2x128xf32>
    %207 = arith.mulf %206, %109 : vector<2x128xf32>
    %cst_62 = arith.constant 0.899999976 : f32
    %208 = vector.broadcast %cst_62 : f32 to vector<2x128xf32>
    %209 = arith.mulf %208, %204 : vector<2x128xf32>
    %210 = arith.addf %207, %209 : vector<2x128xf32>
    %cst_63 = arith.constant 1.000000e-01 : f32
    %211 = vector.broadcast %cst_63 : f32 to vector<2x128xf32>
    %212 = arith.mulf %211, %114 : vector<2x128xf32>
    %cst_64 = arith.constant 0.899999976 : f32
    %213 = vector.broadcast %cst_64 : f32 to vector<2x128xf32>
    %214 = arith.mulf %213, %202 : vector<2x128xf32>
    %215 = arith.addf %212, %214 : vector<2x128xf32>
    %216 = tpu.concatenate %210, %154 in 1 : vector<2x128xf32>, vector<2x128xf32> -> vector<2x256xf32>
    %c0_i32_65 = arith.constant 0 : i32
    %217 = arith.addi %c0_i32_65, %c1_i32 : i32
    %218 = vector.extract_strided_slice %216 {offsets = [0, 0], sizes = [1, 256], strides = [1, 1]} : vector<2x256xf32> to vector<1x256xf32>
    %219 = arith.index_cast %217 : i32 to index
    %c0_66 = arith.constant 0 : index
    %220 = vector.load %arg11[%219, %c0_66] : memref<12x256xf32, #tpu.memory_space<vmem>>, vector<1x256xf32>
    tpu.vector_store %arg11[%219, %c0_66], %218 {strides = array<i32>} : memref<12x256xf32, #tpu.memory_space<vmem>>, vector<1x256xf32>,
    %221 = vector.extract_strided_slice %150 {offsets = [0, 0], sizes = [1, 8], strides = [1, 1]} : vector<2x8xf32> to vector<1x8xf32>
    %222 = arith.index_cast %217 : i32 to index
    %c0_67 = arith.constant 0 : index
    %223 = vector.load %arg12[%222, %c0_67] : memref<12x8xf32, #tpu.memory_space<vmem>>, vector<1x8xf32>
    tpu.vector_store %arg12[%222, %c0_67], %221 {strides = array<i32>} : memref<12x8xf32, #tpu.memory_space<vmem>>, vector<1x8xf32>,
    %c6_i32_68 = arith.constant 6 : i32
    %224 = arith.addi %c6_i32_68, %c1_i32 : i32
    %225 = vector.extract_strided_slice %216 {offsets = [1, 0], sizes = [1, 256], strides = [1, 1]} : vector<2x256xf32> to vector<1x256xf32>
    %226 = arith.index_cast %224 : i32 to index
    %c0_69 = arith.constant 0 : index
    %227 = vector.load %arg11[%226, %c0_69] : memref<12x256xf32, #tpu.memory_space<vmem>>, vector<1x256xf32>
    tpu.vector_store %arg11[%226, %c0_69], %225 {strides = array<i32>} : memref<12x256xf32, #tpu.memory_space<vmem>>, vector<1x256xf32>,
    %228 = vector.extract_strided_slice %150 {offsets = [1, 0], sizes = [1, 8], strides = [1, 1]} : vector<2x8xf32> to vector<1x8xf32>
    %229 = arith.index_cast %224 : i32 to index
    %c0_70 = arith.constant 0 : index
    %230 = vector.load %arg12[%229, %c0_70] : memref<12x8xf32, #tpu.memory_space<vmem>>, vector<1x8xf32>
    tpu.vector_store %arg12[%229, %c0_70], %228 {strides = array<i32>} : memref<12x8xf32, #tpu.memory_space<vmem>>, vector<1x8xf32>,
    %c2_i32 = arith.constant 2 : i32
    %231 = vector.shape_cast %205 : vector<2x32xf32> to vector<2x1x32xf32>
    %232 = vector.broadcast %231 : vector<2x1x32xf32> to vector<2x8x32xf32>
    %233 = arith.addf %8, %232 : vector<2x8x32xf32>
    %234 = math.tanh %233 : vector<2x8x32xf32>
    %235 = vector.broadcast %18 : vector<1x1x32xf32> to vector<2x8x32xf32>
    %236 = arith.mulf %234, %235 : vector<2x8x32xf32>
    %cst_71 = arith.constant dense<0.000000e+00> : vector<2x8xf32>
    %237 = vector.multi_reduction <add>, %236, %cst_71 [2] : vector<2x8x32xf32> to vector<2x8xf32>
    %238 = arith.addf %237, %16 : vector<2x8xf32>
    %cst_72 = arith.constant dense<0xFF800000> : vector<2xf32>
    %239 = vector.multi_reduction <maximumf>, %238, %cst_72 [1] : vector<2x8xf32> to vector<2xf32>
    %240 = vector.shape_cast %239 : vector<2xf32> to vector<2x1xf32>
    %241 = vector.broadcast %240 : vector<2x1xf32> to vector<2x8xf32>
    %242 = arith.subf %238, %241 : vector<2x8xf32>
    %243 = math.exp %242 : vector<2x8xf32>
    %cst_73 = arith.constant dense<0.000000e+00> : vector<2xf32>
    %244 = vector.multi_reduction <add>, %243, %cst_73 [1] : vector<2x8xf32> to vector<2xf32>
    %245 = vector.shape_cast %244 : vector<2xf32> to vector<2x1xf32>
    %cst_74 = arith.constant 1.000000e-30 : f32
    %246 = vector.broadcast %cst_74 : f32 to vector<2x1xf32>
    %247 = arith.maximumf %245, %246 : vector<2x1xf32>
    %cst_75 = arith.constant 1.000000e+00 : f32
    %248 = vector.broadcast %cst_75 : f32 to vector<2x1xf32>
    %249 = arith.divf %248, %247 : vector<2x1xf32>
    %250 = vector.broadcast %249 : vector<2x1xf32> to vector<2x8xf32>
    %251 = arith.mulf %243, %250 : vector<2x8xf32>
    %252 = vector.shape_cast %251 : vector<2x8xf32> to vector<2x8x1xf32>
    %253 = vector.broadcast %252 : vector<2x8x1xf32> to vector<2x8x128xf32>
    %254 = arith.mulf %253, %0 : vector<2x8x128xf32>
    %cst_76 = arith.constant dense<0.000000e+00> : vector<2x128xf32>
    %255 = vector.multi_reduction <add>, %254, %cst_76 [1] : vector<2x8x128xf32> to vector<2x128xf32>
    %256 = tpu.concatenate %255, %178 in 1 : vector<2x128xf32>, vector<2x128xf32> -> vector<2x256xf32>
    %257 = arith.truncf %256 : vector<2x256xf32> to vector<2x256xbf16>
    %cst_77 = arith.constant dense<0.000000e+00> : vector<2x512xf32>
    %258 = tpu.matmul %257, %19, %cst_77 {dimension_numbers = #tpu.dot_dimension_numbers<[1], [0], [0], [1], [0, 0, 1, 1], [], []>} : vector<2x256xbf16>, vector<256x512xbf16>, vector<2x512xf32> -> vector<2x512xf32>
    %259 = vector.extract_strided_slice %258 {offsets = [0, 0], sizes = [2, 384], strides = [1, 1]} : vector<2x512xf32> to vector<2x384xf32>
    %260 = arith.negf %259 : vector<2x384xf32>
    %261 = math.exp %260 : vector<2x384xf32>
    %cst_78 = arith.constant 1.000000e+00 : f32
    %262 = vector.broadcast %cst_78 : f32 to vector<2x384xf32>
    %263 = arith.addf %262, %261 : vector<2x384xf32>
    %264 = arith.divf %262, %263 : vector<2x384xf32>
    %265 = vector.extract_strided_slice %264 {offsets = [0, 0], sizes = [2, 128], strides = [1, 1]} : vector<2x384xf32> to vector<2x128xf32>
    %266 = vector.extract_strided_slice %264 {offsets = [0, 128], sizes = [2, 128], strides = [1, 1]} : vector<2x384xf32> to vector<2x128xf32>
    %267 = vector.extract_strided_slice %264 {offsets = [0, 256], sizes = [2, 128], strides = [1, 1]} : vector<2x384xf32> to vector<2x128xf32>
    %268 = vector.extract_strided_slice %258 {offsets = [0, 384], sizes = [2, 128], strides = [1, 1]} : vector<2x512xf32> to vector<2x128xf32>
    %269 = math.tanh %268 : vector<2x128xf32>
    %270 = arith.mulf %266, %183 : vector<2x128xf32>
    %271 = arith.mulf %265, %269 : vector<2x128xf32>
    %272 = arith.addf %270, %271 : vector<2x128xf32>
    %273 = math.tanh %272 : vector<2x128xf32>
    %274 = arith.mulf %267, %273 : vector<2x128xf32>
    %cst_79 = arith.constant 1.000000e-01 : f32
    %275 = vector.broadcast %cst_79 : f32 to vector<2x128xf32>
    %276 = arith.mulf %275, %178 : vector<2x128xf32>
    %cst_80 = arith.constant 0.899999976 : f32
    %277 = vector.broadcast %cst_80 : f32 to vector<2x128xf32>
    %278 = arith.mulf %277, %274 : vector<2x128xf32>
    %279 = arith.addf %276, %278 : vector<2x128xf32>
    %cst_81 = arith.constant 1.000000e-01 : f32
    %280 = vector.broadcast %cst_81 : f32 to vector<2x128xf32>
    %281 = arith.mulf %280, %183 : vector<2x128xf32>
    %cst_82 = arith.constant 0.899999976 : f32
    %282 = vector.broadcast %cst_82 : f32 to vector<2x128xf32>
    %283 = arith.mulf %282, %272 : vector<2x128xf32>
    %284 = arith.addf %281, %283 : vector<2x128xf32>
    %285 = tpu.concatenate %279, %210 in 1 : vector<2x128xf32>, vector<2x128xf32> -> vector<2x256xf32>
    %286 = arith.truncf %285 : vector<2x256xf32> to vector<2x256xbf16>
    %cst_83 = arith.constant dense<0.000000e+00> : vector<2x544xf32>
    %287 = tpu.matmul %286, %20, %cst_83 {dimension_numbers = #tpu.dot_dimension_numbers<[1], [0], [0], [1], [0, 0, 1, 1], [], []>} : vector<2x256xbf16>, vector<256x544xbf16>, vector<2x544xf32> -> vector<2x544xf32>
    %288 = vector.extract_strided_slice %287 {offsets = [0, 0], sizes = [2, 512], strides = [1, 1]} : vector<2x544xf32> to vector<2x512xf32>
    %289 = arith.addf %288, %23 : vector<2x512xf32>
    %290 = vector.extract_strided_slice %289 {offsets = [0, 0], sizes = [2, 384], strides = [1, 1]} : vector<2x512xf32> to vector<2x384xf32>
    %291 = arith.negf %290 : vector<2x384xf32>
    %292 = math.exp %291 : vector<2x384xf32>
    %cst_84 = arith.constant 1.000000e+00 : f32
    %293 = vector.broadcast %cst_84 : f32 to vector<2x384xf32>
    %294 = arith.addf %293, %292 : vector<2x384xf32>
    %295 = arith.divf %293, %294 : vector<2x384xf32>
    %296 = vector.extract_strided_slice %295 {offsets = [0, 0], sizes = [2, 128], strides = [1, 1]} : vector<2x384xf32> to vector<2x128xf32>
    %297 = vector.extract_strided_slice %295 {offsets = [0, 128], sizes = [2, 128], strides = [1, 1]} : vector<2x384xf32> to vector<2x128xf32>
    %298 = vector.extract_strided_slice %295 {offsets = [0, 256], sizes = [2, 128], strides = [1, 1]} : vector<2x384xf32> to vector<2x128xf32>
    %299 = vector.extract_strided_slice %289 {offsets = [0, 384], sizes = [2, 128], strides = [1, 1]} : vector<2x512xf32> to vector<2x128xf32>
    %300 = math.tanh %299 : vector<2x128xf32>
    %301 = arith.mulf %297, %215 : vector<2x128xf32>
    %302 = arith.mulf %296, %300 : vector<2x128xf32>
    %303 = arith.addf %301, %302 : vector<2x128xf32>
    %304 = math.tanh %303 : vector<2x128xf32>
    %305 = arith.mulf %298, %304 : vector<2x128xf32>
    %306 = vector.extract_strided_slice %287 {offsets = [0, 512], sizes = [2, 32], strides = [1, 1]} : vector<2x544xf32> to vector<2x32xf32>
    %cst_85 = arith.constant 1.000000e-01 : f32
    %307 = vector.broadcast %cst_85 : f32 to vector<2x128xf32>
    %308 = arith.mulf %307, %210 : vector<2x128xf32>
    %cst_86 = arith.constant 0.899999976 : f32
    %309 = vector.broadcast %cst_86 : f32 to vector<2x128xf32>
    %310 = arith.mulf %309, %305 : vector<2x128xf32>
    %311 = arith.addf %308, %310 : vector<2x128xf32>
    %cst_87 = arith.constant 1.000000e-01 : f32
    %312 = vector.broadcast %cst_87 : f32 to vector<2x128xf32>
    %313 = arith.mulf %312, %215 : vector<2x128xf32>
    %cst_88 = arith.constant 0.899999976 : f32
    %314 = vector.broadcast %cst_88 : f32 to vector<2x128xf32>
    %315 = arith.mulf %314, %303 : vector<2x128xf32>
    %316 = arith.addf %313, %315 : vector<2x128xf32>
    %317 = tpu.concatenate %311, %255 in 1 : vector<2x128xf32>, vector<2x128xf32> -> vector<2x256xf32>
    %c0_i32_89 = arith.constant 0 : i32
    %318 = arith.addi %c0_i32_89, %c2_i32 : i32
    %319 = vector.extract_strided_slice %317 {offsets = [0, 0], sizes = [1, 256], strides = [1, 1]} : vector<2x256xf32> to vector<1x256xf32>
    %320 = arith.index_cast %318 : i32 to index
    %c0_90 = arith.constant 0 : index
    %321 = vector.load %arg11[%320, %c0_90] : memref<12x256xf32, #tpu.memory_space<vmem>>, vector<1x256xf32>
    tpu.vector_store %arg11[%320, %c0_90], %319 {strides = array<i32>} : memref<12x256xf32, #tpu.memory_space<vmem>>, vector<1x256xf32>,
    %322 = vector.extract_strided_slice %251 {offsets = [0, 0], sizes = [1, 8], strides = [1, 1]} : vector<2x8xf32> to vector<1x8xf32>
    %323 = arith.index_cast %318 : i32 to index
    %c0_91 = arith.constant 0 : index
    %324 = vector.load %arg12[%323, %c0_91] : memref<12x8xf32, #tpu.memory_space<vmem>>, vector<1x8xf32>
    tpu.vector_store %arg12[%323, %c0_91], %322 {strides = array<i32>} : memref<12x8xf32, #tpu.memory_space<vmem>>, vector<1x8xf32>,
    %c6_i32_92 = arith.constant 6 : i32
    %325 = arith.addi %c6_i32_92, %c2_i32 : i32
    %326 = vector.extract_strided_slice %317 {offsets = [1, 0], sizes = [1, 256], strides = [1, 1]} : vector<2x256xf32> to vector<1x256xf32>
    %327 = arith.index_cast %325 : i32 to index
    %c0_93 = arith.constant 0 : index
    %328 = vector.load %arg11[%327, %c0_93] : memref<12x256xf32, #tpu.memory_space<vmem>>, vector<1x256xf32>
    tpu.vector_store %arg11[%327, %c0_93], %326 {strides = array<i32>} : memref<12x256xf32, #tpu.memory_space<vmem>>, vector<1x256xf32>,
    %329 = vector.extract_strided_slice %251 {offsets = [1, 0], sizes = [1, 8], strides = [1, 1]} : vector<2x8xf32> to vector<1x8xf32>
    %330 = arith.index_cast %325 : i32 to index
    %c0_94 = arith.constant 0 : index
    %331 = vector.load %arg12[%330, %c0_94] : memref<12x8xf32, #tpu.memory_space<vmem>>, vector<1x8xf32>
    tpu.vector_store %arg12[%330, %c0_94], %329 {strides = array<i32>} : memref<12x8xf32, #tpu.memory_space<vmem>>, vector<1x8xf32>,
    %c3_i32 = arith.constant 3 : i32
    %332 = vector.shape_cast %306 : vector<2x32xf32> to vector<2x1x32xf32>
    %333 = vector.broadcast %332 : vector<2x1x32xf32> to vector<2x8x32xf32>
    %334 = arith.addf %8, %333 : vector<2x8x32xf32>
    %335 = math.tanh %334 : vector<2x8x32xf32>
    %336 = vector.broadcast %18 : vector<1x1x32xf32> to vector<2x8x32xf32>
    %337 = arith.mulf %335, %336 : vector<2x8x32xf32>
    %cst_95 = arith.constant dense<0.000000e+00> : vector<2x8xf32>
    %338 = vector.multi_reduction <add>, %337, %cst_95 [2] : vector<2x8x32xf32> to vector<2x8xf32>
    %339 = arith.addf %338, %16 : vector<2x8xf32>
    %cst_96 = arith.constant dense<0xFF800000> : vector<2xf32>
    %340 = vector.multi_reduction <maximumf>, %339, %cst_96 [1] : vector<2x8xf32> to vector<2xf32>
    %341 = vector.shape_cast %340 : vector<2xf32> to vector<2x1xf32>
    %342 = vector.broadcast %341 : vector<2x1xf32> to vector<2x8xf32>
    %343 = arith.subf %339, %342 : vector<2x8xf32>
    %344 = math.exp %343 : vector<2x8xf32>
    %cst_97 = arith.constant dense<0.000000e+00> : vector<2xf32>
    %345 = vector.multi_reduction <add>, %344, %cst_97 [1] : vector<2x8xf32> to vector<2xf32>
    %346 = vector.shape_cast %345 : vector<2xf32> to vector<2x1xf32>
    %cst_98 = arith.constant 1.000000e-30 : f32
    %347 = vector.broadcast %cst_98 : f32 to vector<2x1xf32>
    %348 = arith.maximumf %346, %347 : vector<2x1xf32>
    %cst_99 = arith.constant 1.000000e+00 : f32
    %349 = vector.broadcast %cst_99 : f32 to vector<2x1xf32>
    %350 = arith.divf %349, %348 : vector<2x1xf32>
    %351 = vector.broadcast %350 : vector<2x1xf32> to vector<2x8xf32>
    %352 = arith.mulf %344, %351 : vector<2x8xf32>
    %353 = vector.shape_cast %352 : vector<2x8xf32> to vector<2x8x1xf32>
    %354 = vector.broadcast %353 : vector<2x8x1xf32> to vector<2x8x128xf32>
    %355 = arith.mulf %354, %0 : vector<2x8x128xf32>
    %cst_100 = arith.constant dense<0.000000e+00> : vector<2x128xf32>
    %356 = vector.multi_reduction <add>, %355, %cst_100 [1] : vector<2x8x128xf32> to vector<2x128xf32>
    %357 = tpu.concatenate %356, %279 in 1 : vector<2x128xf32>, vector<2x128xf32> -> vector<2x256xf32>
    %358 = arith.truncf %357 : vector<2x256xf32> to vector<2x256xbf16>
    %cst_101 = arith.constant dense<0.000000e+00> : vector<2x512xf32>
    %359 = tpu.matmul %358, %19, %cst_101 {dimension_numbers = #tpu.dot_dimension_numbers<[1], [0], [0], [1], [0, 0, 1, 1], [], []>} : vector<2x256xbf16>, vector<256x512xbf16>, vector<2x512xf32> -> vector<2x512xf32>
    %360 = vector.extract_strided_slice %359 {offsets = [0, 0], sizes = [2, 384], strides = [1, 1]} : vector<2x512xf32> to vector<2x384xf32>
    %361 = arith.negf %360 : vector<2x384xf32>
    %362 = math.exp %361 : vector<2x384xf32>
    %cst_102 = arith.constant 1.000000e+00 : f32
    %363 = vector.broadcast %cst_102 : f32 to vector<2x384xf32>
    %364 = arith.addf %363, %362 : vector<2x384xf32>
    %365 = arith.divf %363, %364 : vector<2x384xf32>
    %366 = vector.extract_strided_slice %365 {offsets = [0, 0], sizes = [2, 128], strides = [1, 1]} : vector<2x384xf32> to vector<2x128xf32>
    %367 = vector.extract_strided_slice %365 {offsets = [0, 128], sizes = [2, 128], strides = [1, 1]} : vector<2x384xf32> to vector<2x128xf32>
    %368 = vector.extract_strided_slice %365 {offsets = [0, 256], sizes = [2, 128], strides = [1, 1]} : vector<2x384xf32> to vector<2x128xf32>
    %369 = vector.extract_strided_slice %359 {offsets = [0, 384], sizes = [2, 128], strides = [1, 1]} : vector<2x512xf32> to vector<2x128xf32>
    %370 = math.tanh %369 : vector<2x128xf32>
    %371 = arith.mulf %367, %284 : vector<2x128xf32>
    %372 = arith.mulf %366, %370 : vector<2x128xf32>
    %373 = arith.addf %371, %372 : vector<2x128xf32>
    %374 = math.tanh %373 : vector<2x128xf32>
    %375 = arith.mulf %368, %374 : vector<2x128xf32>
    %cst_103 = arith.constant 1.000000e-01 : f32
    %376 = vector.broadcast %cst_103 : f32 to vector<2x128xf32>
    %377 = arith.mulf %376, %279 : vector<2x128xf32>
    %cst_104 = arith.constant 0.899999976 : f32
    %378 = vector.broadcast %cst_104 : f32 to vector<2x128xf32>
    %379 = arith.mulf %378, %375 : vector<2x128xf32>
    %380 = arith.addf %377, %379 : vector<2x128xf32>
    %cst_105 = arith.constant 1.000000e-01 : f32
    %381 = vector.broadcast %cst_105 : f32 to vector<2x128xf32>
    %382 = arith.mulf %381, %284 : vector<2x128xf32>
    %cst_106 = arith.constant 0.899999976 : f32
    %383 = vector.broadcast %cst_106 : f32 to vector<2x128xf32>
    %384 = arith.mulf %383, %373 : vector<2x128xf32>
    %385 = arith.addf %382, %384 : vector<2x128xf32>
    %386 = tpu.concatenate %380, %311 in 1 : vector<2x128xf32>, vector<2x128xf32> -> vector<2x256xf32>
    %387 = arith.truncf %386 : vector<2x256xf32> to vector<2x256xbf16>
    %cst_107 = arith.constant dense<0.000000e+00> : vector<2x544xf32>
    %388 = tpu.matmul %387, %20, %cst_107 {dimension_numbers = #tpu.dot_dimension_numbers<[1], [0], [0], [1], [0, 0, 1, 1], [], []>} : vector<2x256xbf16>, vector<256x544xbf16>, vector<2x544xf32> -> vector<2x544xf32>
    %389 = vector.extract_strided_slice %388 {offsets = [0, 0], sizes = [2, 512], strides = [1, 1]} : vector<2x544xf32> to vector<2x512xf32>
    %390 = arith.addf %389, %23 : vector<2x512xf32>
    %391 = vector.extract_strided_slice %390 {offsets = [0, 0], sizes = [2, 384], strides = [1, 1]} : vector<2x512xf32> to vector<2x384xf32>
    %392 = arith.negf %391 : vector<2x384xf32>
    %393 = math.exp %392 : vector<2x384xf32>
    %cst_108 = arith.constant 1.000000e+00 : f32
    %394 = vector.broadcast %cst_108 : f32 to vector<2x384xf32>
    %395 = arith.addf %394, %393 : vector<2x384xf32>
    %396 = arith.divf %394, %395 : vector<2x384xf32>
    %397 = vector.extract_strided_slice %396 {offsets = [0, 0], sizes = [2, 128], strides = [1, 1]} : vector<2x384xf32> to vector<2x128xf32>
    %398 = vector.extract_strided_slice %396 {offsets = [0, 128], sizes = [2, 128], strides = [1, 1]} : vector<2x384xf32> to vector<2x128xf32>
    %399 = vector.extract_strided_slice %396 {offsets = [0, 256], sizes = [2, 128], strides = [1, 1]} : vector<2x384xf32> to vector<2x128xf32>
    %400 = vector.extract_strided_slice %390 {offsets = [0, 384], sizes = [2, 128], strides = [1, 1]} : vector<2x512xf32> to vector<2x128xf32>
    %401 = math.tanh %400 : vector<2x128xf32>
    %402 = arith.mulf %398, %316 : vector<2x128xf32>
    %403 = arith.mulf %397, %401 : vector<2x128xf32>
    %404 = arith.addf %402, %403 : vector<2x128xf32>
    %405 = math.tanh %404 : vector<2x128xf32>
    %406 = arith.mulf %399, %405 : vector<2x128xf32>
    %407 = vector.extract_strided_slice %388 {offsets = [0, 512], sizes = [2, 32], strides = [1, 1]} : vector<2x544xf32> to vector<2x32xf32>
    %cst_109 = arith.constant 1.000000e-01 : f32
    %408 = vector.broadcast %cst_109 : f32 to vector<2x128xf32>
    %409 = arith.mulf %408, %311 : vector<2x128xf32>
    %cst_110 = arith.constant 0.899999976 : f32
    %410 = vector.broadcast %cst_110 : f32 to vector<2x128xf32>
    %411 = arith.mulf %410, %406 : vector<2x128xf32>
    %412 = arith.addf %409, %411 : vector<2x128xf32>
    %cst_111 = arith.constant 1.000000e-01 : f32
    %413 = vector.broadcast %cst_111 : f32 to vector<2x128xf32>
    %414 = arith.mulf %413, %316 : vector<2x128xf32>
    %cst_112 = arith.constant 0.899999976 : f32
    %415 = vector.broadcast %cst_112 : f32 to vector<2x128xf32>
    %416 = arith.mulf %415, %404 : vector<2x128xf32>
    %417 = arith.addf %414, %416 : vector<2x128xf32>
    %418 = tpu.concatenate %412, %356 in 1 : vector<2x128xf32>, vector<2x128xf32> -> vector<2x256xf32>
    %c0_i32_113 = arith.constant 0 : i32
    %419 = arith.addi %c0_i32_113, %c3_i32 : i32
    %420 = vector.extract_strided_slice %418 {offsets = [0, 0], sizes = [1, 256], strides = [1, 1]} : vector<2x256xf32> to vector<1x256xf32>
    %421 = arith.index_cast %419 : i32 to index
    %c0_114 = arith.constant 0 : index
    %422 = vector.load %arg11[%421, %c0_114] : memref<12x256xf32, #tpu.memory_space<vmem>>, vector<1x256xf32>
    tpu.vector_store %arg11[%421, %c0_114], %420 {strides = array<i32>} : memref<12x256xf32, #tpu.memory_space<vmem>>, vector<1x256xf32>,
    %423 = vector.extract_strided_slice %352 {offsets = [0, 0], sizes = [1, 8], strides = [1, 1]} : vector<2x8xf32> to vector<1x8xf32>
    %424 = arith.index_cast %419 : i32 to index
    %c0_115 = arith.constant 0 : index
    %425 = vector.load %arg12[%424, %c0_115] : memref<12x8xf32, #tpu.memory_space<vmem>>, vector<1x8xf32>
    tpu.vector_store %arg12[%424, %c0_115], %423 {strides = array<i32>} : memref<12x8xf32, #tpu.memory_space<vmem>>, vector<1x8xf32>,
    %c6_i32_116 = arith.constant 6 : i32
    %426 = arith.addi %c6_i32_116, %c3_i32 : i32
    %427 = vector.extract_strided_slice %418 {offsets = [1, 0], sizes = [1, 256], strides = [1, 1]} : vector<2x256xf32> to vector<1x256xf32>
    %428 = arith.index_cast %426 : i32 to index
    %c0_117 = arith.constant 0 : index
    %429 = vector.load %arg11[%428, %c0_117] : memref<12x256xf32, #tpu.memory_space<vmem>>, vector<1x256xf32>
    tpu.vector_store %arg11[%428, %c0_117], %427 {strides = array<i32>} : memref<12x256xf32, #tpu.memory_space<vmem>>, vector<1x256xf32>,
    %430 = vector.extract_strided_slice %352 {offsets = [1, 0], sizes = [1, 8], strides = [1, 1]} : vector<2x8xf32> to vector<1x8xf32>
    %431 = arith.index_cast %426 : i32 to index
    %c0_118 = arith.constant 0 : index
    %432 = vector.load %arg12[%431, %c0_118] : memref<12x8xf32, #tpu.memory_space<vmem>>, vector<1x8xf32>
    tpu.vector_store %arg12[%431, %c0_118], %430 {strides = array<i32>} : memref<12x8xf32, #tpu.memory_space<vmem>>, vector<1x8xf32>,
    %c4_i32 = arith.constant 4 : i32
    %433 = vector.shape_cast %407 : vector<2x32xf32> to vector<2x1x32xf32>
    %434 = vector.broadcast %433 : vector<2x1x32xf32> to vector<2x8x32xf32>
    %435 = arith.addf %8, %434 : vector<2x8x32xf32>
    %436 = math.tanh %435 : vector<2x8x32xf32>
    %437 = vector.broadcast %18 : vector<1x1x32xf32> to vector<2x8x32xf32>
    %438 = arith.mulf %436, %437 : vector<2x8x32xf32>
    %cst_119 = arith.constant dense<0.000000e+00> : vector<2x8xf32>
    %439 = vector.multi_reduction <add>, %438, %cst_119 [2] : vector<2x8x32xf32> to vector<2x8xf32>
    %440 = arith.addf %439, %16 : vector<2x8xf32>
    %cst_120 = arith.constant dense<0xFF800000> : vector<2xf32>
    %441 = vector.multi_reduction <maximumf>, %440, %cst_120 [1] : vector<2x8xf32> to vector<2xf32>
    %442 = vector.shape_cast %441 : vector<2xf32> to vector<2x1xf32>
    %443 = vector.broadcast %442 : vector<2x1xf32> to vector<2x8xf32>
    %444 = arith.subf %440, %443 : vector<2x8xf32>
    %445 = math.exp %444 : vector<2x8xf32>
    %cst_121 = arith.constant dense<0.000000e+00> : vector<2xf32>
    %446 = vector.multi_reduction <add>, %445, %cst_121 [1] : vector<2x8xf32> to vector<2xf32>
    %447 = vector.shape_cast %446 : vector<2xf32> to vector<2x1xf32>
    %cst_122 = arith.constant 1.000000e-30 : f32
    %448 = vector.broadcast %cst_122 : f32 to vector<2x1xf32>
    %449 = arith.maximumf %447, %448 : vector<2x1xf32>
    %cst_123 = arith.constant 1.000000e+00 : f32
    %450 = vector.broadcast %cst_123 : f32 to vector<2x1xf32>
    %451 = arith.divf %450, %449 : vector<2x1xf32>
    %452 = vector.broadcast %451 : vector<2x1xf32> to vector<2x8xf32>
    %453 = arith.mulf %445, %452 : vector<2x8xf32>
    %454 = vector.shape_cast %453 : vector<2x8xf32> to vector<2x8x1xf32>
    %455 = vector.broadcast %454 : vector<2x8x1xf32> to vector<2x8x128xf32>
    %456 = arith.mulf %455, %0 : vector<2x8x128xf32>
    %cst_124 = arith.constant dense<0.000000e+00> : vector<2x128xf32>
    %457 = vector.multi_reduction <add>, %456, %cst_124 [1] : vector<2x8x128xf32> to vector<2x128xf32>
    %458 = tpu.concatenate %457, %380 in 1 : vector<2x128xf32>, vector<2x128xf32> -> vector<2x256xf32>
    %459 = arith.truncf %458 : vector<2x256xf32> to vector<2x256xbf16>
    %cst_125 = arith.constant dense<0.000000e+00> : vector<2x512xf32>
    %460 = tpu.matmul %459, %19, %cst_125 {dimension_numbers = #tpu.dot_dimension_numbers<[1], [0], [0], [1], [0, 0, 1, 1], [], []>} : vector<2x256xbf16>, vector<256x512xbf16>, vector<2x512xf32> -> vector<2x512xf32>
    %461 = vector.extract_strided_slice %460 {offsets = [0, 0], sizes = [2, 384], strides = [1, 1]} : vector<2x512xf32> to vector<2x384xf32>
    %462 = arith.negf %461 : vector<2x384xf32>
    %463 = math.exp %462 : vector<2x384xf32>
    %cst_126 = arith.constant 1.000000e+00 : f32
    %464 = vector.broadcast %cst_126 : f32 to vector<2x384xf32>
    %465 = arith.addf %464, %463 : vector<2x384xf32>
    %466 = arith.divf %464, %465 : vector<2x384xf32>
    %467 = vector.extract_strided_slice %466 {offsets = [0, 0], sizes = [2, 128], strides = [1, 1]} : vector<2x384xf32> to vector<2x128xf32>
    %468 = vector.extract_strided_slice %466 {offsets = [0, 128], sizes = [2, 128], strides = [1, 1]} : vector<2x384xf32> to vector<2x128xf32>
    %469 = vector.extract_strided_slice %466 {offsets = [0, 256], sizes = [2, 128], strides = [1, 1]} : vector<2x384xf32> to vector<2x128xf32>
    %470 = vector.extract_strided_slice %460 {offsets = [0, 384], sizes = [2, 128], strides = [1, 1]} : vector<2x512xf32> to vector<2x128xf32>
    %471 = math.tanh %470 : vector<2x128xf32>
    %472 = arith.mulf %468, %385 : vector<2x128xf32>
    %473 = arith.mulf %467, %471 : vector<2x128xf32>
    %474 = arith.addf %472, %473 : vector<2x128xf32>
    %475 = math.tanh %474 : vector<2x128xf32>
    %476 = arith.mulf %469, %475 : vector<2x128xf32>
    %cst_127 = arith.constant 1.000000e-01 : f32
    %477 = vector.broadcast %cst_127 : f32 to vector<2x128xf32>
    %478 = arith.mulf %477, %380 : vector<2x128xf32>
    %cst_128 = arith.constant 0.899999976 : f32
    %479 = vector.broadcast %cst_128 : f32 to vector<2x128xf32>
    %480 = arith.mulf %479, %476 : vector<2x128xf32>
    %481 = arith.addf %478, %480 : vector<2x128xf32>
    %cst_129 = arith.constant 1.000000e-01 : f32
    %482 = vector.broadcast %cst_129 : f32 to vector<2x128xf32>
    %483 = arith.mulf %482, %385 : vector<2x128xf32>
    %cst_130 = arith.constant 0.899999976 : f32
    %484 = vector.broadcast %cst_130 : f32 to vector<2x128xf32>
    %485 = arith.mulf %484, %474 : vector<2x128xf32>
    %486 = arith.addf %483, %485 : vector<2x128xf32>
    %487 = tpu.concatenate %481, %412 in 1 : vector<2x128xf32>, vector<2x128xf32> -> vector<2x256xf32>
    %488 = arith.truncf %487 : vector<2x256xf32> to vector<2x256xbf16>
    %cst_131 = arith.constant dense<0.000000e+00> : vector<2x544xf32>
    %489 = tpu.matmul %488, %20, %cst_131 {dimension_numbers = #tpu.dot_dimension_numbers<[1], [0], [0], [1], [0, 0, 1, 1], [], []>} : vector<2x256xbf16>, vector<256x544xbf16>, vector<2x544xf32> -> vector<2x544xf32>
    %490 = vector.extract_strided_slice %489 {offsets = [0, 0], sizes = [2, 512], strides = [1, 1]} : vector<2x544xf32> to vector<2x512xf32>
    %491 = arith.addf %490, %23 : vector<2x512xf32>
    %492 = vector.extract_strided_slice %491 {offsets = [0, 0], sizes = [2, 384], strides = [1, 1]} : vector<2x512xf32> to vector<2x384xf32>
    %493 = arith.negf %492 : vector<2x384xf32>
    %494 = math.exp %493 : vector<2x384xf32>
    %cst_132 = arith.constant 1.000000e+00 : f32
    %495 = vector.broadcast %cst_132 : f32 to vector<2x384xf32>
    %496 = arith.addf %495, %494 : vector<2x384xf32>
    %497 = arith.divf %495, %496 : vector<2x384xf32>
    %498 = vector.extract_strided_slice %497 {offsets = [0, 0], sizes = [2, 128], strides = [1, 1]} : vector<2x384xf32> to vector<2x128xf32>
    %499 = vector.extract_strided_slice %497 {offsets = [0, 128], sizes = [2, 128], strides = [1, 1]} : vector<2x384xf32> to vector<2x128xf32>
    %500 = vector.extract_strided_slice %497 {offsets = [0, 256], sizes = [2, 128], strides = [1, 1]} : vector<2x384xf32> to vector<2x128xf32>
    %501 = vector.extract_strided_slice %491 {offsets = [0, 384], sizes = [2, 128], strides = [1, 1]} : vector<2x512xf32> to vector<2x128xf32>
    %502 = math.tanh %501 : vector<2x128xf32>
    %503 = arith.mulf %499, %417 : vector<2x128xf32>
    %504 = arith.mulf %498, %502 : vector<2x128xf32>
    %505 = arith.addf %503, %504 : vector<2x128xf32>
    %506 = math.tanh %505 : vector<2x128xf32>
    %507 = arith.mulf %500, %506 : vector<2x128xf32>
    %508 = vector.extract_strided_slice %489 {offsets = [0, 512], sizes = [2, 32], strides = [1, 1]} : vector<2x544xf32> to vector<2x32xf32>
    %cst_133 = arith.constant 1.000000e-01 : f32
    %509 = vector.broadcast %cst_133 : f32 to vector<2x128xf32>
    %510 = arith.mulf %509, %412 : vector<2x128xf32>
    %cst_134 = arith.constant 0.899999976 : f32
    %511 = vector.broadcast %cst_134 : f32 to vector<2x128xf32>
    %512 = arith.mulf %511, %507 : vector<2x128xf32>
    %513 = arith.addf %510, %512 : vector<2x128xf32>
    %cst_135 = arith.constant 1.000000e-01 : f32
    %514 = vector.broadcast %cst_135 : f32 to vector<2x128xf32>
    %515 = arith.mulf %514, %417 : vector<2x128xf32>
    %cst_136 = arith.constant 0.899999976 : f32
    %516 = vector.broadcast %cst_136 : f32 to vector<2x128xf32>
    %517 = arith.mulf %516, %505 : vector<2x128xf32>
    %518 = arith.addf %515, %517 : vector<2x128xf32>
    %519 = tpu.concatenate %513, %457 in 1 : vector<2x128xf32>, vector<2x128xf32> -> vector<2x256xf32>
    %c0_i32_137 = arith.constant 0 : i32
    %520 = arith.addi %c0_i32_137, %c4_i32 : i32
    %521 = vector.extract_strided_slice %519 {offsets = [0, 0], sizes = [1, 256], strides = [1, 1]} : vector<2x256xf32> to vector<1x256xf32>
    %522 = arith.index_cast %520 : i32 to index
    %c0_138 = arith.constant 0 : index
    %523 = vector.load %arg11[%522, %c0_138] : memref<12x256xf32, #tpu.memory_space<vmem>>, vector<1x256xf32>
    tpu.vector_store %arg11[%522, %c0_138], %521 {strides = array<i32>} : memref<12x256xf32, #tpu.memory_space<vmem>>, vector<1x256xf32>,
    %524 = vector.extract_strided_slice %453 {offsets = [0, 0], sizes = [1, 8], strides = [1, 1]} : vector<2x8xf32> to vector<1x8xf32>
    %525 = arith.index_cast %520 : i32 to index
    %c0_139 = arith.constant 0 : index
    %526 = vector.load %arg12[%525, %c0_139] : memref<12x8xf32, #tpu.memory_space<vmem>>, vector<1x8xf32>
    tpu.vector_store %arg12[%525, %c0_139], %524 {strides = array<i32>} : memref<12x8xf32, #tpu.memory_space<vmem>>, vector<1x8xf32>,
    %c6_i32_140 = arith.constant 6 : i32
    %527 = arith.addi %c6_i32_140, %c4_i32 : i32
    %528 = vector.extract_strided_slice %519 {offsets = [1, 0], sizes = [1, 256], strides = [1, 1]} : vector<2x256xf32> to vector<1x256xf32>
    %529 = arith.index_cast %527 : i32 to index
    %c0_141 = arith.constant 0 : index
    %530 = vector.load %arg11[%529, %c0_141] : memref<12x256xf32, #tpu.memory_space<vmem>>, vector<1x256xf32>
    tpu.vector_store %arg11[%529, %c0_141], %528 {strides = array<i32>} : memref<12x256xf32, #tpu.memory_space<vmem>>, vector<1x256xf32>,
    %531 = vector.extract_strided_slice %453 {offsets = [1, 0], sizes = [1, 8], strides = [1, 1]} : vector<2x8xf32> to vector<1x8xf32>
    %532 = arith.index_cast %527 : i32 to index
    %c0_142 = arith.constant 0 : index
    %533 = vector.load %arg12[%532, %c0_142] : memref<12x8xf32, #tpu.memory_space<vmem>>, vector<1x8xf32>
    tpu.vector_store %arg12[%532, %c0_142], %531 {strides = array<i32>} : memref<12x8xf32, #tpu.memory_space<vmem>>, vector<1x8xf32>,
    %c5_i32 = arith.constant 5 : i32
    %534 = vector.shape_cast %508 : vector<2x32xf32> to vector<2x1x32xf32>
    %535 = vector.broadcast %534 : vector<2x1x32xf32> to vector<2x8x32xf32>
    %536 = arith.addf %8, %535 : vector<2x8x32xf32>
    %537 = math.tanh %536 : vector<2x8x32xf32>
    %538 = vector.broadcast %18 : vector<1x1x32xf32> to vector<2x8x32xf32>
    %539 = arith.mulf %537, %538 : vector<2x8x32xf32>
    %cst_143 = arith.constant dense<0.000000e+00> : vector<2x8xf32>
    %540 = vector.multi_reduction <add>, %539, %cst_143 [2] : vector<2x8x32xf32> to vector<2x8xf32>
    %541 = arith.addf %540, %16 : vector<2x8xf32>
    %cst_144 = arith.constant dense<0xFF800000> : vector<2xf32>
    %542 = vector.multi_reduction <maximumf>, %541, %cst_144 [1] : vector<2x8xf32> to vector<2xf32>
    %543 = vector.shape_cast %542 : vector<2xf32> to vector<2x1xf32>
    %544 = vector.broadcast %543 : vector<2x1xf32> to vector<2x8xf32>
    %545 = arith.subf %541, %544 : vector<2x8xf32>
    %546 = math.exp %545 : vector<2x8xf32>
    %cst_145 = arith.constant dense<0.000000e+00> : vector<2xf32>
    %547 = vector.multi_reduction <add>, %546, %cst_145 [1] : vector<2x8xf32> to vector<2xf32>
    %548 = vector.shape_cast %547 : vector<2xf32> to vector<2x1xf32>
    %cst_146 = arith.constant 1.000000e-30 : f32
    %549 = vector.broadcast %cst_146 : f32 to vector<2x1xf32>
    %550 = arith.maximumf %548, %549 : vector<2x1xf32>
    %cst_147 = arith.constant 1.000000e+00 : f32
    %551 = vector.broadcast %cst_147 : f32 to vector<2x1xf32>
    %552 = arith.divf %551, %550 : vector<2x1xf32>
    %553 = vector.broadcast %552 : vector<2x1xf32> to vector<2x8xf32>
    %554 = arith.mulf %546, %553 : vector<2x8xf32>
    %555 = vector.shape_cast %554 : vector<2x8xf32> to vector<2x8x1xf32>
    %556 = vector.broadcast %555 : vector<2x8x1xf32> to vector<2x8x128xf32>
    %557 = arith.mulf %556, %0 : vector<2x8x128xf32>
    %cst_148 = arith.constant dense<0.000000e+00> : vector<2x128xf32>
    %558 = vector.multi_reduction <add>, %557, %cst_148 [1] : vector<2x8x128xf32> to vector<2x128xf32>
    %559 = tpu.concatenate %558, %481 in 1 : vector<2x128xf32>, vector<2x128xf32> -> vector<2x256xf32>
    %560 = arith.truncf %559 : vector<2x256xf32> to vector<2x256xbf16>
    %cst_149 = arith.constant dense<0.000000e+00> : vector<2x512xf32>
    %561 = tpu.matmul %560, %19, %cst_149 {dimension_numbers = #tpu.dot_dimension_numbers<[1], [0], [0], [1], [0, 0, 1, 1], [], []>} : vector<2x256xbf16>, vector<256x512xbf16>, vector<2x512xf32> -> vector<2x512xf32>
    %562 = vector.extract_strided_slice %561 {offsets = [0, 0], sizes = [2, 384], strides = [1, 1]} : vector<2x512xf32> to vector<2x384xf32>
    %563 = arith.negf %562 : vector<2x384xf32>
    %564 = math.exp %563 : vector<2x384xf32>
    %cst_150 = arith.constant 1.000000e+00 : f32
    %565 = vector.broadcast %cst_150 : f32 to vector<2x384xf32>
    %566 = arith.addf %565, %564 : vector<2x384xf32>
    %567 = arith.divf %565, %566 : vector<2x384xf32>
    %568 = vector.extract_strided_slice %567 {offsets = [0, 0], sizes = [2, 128], strides = [1, 1]} : vector<2x384xf32> to vector<2x128xf32>
    %569 = vector.extract_strided_slice %567 {offsets = [0, 128], sizes = [2, 128], strides = [1, 1]} : vector<2x384xf32> to vector<2x128xf32>
    %570 = vector.extract_strided_slice %567 {offsets = [0, 256], sizes = [2, 128], strides = [1, 1]} : vector<2x384xf32> to vector<2x128xf32>
    %571 = vector.extract_strided_slice %561 {offsets = [0, 384], sizes = [2, 128], strides = [1, 1]} : vector<2x512xf32> to vector<2x128xf32>
    %572 = math.tanh %571 : vector<2x128xf32>
    %573 = arith.mulf %569, %486 : vector<2x128xf32>
    %574 = arith.mulf %568, %572 : vector<2x128xf32>
    %575 = arith.addf %573, %574 : vector<2x128xf32>
    %576 = math.tanh %575 : vector<2x128xf32>
    %577 = arith.mulf %570, %576 : vector<2x128xf32>
    %cst_151 = arith.constant 1.000000e-01 : f32
    %578 = vector.broadcast %cst_151 : f32 to vector<2x128xf32>
    %579 = arith.mulf %578, %481 : vector<2x128xf32>
    %cst_152 = arith.constant 0.899999976 : f32
    %580 = vector.broadcast %cst_152 : f32 to vector<2x128xf32>
    %581 = arith.mulf %580, %577 : vector<2x128xf32>
    %582 = arith.addf %579, %581 : vector<2x128xf32>
    %cst_153 = arith.constant 1.000000e-01 : f32
    %583 = vector.broadcast %cst_153 : f32 to vector<2x128xf32>
    %584 = arith.mulf %583, %486 : vector<2x128xf32>
    %cst_154 = arith.constant 0.899999976 : f32
    %585 = vector.broadcast %cst_154 : f32 to vector<2x128xf32>
    %586 = arith.mulf %585, %575 : vector<2x128xf32>
    %587 = arith.addf %584, %586 : vector<2x128xf32>
    %588 = tpu.concatenate %582, %513 in 1 : vector<2x128xf32>, vector<2x128xf32> -> vector<2x256xf32>
    %589 = arith.truncf %588 : vector<2x256xf32> to vector<2x256xbf16>
    %cst_155 = arith.constant dense<0.000000e+00> : vector<2x544xf32>
    %590 = tpu.matmul %589, %20, %cst_155 {dimension_numbers = #tpu.dot_dimension_numbers<[1], [0], [0], [1], [0, 0, 1, 1], [], []>} : vector<2x256xbf16>, vector<256x544xbf16>, vector<2x544xf32> -> vector<2x544xf32>
    %591 = vector.extract_strided_slice %590 {offsets = [0, 0], sizes = [2, 512], strides = [1, 1]} : vector<2x544xf32> to vector<2x512xf32>
    %592 = arith.addf %591, %23 : vector<2x512xf32>
    %593 = vector.extract_strided_slice %592 {offsets = [0, 0], sizes = [2, 384], strides = [1, 1]} : vector<2x512xf32> to vector<2x384xf32>
    %594 = arith.negf %593 : vector<2x384xf32>
    %595 = math.exp %594 : vector<2x384xf32>
    %cst_156 = arith.constant 1.000000e+00 : f32
    %596 = vector.broadcast %cst_156 : f32 to vector<2x384xf32>
    %597 = arith.addf %596, %595 : vector<2x384xf32>
    %598 = arith.divf %596, %597 : vector<2x384xf32>
    %599 = vector.extract_strided_slice %598 {offsets = [0, 0], sizes = [2, 128], strides = [1, 1]} : vector<2x384xf32> to vector<2x128xf32>
    %600 = vector.extract_strided_slice %598 {offsets = [0, 128], sizes = [2, 128], strides = [1, 1]} : vector<2x384xf32> to vector<2x128xf32>
    %601 = vector.extract_strided_slice %598 {offsets = [0, 256], sizes = [2, 128], strides = [1, 1]} : vector<2x384xf32> to vector<2x128xf32>
    %602 = vector.extract_strided_slice %592 {offsets = [0, 384], sizes = [2, 128], strides = [1, 1]} : vector<2x512xf32> to vector<2x128xf32>
    %603 = math.tanh %602 : vector<2x128xf32>
    %604 = arith.mulf %600, %518 : vector<2x128xf32>
    %605 = arith.mulf %599, %603 : vector<2x128xf32>
    %606 = arith.addf %604, %605 : vector<2x128xf32>
    %607 = math.tanh %606 : vector<2x128xf32>
    %608 = arith.mulf %601, %607 : vector<2x128xf32>
    %609 = vector.extract_strided_slice %590 {offsets = [0, 512], sizes = [2, 32], strides = [1, 1]} : vector<2x544xf32> to vector<2x32xf32>
    %cst_157 = arith.constant 1.000000e-01 : f32
    %610 = vector.broadcast %cst_157 : f32 to vector<2x128xf32>
    %611 = arith.mulf %610, %513 : vector<2x128xf32>
    %cst_158 = arith.constant 0.899999976 : f32
    %612 = vector.broadcast %cst_158 : f32 to vector<2x128xf32>
    %613 = arith.mulf %612, %608 : vector<2x128xf32>
    %614 = arith.addf %611, %613 : vector<2x128xf32>
    %cst_159 = arith.constant 1.000000e-01 : f32
    %615 = vector.broadcast %cst_159 : f32 to vector<2x128xf32>
    %616 = arith.mulf %615, %518 : vector<2x128xf32>
    %cst_160 = arith.constant 0.899999976 : f32
    %617 = vector.broadcast %cst_160 : f32 to vector<2x128xf32>
    %618 = arith.mulf %617, %606 : vector<2x128xf32>
    %619 = arith.addf %616, %618 : vector<2x128xf32>
    %620 = tpu.concatenate %614, %558 in 1 : vector<2x128xf32>, vector<2x128xf32> -> vector<2x256xf32>
    %c0_i32_161 = arith.constant 0 : i32
    %621 = arith.addi %c0_i32_161, %c5_i32 : i32
    %622 = vector.extract_strided_slice %620 {offsets = [0, 0], sizes = [1, 256], strides = [1, 1]} : vector<2x256xf32> to vector<1x256xf32>
    %623 = arith.index_cast %621 : i32 to index
    %c0_162 = arith.constant 0 : index
    %624 = vector.load %arg11[%623, %c0_162] : memref<12x256xf32, #tpu.memory_space<vmem>>, vector<1x256xf32>
    tpu.vector_store %arg11[%623, %c0_162], %622 {strides = array<i32>} : memref<12x256xf32, #tpu.memory_space<vmem>>, vector<1x256xf32>,
    %625 = vector.extract_strided_slice %554 {offsets = [0, 0], sizes = [1, 8], strides = [1, 1]} : vector<2x8xf32> to vector<1x8xf32>
    %626 = arith.index_cast %621 : i32 to index
    %c0_163 = arith.constant 0 : index
    %627 = vector.load %arg12[%626, %c0_163] : memref<12x8xf32, #tpu.memory_space<vmem>>, vector<1x8xf32>
    tpu.vector_store %arg12[%626, %c0_163], %625 {strides = array<i32>} : memref<12x8xf32, #tpu.memory_space<vmem>>, vector<1x8xf32>,
    %c6_i32_164 = arith.constant 6 : i32
    %628 = arith.addi %c6_i32_164, %c5_i32 : i32
    %629 = vector.extract_strided_slice %620 {offsets = [1, 0], sizes = [1, 256], strides = [1, 1]} : vector<2x256xf32> to vector<1x256xf32>
    %630 = arith.index_cast %628 : i32 to index
    %c0_165 = arith.constant 0 : index
    %631 = vector.load %arg11[%630, %c0_165] : memref<12x256xf32, #tpu.memory_space<vmem>>, vector<1x256xf32>
    tpu.vector_store %arg11[%630, %c0_165], %629 {strides = array<i32>} : memref<12x256xf32, #tpu.memory_space<vmem>>, vector<1x256xf32>,
    %632 = vector.extract_strided_slice %554 {offsets = [1, 0], sizes = [1, 8], strides = [1, 1]} : vector<2x8xf32> to vector<1x8xf32>
    %633 = arith.index_cast %628 : i32 to index
    %c0_166 = arith.constant 0 : index
    %634 = vector.load %arg12[%633, %c0_166] : memref<12x8xf32, #tpu.memory_space<vmem>>, vector<1x8xf32>
    tpu.vector_store %arg12[%633, %c0_166], %632 {strides = array<i32>} : memref<12x8xf32, #tpu.memory_space<vmem>>, vector<1x8xf32>,
    %c6_i32_167 = arith.constant 6 : i32
    %c0_168 = arith.constant 0 : index
    %c0_169 = arith.constant 0 : index
    %635 = vector.load %arg11[%c0_168, %c0_169] : memref<12x256xf32, #tpu.memory_space<vmem>>, vector<12x256xf32>
    %c0_170 = arith.constant 0 : index
    %c0_171 = arith.constant 0 : index
    %636 = vector.load %arg9[%c0_170, %c0_171] : memref<256x17xf32, #tpu.memory_space<vmem>>, vector<256x17xf32>
    %cst_172 = arith.constant dense<0.000000e+00> : vector<12x17xf32>
    %637 = tpu.matmul %635, %636, %cst_172 {dimension_numbers = #tpu.dot_dimension_numbers<[1], [0], [0], [1], [0, 0, 1, 1], [], []>} : vector<12x256xf32>, vector<256x17xf32>, vector<12x17xf32> -> vector<12x17xf32>
    %638 = vector.extract_strided_slice %637 {offsets = [0, 16], sizes = [12, 1], strides = [1, 1]} : vector<12x17xf32> to vector<12x1xf32>
    %639 = arith.negf %638 : vector<12x1xf32>
    %640 = math.exp %639 : vector<12x1xf32>
    %cst_173 = arith.constant 1.000000e+00 : f32
    %641 = vector.broadcast %cst_173 : f32 to vector<12x1xf32>
    %642 = arith.addf %641, %640 : vector<12x1xf32>
    %643 = arith.divf %641, %642 : vector<12x1xf32>
    %c0_174 = arith.constant 0 : index
    %c0_175 = arith.constant 0 : index
    %644 = vector.load %arg12[%c0_174, %c0_175] : memref<12x8xf32, #tpu.memory_space<vmem>>, vector<12x8xf32>
    %cst_176 = arith.constant 0.000000e+00 : f32
    %645 = vector.broadcast %cst_176 : f32 to vector<12x103xf32>
    %646 = vector.extract_strided_slice %637 {offsets = [0, 0], sizes = [12, 16], strides = [1, 1]} : vector<12x17xf32> to vector<12x16xf32>
    %647 = tpu.concatenate %646, %643, %644, %645 in 1 : vector<12x16xf32>, vector<12x1xf32>, vector<12x8xf32>, vector<12x103xf32> -> vector<12x128xf32>
    %648 = vector.shape_cast %647 : vector<12x128xf32> to vector<2x6x128xf32>
    %c0_177 = arith.constant 0 : index
    %c0_178 = arith.constant 0 : index
    %c0_179 = arith.constant 0 : index
    %649 = vector.load %arg10[%c0_177, %c0_178, %c0_179] : memref<2x6x128xf32, #tpu.memory_space<vmem>>, vector<2x6x128xf32>
    tpu.vector_store %arg10[%c0_177, %c0_178, %c0_179], %648 {strides = array<i32>} : memref<2x6x128xf32, #tpu.memory_space<vmem>>, vector<2x6x128xf32>,
    return
  }
  func.func @transform_0(%arg0: i32) -> (i32, i32, i32) {
    %c0_i32 = arith.constant 0 : i32
    %c0_i32_0 = arith.constant 0 : i32
    %c0_i32_1 = arith.constant 0 : i32
    return %arg0, %c0_i32, %c0_i32_0 : i32, i32, i32
  }
  func.func @transform_1(%arg0: i32) -> (i32, i32, i32) {
    %c0_i32 = arith.constant 0 : i32
    %c0_i32_0 = arith.constant 0 : i32
    %c0_i32_1 = arith.constant 0 : i32
    return %arg0, %c0_i32, %c0_i32_0 : i32, i32, i32
  }
  func.func @transform_2(%arg0: i32) -> (i32, i32) {
    %c0_i32 = arith.constant 0 : i32
    %c0_i32_0 = arith.constant 0 : i32
    %c0_i32_1 = arith.constant 0 : i32
    return %c0_i32, %c0_i32_0 : i32, i32
  }
  func.func @transform_3(%arg0: i32) -> (i32, i32) {
    %c0_i32 = arith.constant 0 : i32
    %c0_i32_0 = arith.constant 0 : i32
    %c0_i32_1 = arith.constant 0 : i32
    return %c0_i32, %c0_i32_0 : i32, i32
  }
  func.func @transform_4(%arg0: i32) -> (i32, i32) {
    %c0_i32 = arith.constant 0 : i32
    %c0_i32_0 = arith.constant 0 : i32
    %c0_i32_1 = arith.constant 0 : i32
    return %c0_i32, %c0_i32_0 : i32, i32
  }
  func.func @transform_5(%arg0: i32) -> (i32, i32) {
    %c0_i32 = arith.constant 0 : i32
    %c0_i32_0 = arith.constant 0 : i32
    %c0_i32_1 = arith.constant 0 : i32
    return %c0_i32, %c0_i32_0 : i32, i32
  }
  func.func @transform_6(%arg0: i32) -> (i32, i32) {
    %c0_i32 = arith.constant 0 : i32
    %c0_i32_0 = arith.constant 0 : i32
    %c0_i32_1 = arith.constant 0 : i32
    return %c0_i32, %c0_i32_0 : i32, i32
  }
  func.func @transform_7(%arg0: i32) -> (i32, i32) {
    %c0_i32 = arith.constant 0 : i32
    %c0_i32_0 = arith.constant 0 : i32
    %c0_i32_1 = arith.constant 0 : i32
    return %c0_i32, %c0_i32_0 : i32, i32
  }
  func.func @transform_8(%arg0: i32) -> (i32, i32) {
    %c0_i32 = arith.constant 0 : i32
    %c0_i32_0 = arith.constant 0 : i32
    %c0_i32_1 = arith.constant 0 : i32
    return %c0_i32, %c0_i32_0 : i32, i32
  }
  func.func @transform_9(%arg0: i32) -> (i32, i32, i32) {
    %c0_i32 = arith.constant 0 : i32
    %c0_i32_0 = arith.constant 0 : i32
    %c0_i32_1 = arith.constant 0 : i32
    return %arg0, %c0_i32, %c0_i32_0 : i32, i32, i32
  }
}

</mosaic_0001>

<llo_original>
// kernel: tpu_custom_call.1
$region0: #{tpu_custom_call.1}
  #allocation0 [shape = 'u32[]', space=smem, size = 0x4, offset = 0x4, fixed_abs, tag = 'smem constant byte address 0x4 - core index']
  #allocation1 [shape = 'u32[72,128]{1,0:T(1,128)}', space=vmem, size = 0x9000, scoped, tag = 'internal scratch']
  #allocation2 [shape = 'f32[12,256]{1,0:T(8,128)}', space=vmem, size = 0x4000, scoped, tag = 'scratch operand']
  #allocation3 [shape = 'f32[12,8]{1,0:T(8,128)}', space=vmem, size = 0x2000, scoped, tag = 'scratch operand']
  %s0 = inlined_call_operand.vmem [shape: f32[2,8,128], index: 0, kind: input, shape index: {}]
  %s1 = inlined_call_operand.vmem [shape: s32[2,1,1], index: 1, kind: input, shape index: {}]
  %s2 = inlined_call_operand.vmem [shape: f32[128,32], index: 2, kind: input, shape index: {}]
  %s3 = inlined_call_operand.vmem [shape: f32[1,32], index: 3, kind: input, shape index: {}]
  %s4 = inlined_call_operand.vmem [shape: f32[1,32], index: 4, kind: input, shape index: {}]
  %s5 = inlined_call_operand.vmem [shape: bf16[256,512], index: 5, kind: input, shape index: {}]
  %s6 = inlined_call_operand.vmem [shape: bf16[256,544], index: 6, kind: input, shape index: {}]
  %s7 = inlined_call_operand.vmem [shape: f32[1,512], index: 7, kind: input, shape index: {}]
  %s8 = inlined_call_operand.vmem [shape: f32[256,17], index: 8, kind: input, shape index: {}]
  %s9 = inlined_call_operand.vmem [shape: f32[2,6,128], index: 9, kind: output, shape index: {}]
  %s10 = sld [smem:[#allocation0]]
  $region46: #{tpu_custom_call.1} parent=0
    _
  %s12 = ssub.s32 1, %s10
  %s13 = scalar_select 0, %s12, %s10
  // Predicated region
  $region2: #{tpu_custom_call.1} parent=0 // pred_check
    _
  $region3: #{tpu_custom_call.1} parent=0 // pred_check_branch
    %15 = sbr.rel (0) target = $region5
  $region4: #{tpu_custom_call.1} parent=0 // pred_region
    _
  $region5: #{tpu_custom_call.1} parent=0 // pred_fallthru
    _
  // Predicated region
  $region6: #{tpu_custom_call.1} parent=0 // pred_check
    _
  $region7: #{tpu_custom_call.1} parent=0 // pred_check_branch
    %17 = sbr.rel (0) target = $region9
  $region8: #{tpu_custom_call.1} parent=0 // pred_region
    _
  $region9: #{tpu_custom_call.1} parent=0 // pred_fallthru
    _
  // Predicated region
  $region10: #{tpu_custom_call.1} parent=0 // pred_check
    _
  $region11: #{tpu_custom_call.1} parent=0 // pred_check_branch
    %19 = sbr.rel (0) target = $region13
  $region12: #{tpu_custom_call.1} parent=0 // pred_region
    _
  $region13: #{tpu_custom_call.1} parent=0 // pred_fallthru
    _
  // Predicated region
  $region14: #{tpu_custom_call.1} parent=0 // pred_check
    _
  $region15: #{tpu_custom_call.1} parent=0 // pred_check_branch
    %21 = sbr.rel (0) target = $region17
  $region16: #{tpu_custom_call.1} parent=0 // pred_region
    _
  $region17: #{tpu_custom_call.1} parent=0 // pred_fallthru
    _
  // Predicated region
  $region18: #{tpu_custom_call.1} parent=0 // pred_check
    _
  $region19: #{tpu_custom_call.1} parent=0 // pred_check_branch
    %23 = sbr.rel (0) target = $region21
  $region20: #{tpu_custom_call.1} parent=0 // pred_region
    _
  $region21: #{tpu_custom_call.1} parent=0 // pred_fallthru
    _
  // Predicated region
  $region22: #{tpu_custom_call.1} parent=0 // pred_check
    _
  $region23: #{tpu_custom_call.1} parent=0 // pred_check_branch
    %25 = sbr.rel (0) target = $region25
  $region24: #{tpu_custom_call.1} parent=0 // pred_region
    _
  $region25: #{tpu_custom_call.1} parent=0 // pred_fallthru
    _
  // Predicated region
  $region26: #{tpu_custom_call.1} parent=0 // pred_check
    _
  $region27: #{tpu_custom_call.1} parent=0 // pred_check_branch
    %27 = sbr.rel (0) target = $region29
  $region28: #{tpu_custom_call.1} parent=0 // pred_region
    _
  $region29: #{tpu_custom_call.1} parent=0 // pred_fallthru
    _
  // Predicated region
  $region30: #{tpu_custom_call.1} parent=0 // pred_check
    _
  $region31: #{tpu_custom_call.1} parent=0 // pred_check_branch
    %29 = sbr.rel (0) target = $region33
  $region32: #{tpu_custom_call.1} parent=0 // pred_region
    _
  $region33: #{tpu_custom_call.1} parent=0 // pred_fallthru
    _
  // Predicated region
  $region34: #{tpu_custom_call.1} parent=0 // pred_check
    _
  $region35: #{tpu_custom_call.1} parent=0 // pred_check_branch
    %31 = sbr.rel (0) target = $region37
  $region36: #{tpu_custom_call.1} parent=0 // pred_region
    _
  $region37: #{tpu_custom_call.1} parent=0 // pred_fallthru
    _
  %v32 = vld [vmem:[%s0] sm:$0xff]
  %v33 = vld [vmem:[%s0 + $0x8] sm:$0xff]
  %v34 = vld [vmem:[%s2] sm:$0xff]
  %v35 = vld [vmem:[%s2 + $0x8] sm:$0xff]
  %v36 = vld [vmem:[%s2 + $0x10] sm:$0xff]
  %v37 = vld [vmem:[%s2 + $0x18] sm:$0xff]
  %v38 = vld [vmem:[%s2 + $0x20] sm:$0xff]
  %v39 = vld [vmem:[%s2 + $0x28] sm:$0xff]
  %v40 = vld [vmem:[%s2 + $0x30] sm:$0xff]
  %v41 = vld [vmem:[%s2 + $0x38] sm:$0xff]
  %v42 = vld [vmem:[%s2 + $0x40] sm:$0xff]
  %v43 = vld [vmem:[%s2 + $0x48] sm:$0xff]
  %v44 = vld [vmem:[%s2 + $0x50] sm:$0xff]
  %v45 = vld [vmem:[%s2 + $0x58] sm:$0xff]
  %v46 = vld [vmem:[%s2 + $0x60] sm:$0xff]
  %v47 = vld [vmem:[%s2 + $0x68] sm:$0xff]
  %v48 = vld [vmem:[%s2 + $0x70] sm:$0xff]
  %v49 = vld [vmem:[%s2 + $0x78] sm:$0xff]
  %50 = vmatpush.msra.mxu0 %v49
  %51 = vmatpush.msra.mxu0 %v48
  %52 = vmatpush.msra.mxu0 %v47
  %53 = vmatpush.msra.mxu0 %v46
  %54 = vmatpush.msra.mxu0 %v45
  %55 = vmatpush.msra.mxu0 %v44
  %56 = vmatpush.msra.mxu0 %v43
  %57 = vmatpush.msra.mxu0 %v42
  %58 = vmatpush.msra.mxu0 %v41
  %59 = vmatpush.msra.mxu0 %v40
  %60 = vmatpush.msra.mxu0 %v39
  %61 = vmatpush.msra.mxu0 %v38
  %62 = vmatpush.msra.mxu0 %v37
  %63 = vmatpush.msra.mxu0 %v36
  %64 = vmatpush.msra.mxu0 %v35
  %65 = vmatpush.msra.mxu0 %v34
  %66 = vmatmul.f32.gmra.mxu0 %v32
  %v67 = vpop.f32.mrf.mxu0
  %v68 = vadd.f32 0.0, %v67
  %69 = vmatmul.f32.gmra.mxu0 %v33
  %v70 = vpop.f32.mrf.mxu0
  %v71 = vadd.f32 0.0, %v70
  %72 = vdwg.mxu0
  %v73 = vld [vmem:[%s3] sm:$0x1]
  %v75 = vperm.slane %v73, 0
  %v77 = vadd.f32 %v68, %v75
  %v78 = vadd.f32 %v71, %v75
  %v79 = vlaneseq
  %v80 = vand.u32 %v79, 127
  %v81 = vld [vmem:[%s1] sm:$0x1]
  %v82 = vld [vmem:[%s1 + $0x1] sm:$0x1]
  %83 = vset.pattern.permute.xlu0 0
  %84 = vperm.xlu0 %83, %v81
  %v85 = vpop.permute.xlu0 %84
  %v86 = vperm.slane %v85, 0
  %87 = vset.pattern.permute.xlu0 0
  %88 = vperm.xlu0 %87, %v82
  %v89 = vpop.permute.xlu0 %88
  %v90 = vperm.slane %v89, 0
  %91 = vst [vmem:[#allocation1] ss:$9 sm:$0xff] %v86
  %s92 = scalar_lea.vmem [#allocation1], 1
  %93 = vst [vmem:[%s92] ss:$9 sm:$0xff] %v90
  %v94 = vld [vmem:[#allocation1] sm:$0xff]
  %vm95 = vcmp.lt.s32.totalorder %v80, %v94
  %v96 = vsel %vm95, 0.0, -1e+30
  %v97 = vld [vmem:[%s4] sm:$0x1]
  %v98 = vld [vmem:[%s5] sm:$0xff]
  %v99 = vld [vmem:[%s5 + $0x8] sm:$0xff]
  %v100 = vld [vmem:[%s5 + $0x10] sm:$0xff]
  %v101 = vld [vmem:[%s5 + $0x18] sm:$0xff]
  %v102 = vld [vmem:[%s5 + $0x20] sm:$0xff]
  %v103 = vld [vmem:[%s5 + $0x28] sm:$0xff]
  %v104 = vld [vmem:[%s5 + $0x30] sm:$0xff]
  %v105 = vld [vmem:[%s5 + $0x38] sm:$0xff]
  %v106 = vld [vmem:[%s5 + $0x40] sm:$0xff]
  %v107 = vld [vmem:[%s5 + $0x48] sm:$0xff]
  %v108 = vld [vmem:[%s5 + $0x50] sm:$0xff]
  %v109 = vld [vmem:[%s5 + $0x58] sm:$0xff]
  %v110 = vld [vmem:[%s5 + $0x60] sm:$0xff]
  %v111 = vld [vmem:[%s5 + $0x68] sm:$0xff]
  %v112 = vld [vmem:[%s5 + $0x70] sm:$0xff]
  %v113 = vld [vmem:[%s5 + $0x78] sm:$0xff]
  %v114 = vld [vmem:[%s5 + $0x80] sm:$0xff]
  %v115 = vld [vmem:[%s5 + $0x88] sm:$0xff]
  %v116 = vld [vmem:[%s5 + $0x90] sm:$0xff]
  %v117 = vld [vmem:[%s5 + $0x98] sm:$0xff]
  %v118 = vld [vmem:[%s5 + $0xa0] sm:$0xff]
  %v119 = vld [vmem:[%s5 + $0xa8] sm:$0xff]
  %v120 = vld [vmem:[%s5 + $0xb0] sm:$0xff]
  %v121 = vld [vmem:[%s5 + $0xb8] sm:$0xff]
  %v122 = vld [vmem:[%s5 + $0xc0] sm:$0xff]
  %v123 = vld [vmem:[%s5 + $0xc8] sm:$0xff]
  %v124 = vld [vmem:[%s5 + $0xd0] sm:$0xff]
  %v125 = vld [vmem:[%s5 + $0xd8] sm:$0xff]
  %v126 = vld [vmem:[%s5 + $0xe0] sm:$0xff]
  %v127 = vld [vmem:[%s5 + $0xe8] sm:$0xff]
  %v128 = vld [vmem:[%s5 + $0xf0] sm:$0xff]
  %v129 = vld [vmem:[%s5 + $0xf8] sm:$0xff]
  %v130 = vld [vmem:[%s5 + $0x100] sm:$0xff]
  %v131 = vld [vmem:[%s5 + $0x108] sm:$0xff]
  %v132 = vld [vmem:[%s5 + $0x110] sm:$0xff]
  %v133 = vld [vmem:[%s5 + $0x118] sm:$0xff]
  %v134 = vld [vmem:[%s5 + $0x120] sm:$0xff]
  %v135 = vld [vmem:[%s5 + $0x128] sm:$0xff]
  %v136 = vld [vmem:[%s5 + $0x130] sm:$0xff]
  %v137 = vld [vmem:[%s5 + $0x138] sm:$0xff]
  %v138 = vld [vmem:[%s5 + $0x140] sm:$0xff]
  %v139 = vld [vmem:[%s5 + $0x148] sm:$0xff]
  %v140 = vld [vmem:[%s5 + $0x150] sm:$0xff]
  %v141 = vld [vmem:[%s5 + $0x158] sm:$0xff]
  %v142 = vld [vmem:[%s5 + $0x160] sm:$0xff]
  %v143 = vld [vmem:[%s5 + $0x168] sm:$0xff]
  %v144 = vld [vmem:[%s5 + $0x170] sm:$0xff]
  %v145 = vld [vmem:[%s5 + $0x178] sm:$0xff]
  %v146 = vld [vmem:[%s5 + $0x180] sm:$0xff]
  %v147 = vld [vmem:[%s5 + $0x188] sm:$0xff]
  %v148 = vld [vmem:[%s5 + $0x190] sm:$0xff]
  %v149 = vld [vmem:[%s5 + $0x198] sm:$0xff]
  %v150 = vld [vmem:[%s5 + $0x1a0] sm:$0xff]
  %v151 = vld [vmem:[%s5 + $0x1a8] sm:$0xff]
  %v152 = vld [vmem:[%s5 + $0x1b0] sm:$0xff]
  %v153 = vld [vmem:[%s5 + $0x1b8] sm:$0xff]
  %v154 = vld [vmem:[%s5 + $0x1c0] sm:$0xff]
  %v155 = vld [vmem:[%s5 + $0x1c8] sm:$0xff]
  %v156 = vld [vmem:[%s5 + $0x1d0] sm:$0xff]
  %v157 = vld [vmem:[%s5 + $0x1d8] sm:$0xff]
  %v158 = vld [vmem:[%s5 + $0x1e0] sm:$0xff]
  %v159 = vld [vmem:[%s5 + $0x1e8] sm:$0xff]
  %v160 = vld [vmem:[%s5 + $0x1f0] sm:$0xff]
  %v161 = vld [vmem:[%s5 + $0x1f8] sm:$0xff]
  %v162 = vld [vmem:[%s6] sm:$0xff]
  %v163 = vld [vmem:[%s6 + $0x8] sm:$0xff]
  %v164 = vld [vmem:[%s6 + $0x10] sm:$0xf]
  %v165 = vld [vmem:[%s6 + $0x14] sm:$0xff]
  %v166 = vld [vmem:[%s6 + $0x1c] sm:$0xff]
  %v167 = vld [vmem:[%s6 + $0x24] sm:$0xf]
  %v168 = vld [vmem:[%s6 + $0x28] sm:$0xff]
  %v169 = vld [vmem:[%s6 + $0x30] sm:$0xff]
  %v170 = vld [vmem:[%s6 + $0x38] sm:$0xf]
  %v171 = vld [vmem:[%s6 + $0x3c] sm:$0xff]
  %v172 = vld [vmem:[%s6 + $0x44] sm:$0xff]
  %v173 = vld [vmem:[%s6 + $0x4c] sm:$0xf]
  %v174 = vld [vmem:[%s6 + $0x50] sm:$0xff]
  %v175 = vld [vmem:[%s6 + $0x58] sm:$0xff]
  %v176 = vld [vmem:[%s6 + $0x60] sm:$0xf]
  %v177 = vld [vmem:[%s6 + $0x64] sm:$0xff]
  %v178 = vld [vmem:[%s6 + $0x6c] sm:$0xff]
  %v179 = vld [vmem:[%s6 + $0x74] sm:$0xf]
  %v180 = vld [vmem:[%s6 + $0x78] sm:$0xff]
  %v181 = vld [vmem:[%s6 + $0x80] sm:$0xff]
  %v182 = vld [vmem:[%s6 + $0x88] sm:$0xf]
  %v183 = vld [vmem:[%s6 + $0x8c] sm:$0xff]
  %v184 = vld [vmem:[%s6 + $0x94] sm:$0xff]
  %v185 = vld [vmem:[%s6 + $0x9c] sm:$0xf]
  %v186 = vld [vmem:[%s6 + $0xa0] sm:$0xff]
  %v187 = vld [vmem:[%s6 + $0xa8] sm:$0xff]
  %v188 = vld [vmem:[%s6 + $0xb0] sm:$0xf]
  %v189 = vld [vmem:[%s6 + $0xb4] sm:$0xff]
  %v190 = vld [vmem:[%s6 + $0xbc] sm:$0xff]
  %v191 = vld [vmem:[%s6 + $0xc4] sm:$0xf]
  %v192 = vld [vmem:[%s6 + $0xc8] sm:$0xff]
  %v193 = vld [vmem:[%s6 + $0xd0] sm:$0xff]
  %v194 = vld [vmem:[%s6 + $0xd8] sm:$0xf]
  %v195 = vld [vmem:[%s6 + $0xdc] sm:$0xff]
  %v196 = vld [vmem:[%s6 + $0xe4] sm:$0xff]
  %v197 = vld [vmem:[%s6 + $0xec] sm:$0xf]
  %v198 = vld [vmem:[%s6 + $0xf0] sm:$0xff]
  %v199 = vld [vmem:[%s6 + $0xf8] sm:$0xff]
  %v200 = vld [vmem:[%s6 + $0x100] sm:$0xf]
  %v201 = vld [vmem:[%s6 + $0x104] sm:$0xff]
  %v202 = vld [vmem:[%s6 + $0x10c] sm:$0xff]
  %v203 = vld [vmem:[%s6 + $0x114] sm:$0xf]
  %v204 = vld [vmem:[%s6 + $0x118] sm:$0xff]
  %v205 = vld [vmem:[%s6 + $0x120] sm:$0xff]
  %v206 = vld [vmem:[%s6 + $0x128] sm:$0xf]
  %v207 = vld [vmem:[%s6 + $0x12c] sm:$0xff]
  %v208 = vld [vmem:[%s6 + $0x134] sm:$0xff]
  %v209 = vld [vmem:[%s6 + $0x13c] sm:$0xf]
  %v210 = vld [vmem:[%s6 + $0x140] sm:$0xff]
  %v211 = vld [vmem:[%s6 + $0x148] sm:$0xff]
  %v212 = vld [vmem:[%s6 + $0x150] sm:$0xf]
  %v213 = vld [vmem:[%s6 + $0x154] sm:$0xff]
  %v214 = vld [vmem:[%s6 + $0x15c] sm:$0xff]
  %v215 = vld [vmem:[%s6 + $0x164] sm:$0xf]
  %v216 = vld [vmem:[%s6 + $0x168] sm:$0xff]
  %v217 = vld [vmem:[%s6 + $0x170] sm:$0xff]
  %v218 = vld [vmem:[%s6 + $0x178] sm:$0xf]
  %v219 = vld [vmem:[%s6 + $0x17c] sm:$0xff]
  %v220 = vld [vmem:[%s6 + $0x184] sm:$0xff]
  %v221 = vld [vmem:[%s6 + $0x18c] sm:$0xf]
  %v222 = vld [vmem:[%s6 + $0x190] sm:$0xff]
  %v223 = vld [vmem:[%s6 + $0x198] sm:$0xff]
  %v224 = vld [vmem:[%s6 + $0x1a0] sm:$0xf]
  %v225 = vld [vmem:[%s6 + $0x1a4] sm:$0xff]
  %v226 = vld [vmem:[%s6 + $0x1ac] sm:$0xff]
  %v227 = vld [vmem:[%s6 + $0x1b4] sm:$0xf]
  %v228 = vld [vmem:[%s6 + $0x1b8] sm:$0xff]
  %v229 = vld [vmem:[%s6 + $0x1c0] sm:$0xff]
  %v230 = vld [vmem:[%s6 + $0x1c8] sm:$0xf]
  %v231 = vld [vmem:[%s6 + $0x1cc] sm:$0xff]
  %v232 = vld [vmem:[%s6 + $0x1d4] sm:$0xff]
  %v233 = vld [vmem:[%s6 + $0x1dc] sm:$0xf]
  %v234 = vld [vmem:[%s6 + $0x1e0] sm:$0xff]
  %v235 = vld [vmem:[%s6 + $0x1e8] sm:$0xff]
  %v236 = vld [vmem:[%s6 + $0x1f0] sm:$0xf]
  %v237 = vld [vmem:[%s6 + $0x1f4] sm:$0xff]
  %v238 = vld [vmem:[%s6 + $0x1fc] sm:$0xff]
  %v239 = vld [vmem:[%s6 + $0x204] sm:$0xf]
  %v240 = vld [vmem:[%s6 + $0x208] sm:$0xff]
  %v241 = vld [vmem:[%s6 + $0x210] sm:$0xff]
  %v242 = vld [vmem:[%s6 + $0x218] sm:$0xf]
  %v243 = vld [vmem:[%s6 + $0x21c] sm:$0xff]
  %v244 = vld [vmem:[%s6 + $0x224] sm:$0xff]
  %v245 = vld [vmem:[%s6 + $0x22c] sm:$0xf]
  %v246 = vld [vmem:[%s6 + $0x230] sm:$0xff]
  %v247 = vld [vmem:[%s6 + $0x238] sm:$0xff]
  %v248 = vld [vmem:[%s6 + $0x240] sm:$0xf]
  %v249 = vld [vmem:[%s6 + $0x244] sm:$0xff]
  %v250 = vld [vmem:[%s6 + $0x24c] sm:$0xff]
  %v251 = vld [vmem:[%s6 + $0x254] sm:$0xf]
  %v252 = vld [vmem:[%s6 + $0x258] sm:$0xff]
  %v253 = vld [vmem:[%s6 + $0x260] sm:$0xff]
  %v254 = vld [vmem:[%s6 + $0x268] sm:$0xf]
  %v255 = vld [vmem:[%s6 + $0x26c] sm:$0xff]
  %v256 = vld [vmem:[%s6 + $0x274] sm:$0xff]
  %v257 = vld [vmem:[%s6 + $0x27c] sm:$0xf]
  %v258 = vld [vmem:[%s7] sm:$0xf]
  %v260 = vperm.slane %v258, 0
  %v261 = vperm.slane %v258, 1
  %v262 = vperm.slane %v258, 2
  %v263 = vperm.slane %v258, 3
  %v268 = vadd.f32 %v77, 0.0
  %v269 = vadd.f32 %v78, 0.0
  %v270 = vtanh.pop %v268
  %v271 = vtanh.pop %v269
  %v273 = vperm.slane %v97, 0
  %v275 = vmul.f32 %v270, %v273
  %v276 = vmul.f32 %v271, %v273
  %vm277 = vcmask 261120
  %v278 = vsel %vm277, %v275, 0.0
  %279 = vadd.xlane.f32.xlu0 %v278
  %v280 = vpop.xlane.xlu0 %279
  %v281 = vsel %vm277, %v276, 0.0
  %282 = vadd.xlane.f32.xlu0 %v281
  %v283 = vpop.xlane.xlu0 %282
  %v285 = vperm.slane %v96, 0
  %v286 = vlaneseq
  %v287 = vshrl.u32 %v286, 7
  %289 = vset.pattern.permute.xlu0 %v287
  %290 = vperm.xlu0 %289, %v285
  %v291 = vpop.permute.xlu0 %290
  %v292 = vperm.slane %v96, 1
  %v293 = vlaneseq
  %v294 = vshrl.u32 %v293, 7
  %296 = vset.pattern.permute.xlu0 %v294
  %297 = vperm.xlu0 %296, %v292
  %v298 = vpop.permute.xlu0 %297
  %v301 = vadd.f32 %v280, %v291
  %v302 = vadd.f32 %v283, %v298
  %305 = vset.pattern.permute.xlu0 0
  %306 = vperm.xlu0 %305, %v301
  %v307 = vpop.permute.xlu0 %306
  %308 = vset.pattern.permute.xlu0 0
  %309 = vperm.xlu0 %308, %v302
  %v310 = vpop.permute.xlu0 %309
  %v311 = vperm.slane %v307, %v80
  %v312 = vperm.slane %v310, %v80
  %vm313 = vcmask 1041409
  %v314 = vsel %vm313, %v312, %v311
  %vm316 = vcmask 58368
  %v317 = vsel %vm316, %v314, -inf
  %318 = vmax.xlane.f32.xlu0 %v317
  %v319 = vpop.xlane.xlu0 %318
  %v321 = vperm.slane %v319, 0
  %v322 = vperm.slane %v319, 1
  %v325 = vsub.f32 %v301, %v321
  %v326 = vsub.f32 %v302, %v322
  %v327 = vmul.f32 %v325, 1.442695
  %v328 = vpow.pop %v327
  %v329 = vmul.f32 %v326, 1.442695
  %v330 = vpow.pop %v329
  %333 = vset.pattern.permute.xlu0 0
  %334 = vperm.xlu0 %333, %v328
  %v335 = vpop.permute.xlu0 %334
  %336 = vset.pattern.permute.xlu0 0
  %337 = vperm.xlu0 %336, %v330
  %v338 = vpop.permute.xlu0 %337
  %v339 = vperm.slane %v335, %v80
  %v340 = vperm.slane %v338, %v80
  %v341 = vsel %vm313, %v340, %v339
  %v343 = vsel %vm316, %v341, 0.0
  %344 = vadd.xlane.f32.xlu0 %v343
  %v345 = vpop.xlane.xlu0 %344
  %v346 = vmax.f32 %v345, 1e-30
  %v347 = vrcp.pop %v346
  %v348 = vmul.f32 %v346, %v347
  %v349 = vsub.f32 1.0, %v348
  %v350 = vmul.f32 %v347, %v349
  %v351 = vadd.f32 %v347, %v350
  %vm352 = vweird.f32 %v346
  %vm353 = vweird.f32 %v347
  %vm354 = vmor %vm352, %vm353
  %v355 = vsel %vm354, %v347, %v351
  %v356 = vand.u32 2147483647, %v346
  %vm357 = vcmp.eq.f32.partialorder %v356, 8.507059e+37
  %v358 = vand.u32 %v346, 2147483648
  %v359 = vor.u32 1.1754944e-38, %v358
  %v360 = vsel %vm357, %v359, %v355
  %v361 = vmul.f32 1.0, %v360
  %v363 = vperm.slane %v361, 0
  %v364 = vperm.slane %v361, 1
  %v367 = vmul.f32 %v328, %v363
  %v368 = vmul.f32 %v330, %v364
  %370 = vset.pattern.permute.xlu0 0
  %371 = vperm.xlu0 %370, %v367
  %v372 = vpop.permute.xlu0 %371
  %375 = vset.pattern.permute.xlu0 0
  %376 = vperm.xlu0 %375, %v368
  %v377 = vpop.permute.xlu0 %376
  %v379 = vmul.f32 %v372, %v32
  %v380 = vmul.f32 %v377, %v33
  %v381 = vrot.slane %v379, 4
  %v382 = vadd.f32 %v379, %v381
  %v383 = vrot.slane %v382, 2
  %v384 = vadd.f32 %v382, %v383
  %v385 = vrot.slane %v384, 1
  %v386 = vadd.f32 %v384, %v385
  %v387 = vrot.slane %v380, 4
  %v388 = vadd.f32 %v380, %v387
  %v389 = vrot.slane %v388, 2
  %v390 = vadd.f32 %v388, %v389
  %v391 = vrot.slane %v390, 1
  %v392 = vadd.f32 %v390, %v391
  %v395 = vsel %vm313, %v392, %v386
  %v397 = vpack.c.bf16 %v395, %v395
  %v398 = vpack.c.bf16 0.0, 0.0
  %v463 = vunpack.c.l.b16 %v98
  %v464 = vunpack.c.h.b16 %v98
  %v465 = vunpack.c.l.b16 %v99
  %v466 = vunpack.c.h.b16 %v99
  %v467 = vunpack.c.l.b16 %v100
  %v468 = vunpack.c.h.b16 %v100
  %v469 = vunpack.c.l.b16 %v101
  %v470 = vunpack.c.h.b16 %v101
  %v471 = vunpack.c.l.b16 %v102
  %v472 = vunpack.c.h.b16 %v102
  %v473 = vunpack.c.l.b16 %v103
  %v474 = vunpack.c.h.b16 %v103
  %v475 = vunpack.c.l.b16 %v104
  %v476 = vunpack.c.h.b16 %v104
  %v477 = vunpack.c.l.b16 %v105
  %v478 = vunpack.c.h.b16 %v105
  %v479 = vunpack.c.l.b16 %v106
  %v480 = vunpack.c.h.b16 %v106
  %v481 = vunpack.c.l.b16 %v107
  %v482 = vunpack.c.h.b16 %v107
  %v483 = vunpack.c.l.b16 %v108
  %v484 = vunpack.c.h.b16 %v108
  %v485 = vunpack.c.l.b16 %v109
  %v486 = vunpack.c.h.b16 %v109
  %v487 = vunpack.c.l.b16 %v110
  %v488 = vunpack.c.h.b16 %v110
  %v489 = vunpack.c.l.b16 %v111
  %v490 = vunpack.c.h.b16 %v111
  %v491 = vunpack.c.l.b16 %v112
  %v492 = vunpack.c.h.b16 %v112
  %v493 = vunpack.c.l.b16 %v113
  %v494 = vunpack.c.h.b16 %v113
  %v495 = vunpack.c.l.b16 %v114
  %v496 = vunpack.c.h.b16 %v114
  %v497 = vunpack.c.l.b16 %v115
  %v498 = vunpack.c.h.b16 %v115
  %v499 = vunpack.c.l.b16 %v116
  %v500 = vunpack.c.h.b16 %v116
  %v501 = vunpack.c.l.b16 %v117
  %v502 = vunpack.c.h.b16 %v117
  %v503 = vunpack.c.l.b16 %v118
  %v504 = vunpack.c.h.b16 %v118
  %v505 = vunpack.c.l.b16 %v119
  %v506 = vunpack.c.h.b16 %v119
  %v507 = vunpack.c.l.b16 %v120
  %v508 = vunpack.c.h.b16 %v120
  %v509 = vunpack.c.l.b16 %v121
  %v510 = vunpack.c.h.b16 %v121
  %v511 = vunpack.c.l.b16 %v122
  %v512 = vunpack.c.h.b16 %v122
  %v513 = vunpack.c.l.b16 %v123
  %v514 = vunpack.c.h.b16 %v123
  %v515 = vunpack.c.l.b16 %v124
  %v516 = vunpack.c.h.b16 %v124
  %v517 = vunpack.c.l.b16 %v125
  %v518 = vunpack.c.h.b16 %v125
  %v519 = vunpack.c.l.b16 %v126
  %v520 = vunpack.c.h.b16 %v126
  %v521 = vunpack.c.l.b16 %v127
  %v522 = vunpack.c.h.b16 %v127
  %v523 = vunpack.c.l.b16 %v128
  %v524 = vunpack.c.h.b16 %v128
  %v525 = vunpack.c.l.b16 %v129
  %v526 = vunpack.c.h.b16 %v129
  %v527 = vunpack.c.l.b16 %v130
  %v528 = vunpack.c.h.b16 %v130
  %v529 = vunpack.c.l.b16 %v131
  %v530 = vunpack.c.h.b16 %v131
  %v531 = vunpack.c.l.b16 %v132
  %v532 = vunpack.c.h.b16 %v132
  %v533 = vunpack.c.l.b16 %v133
  %v534 = vunpack.c.h.b16 %v133
  %v535 = vunpack.c.l.b16 %v134
  %v536 = vunpack.c.h.b16 %v134
  %v537 = vunpack.c.l.b16 %v135
  %v538 = vunpack.c.h.b16 %v135
  %v539 = vunpack.c.l.b16 %v136
  %v540 = vunpack.c.h.b16 %v136
  %v541 = vunpack.c.l.b16 %v137
  %v542 = vunpack.c.h.b16 %v137
  %v543 = vunpack.c.l.b16 %v138
  %v544 = vunpack.c.h.b16 %v138
  %v545 = vunpack.c.l.b16 %v139
  %v546 = vunpack.c.h.b16 %v139
  %v547 = vunpack.c.l.b16 %v140
  %v548 = vunpack.c.h.b16 %v140
  %v549 = vunpack.c.l.b16 %v141
  %v550 = vunpack.c.h.b16 %v141
  %v551 = vunpack.c.l.b16 %v142
  %v552 = vunpack.c.h.b16 %v142
  %v553 = vunpack.c.l.b16 %v143
  %v554 = vunpack.c.h.b16 %v143
  %v555 = vunpack.c.l.b16 %v144
  %v556 = vunpack.c.h.b16 %v144
  %v557 = vunpack.c.l.b16 %v145
  %v558 = vunpack.c.h.b16 %v145
  %v559 = vunpack.c.l.b16 %v146
  %v560 = vunpack.c.h.b16 %v146
  %v561 = vunpack.c.l.b16 %v147
  %v562 = vunpack.c.h.b16 %v147
  %v563 = vunpack.c.l.b16 %v148
  %v564 = vunpack.c.h.b16 %v148
  %v565 = vunpack.c.l.b16 %v149
  %v566 = vunpack.c.h.b16 %v149
  %v567 = vunpack.c.l.b16 %v150
  %v568 = vunpack.c.h.b16 %v150
  %v569 = vunpack.c.l.b16 %v151
  %v570 = vunpack.c.h.b16 %v151
  %v571 = vunpack.c.l.b16 %v152
  %v572 = vunpack.c.h.b16 %v152
  %v573 = vunpack.c.l.b16 %v153
  %v574 = vunpack.c.h.b16 %v153
  %v575 = vunpack.c.l.b16 %v154
  %v576 = vunpack.c.h.b16 %v154
  %v577 = vunpack.c.l.b16 %v155
  %v578 = vunpack.c.h.b16 %v155
  %v579 = vunpack.c.l.b16 %v156
  %v580 = vunpack.c.h.b16 %v156
  %v581 = vunpack.c.l.b16 %v157
  %v582 = vunpack.c.h.b16 %v157
  %v583 = vunpack.c.l.b16 %v158
  %v584 = vunpack.c.h.b16 %v158
  %v585 = vunpack.c.l.b16 %v159
  %v586 = vunpack.c.h.b16 %v159
  %v587 = vunpack.c.l.b16 %v160
  %v588 = vunpack.c.h.b16 %v160
  %v589 = vunpack.c.l.b16 %v161
  %v590 = vunpack.c.h.b16 %v161
  %v591 = vpack.c.b16 %v467, %v463
  %v592 = vpack.c.b16 %v468, %v464
  %v593 = vpack.c.b16 %v469, %v465
  %v594 = vpack.c.b16 %v470, %v466
  %v595 = vpack.c.b16 %v475, %v471
  %v596 = vpack.c.b16 %v476, %v472
  %v597 = vpack.c.b16 %v477, %v473
  %v598 = vpack.c.b16 %v478, %v474
  %v599 = vpack.c.b16 %v483, %v479
  %v600 = vpack.c.b16 %v484, %v480
  %v601 = vpack.c.b16 %v485, %v481
  %v602 = vpack.c.b16 %v486, %v482
  %v603 = vpack.c.b16 %v491, %v487
  %v604 = vpack.c.b16 %v492, %v488
  %v605 = vpack.c.b16 %v493, %v489
  %v606 = vpack.c.b16 %v494, %v490
  %v607 = vpack.c.b16 %v499, %v495
  %v608 = vpack.c.b16 %v500, %v496
  %v609 = vpack.c.b16 %v501, %v497
  %v610 = vpack.c.b16 %v502, %v498
  %v611 = vpack.c.b16 %v507, %v503
  %v612 = vpack.c.b16 %v508, %v504
  %v613 = vpack.c.b16 %v509, %v505
  %v614 = vpack.c.b16 %v510, %v506
  %v615 = vpack.c.b16 %v515, %v511
  %v616 = vpack.c.b16 %v516, %v512
  %v617 = vpack.c.b16 %v517, %v513
  %v618 = vpack.c.b16 %v518, %v514
  %v619 = vpack.c.b16 %v523, %v519
  %v620 = vpack.c.b16 %v524, %v520
  %v621 = vpack.c.b16 %v525, %v521
  %v622 = vpack.c.b16 %v526, %v522
  %v623 = vpack.c.b16 %v531, %v527
  %v624 = vpack.c.b16 %v532, %v528
  %v625 = vpack.c.b16 %v533, %v529
  %v626 = vpack.c.b16 %v534, %v530
  %v627 = vpack.c.b16 %v539, %v535
  %v628 = vpack.c.b16 %v540, %v536
  %v629 = vpack.c.b16 %v541, %v537
  %v630 = vpack.c.b16 %v542, %v538
  %v631 = vpack.c.b16 %v547, %v543
  %v632 = vpack.c.b16 %v548, %v544
  %v633 = vpack.c.b16 %v549, %v545
  %v634 = vpack.c.b16 %v550, %v546
  %v635 = vpack.c.b16 %v555, %v551
  %v636 = vpack.c.b16 %v556, %v552
  %v637 = vpack.c.b16 %v557, %v553
  %v638 = vpack.c.b16 %v558, %v554
  %v639 = vpack.c.b16 %v563, %v559
  %v640 = vpack.c.b16 %v564, %v560
  %v641 = vpack.c.b16 %v565, %v561
  %v642 = vpack.c.b16 %v566, %v562
  %v643 = vpack.c.b16 %v571, %v567
  %v644 = vpack.c.b16 %v572, %v568
  %v645 = vpack.c.b16 %v573, %v569
  %v646 = vpack.c.b16 %v574, %v570
  %v647 = vpack.c.b16 %v579, %v575
  %v648 = vpack.c.b16 %v580, %v576
  %v649 = vpack.c.b16 %v581, %v577
  %v650 = vpack.c.b16 %v582, %v578
  %v651 = vpack.c.b16 %v587, %v583
  %v652 = vpack.c.b16 %v588, %v584
  %v653 = vpack.c.b16 %v589, %v585
  %v654 = vpack.c.b16 %v590, %v586
  %719 = vmatpush.bf16.msra.mxu0 %v619
  %720 = vmatpush.bf16.msra.mxu0 %v615
  %721 = vmatpush.bf16.msra.mxu0 %v611
  %722 = vmatpush.bf16.msra.mxu0 %v607
  %723 = vmatpush.bf16.msra.mxu0 %v603
  %724 = vmatpush.bf16.msra.mxu0 %v599
  %725 = vmatpush.bf16.msra.mxu0 %v595
  %726 = vmatpush.bf16.msra.mxu0 %v591
  %727 = vmatmul.bf16.gmra.mxu0 %v397
  %v728 = vpop.f32.mrf.mxu0
  %v729 = vadd.f32 0.0, %v728
  %v730 = vpop.f32.mrf.mxu0
  %731 = vdwg.mxu0
  %732 = vmatpush.bf16.msra.mxu0 %v651
  %733 = vmatpush.bf16.msra.mxu0 %v647
  %734 = vmatpush.bf16.msra.mxu0 %v643
  %735 = vmatpush.bf16.msra.mxu0 %v639
  %736 = vmatpush.bf16.msra.mxu0 %v635
  %737 = vmatpush.bf16.msra.mxu0 %v631
  %738 = vmatpush.bf16.msra.mxu0 %v627
  %739 = vmatpush.bf16.msra.mxu0 %v623
  %740 = vmatmul.bf16.gmra.mxu0 %v398
  %v741 = vpop.f32.mrf.mxu0
  %v742 = vadd.f32 %v729, %v741
  %v743 = vpop.f32.mrf.mxu0
  %744 = vdwg.mxu0
  %745 = vmatpush.bf16.msra.mxu0 %v620
  %746 = vmatpush.bf16.msra.mxu0 %v616
  %747 = vmatpush.bf16.msra.mxu0 %v612
  %748 = vmatpush.bf16.msra.mxu0 %v608
  %749 = vmatpush.bf16.msra.mxu0 %v604
  %750 = vmatpush.bf16.msra.mxu0 %v600
  %751 = vmatpush.bf16.msra.mxu0 %v596
  %752 = vmatpush.bf16.msra.mxu0 %v592
  %753 = vmatmul.bf16.gmra.mxu0 %v397
  %v754 = vpop.f32.mrf.mxu0
  %v755 = vadd.f32 0.0, %v754
  %v756 = vpop.f32.mrf.mxu0
  %757 = vdwg.mxu0
  %758 = vmatpush.bf16.msra.mxu0 %v652
  %759 = vmatpush.bf16.msra.mxu0 %v648
  %760 = vmatpush.bf16.msra.mxu0 %v644
  %761 = vmatpush.bf16.msra.mxu0 %v640
  %762 = vmatpush.bf16.msra.mxu0 %v636
  %763 = vmatpush.bf16.msra.mxu0 %v632
  %764 = vmatpush.bf16.msra.mxu0 %v628
  %765 = vmatpush.bf16.msra.mxu0 %v624
  %766 = vmatmul.bf16.gmra.mxu0 %v398
  %v767 = vpop.f32.mrf.mxu0
  %v768 = vadd.f32 %v755, %v767
  %v769 = vpop.f32.mrf.mxu0
  %770 = vdwg.mxu0
  %771 = vmatpush.bf16.msra.mxu0 %v621
  %772 = vmatpush.bf16.msra.mxu0 %v617
  %773 = vmatpush.bf16.msra.mxu0 %v613
  %774 = vmatpush.bf16.msra.mxu0 %v609
  %775 = vmatpush.bf16.msra.mxu0 %v605
  %776 = vmatpush.bf16.msra.mxu0 %v601
  %777 = vmatpush.bf16.msra.mxu0 %v597
  %778 = vmatpush.bf16.msra.mxu0 %v593
  %779 = vmatmul.bf16.gmra.mxu0 %v397
  %v780 = vpop.f32.mrf.mxu0
  %v781 = vadd.f32 0.0, %v780
  %v782 = vpop.f32.mrf.mxu0
  %783 = vdwg.mxu0
  %784 = vmatpush.bf16.msra.mxu0 %v653
  %785 = vmatpush.bf16.msra.mxu0 %v649
  %786 = vmatpush.bf16.msra.mxu0 %v645
  %787 = vmatpush.bf16.msra.mxu0 %v641
  %788 = vmatpush.bf16.msra.mxu0 %v637
  %789 = vmatpush.bf16.msra.mxu0 %v633
  %790 = vmatpush.bf16.msra.mxu0 %v629
  %791 = vmatpush.bf16.msra.mxu0 %v625
  %792 = vmatmul.bf16.gmra.mxu0 %v398
  %v793 = vpop.f32.mrf.mxu0
  %v794 = vadd.f32 %v781, %v793
  %v795 = vpop.f32.mrf.mxu0
  %796 = vdwg.mxu0
  %797 = vmatpush.bf16.msra.mxu0 %v622
  %798 = vmatpush.bf16.msra.mxu0 %v618
  %799 = vmatpush.bf16.msra.mxu0 %v614
  %800 = vmatpush.bf16.msra.mxu0 %v610
  %801 = vmatpush.bf16.msra.mxu0 %v606
  %802 = vmatpush.bf16.msra.mxu0 %v602
  %803 = vmatpush.bf16.msra.mxu0 %v598
  %804 = vmatpush.bf16.msra.mxu0 %v594
  %805 = vmatmul.bf16.gmra.mxu0 %v397
  %v806 = vpop.f32.mrf.mxu0
  %v807 = vadd.f32 0.0, %v806
  %v808 = vpop.f32.mrf.mxu0
  %809 = vdwg.mxu0
  %810 = vmatpush.bf16.msra.mxu0 %v654
  %811 = vmatpush.bf16.msra.mxu0 %v650
  %812 = vmatpush.bf16.msra.mxu0 %v646
  %813 = vmatpush.bf16.msra.mxu0 %v642
  %814 = vmatpush.bf16.msra.mxu0 %v638
  %815 = vmatpush.bf16.msra.mxu0 %v634
  %816 = vmatpush.bf16.msra.mxu0 %v630
  %817 = vmatpush.bf16.msra.mxu0 %v626
  %818 = vmatmul.bf16.gmra.mxu0 %v398
  %v819 = vpop.f32.mrf.mxu0
  %v820 = vadd.f32 %v807, %v819
  %v821 = vpop.f32.mrf.mxu0
  %822 = vdwg.mxu0
  %v823 = vxor.u32 %v742, 2147483648
  %v824 = vxor.u32 %v768, 2147483648
  %v825 = vxor.u32 %v794, 2147483648
  %v826 = vmul.f32 %v823, 1.442695
  %v827 = vpow.pop %v826
  %v828 = vmul.f32 %v824, 1.442695
  %v829 = vpow.pop %v828
  %v830 = vmul.f32 %v825, 1.442695
  %v831 = vpow.pop %v830
  %v832 = vadd.f32 %v827, 1.0
  %v833 = vadd.f32 %v829, 1.0
  %v834 = vadd.f32 %v831, 1.0
  %v835 = vrcp.pop %v832
  %v836 = vmul.f32 %v832, %v835
  %v837 = vsub.f32 1.0, %v836
  %v838 = vmul.f32 %v835, %v837
  %v839 = vadd.f32 %v835, %v838
  %vm840 = vweird.f32 %v832
  %vm841 = vweird.f32 %v835
  %vm842 = vmor %vm840, %vm841
  %v843 = vsel %vm842, %v835, %v839
  %v844 = vand.u32 2147483647, %v832
  %vm845 = vcmp.eq.f32.partialorder %v844, 8.507059e+37
  %v846 = vand.u32 %v832, 2147483648
  %v847 = vor.u32 1.1754944e-38, %v846
  %v848 = vsel %vm845, %v847, %v843
  %v849 = vmul.f32 1.0, %v848
  %v850 = vrcp.pop %v833
  %v851 = vmul.f32 %v833, %v850
  %v852 = vsub.f32 1.0, %v851
  %v853 = vmul.f32 %v850, %v852
  %v854 = vadd.f32 %v850, %v853
  %vm855 = vweird.f32 %v833
  %vm856 = vweird.f32 %v850
  %vm857 = vmor %vm855, %vm856
  %v858 = vsel %vm857, %v850, %v854
  %v859 = vand.u32 2147483647, %v833
  %vm860 = vcmp.eq.f32.partialorder %v859, 8.507059e+37
  %v861 = vand.u32 %v833, 2147483648
  %v862 = vor.u32 1.1754944e-38, %v861
  %v863 = vsel %vm860, %v862, %v858
  %v864 = vmul.f32 1.0, %v863
  %v865 = vrcp.pop %v834
  %v866 = vmul.f32 %v834, %v865
  %v867 = vsub.f32 1.0, %v866
  %v868 = vmul.f32 %v865, %v867
  %v869 = vadd.f32 %v865, %v868
  %vm870 = vweird.f32 %v834
  %vm871 = vweird.f32 %v865
  %vm872 = vmor %vm870, %vm871
  %v873 = vsel %vm872, %v865, %v869
  %v874 = vand.u32 2147483647, %v834
  %vm875 = vcmp.eq.f32.partialorder %v874, 8.507059e+37
  %v876 = vand.u32 %v834, 2147483648
  %v877 = vor.u32 1.1754944e-38, %v876
  %v878 = vsel %vm875, %v877, %v873
  %v879 = vmul.f32 1.0, %v878
  %v880 = vtanh.pop %v820
  %v881 = vmul.f32 %v864, 0.0
  %v882 = vmul.f32 %v849, %v880
  %v883 = vadd.f32 %v881, %v882
  %v884 = vtanh.pop %v883
  %v885 = vmul.f32 %v879, %v884
  %v886 = vmul.f32 %v885, 0.9
  %v887 = vadd.f32 %v886, 0.0
  %v888 = vmul.f32 %v883, 0.9
  %v889 = vadd.f32 %v888, 0.0
  %v890 = vpack.c.bf16 %v887, %v887
  %v987 = vunpack.c.l.b16 %v162
  %v988 = vunpack.c.h.b16 %v162
  %v989 = vunpack.c.l.b16 %v163
  %v990 = vunpack.c.h.b16 %v163
  %v991 = vunpack.c.l.b16 %v164
  %v992 = vunpack.c.l.b16 %v165
  %v993 = vunpack.c.h.b16 %v165
  %v994 = vunpack.c.l.b16 %v166
  %v995 = vunpack.c.h.b16 %v166
  %v996 = vunpack.c.l.b16 %v167
  %v997 = vunpack.c.l.b16 %v168
  %v998 = vunpack.c.h.b16 %v168
  %v999 = vunpack.c.l.b16 %v169
  %v1000 = vunpack.c.h.b16 %v169
  %v1001 = vunpack.c.l.b16 %v170
  %v1002 = vunpack.c.l.b16 %v171
  %v1003 = vunpack.c.h.b16 %v171
  %v1004 = vunpack.c.l.b16 %v172
  %v1005 = vunpack.c.h.b16 %v172
  %v1006 = vunpack.c.l.b16 %v173
  %v1007 = vunpack.c.l.b16 %v174
  %v1008 = vunpack.c.h.b16 %v174
  %v1009 = vunpack.c.l.b16 %v175
  %v1010 = vunpack.c.h.b16 %v175
  %v1011 = vunpack.c.l.b16 %v176
  %v1012 = vunpack.c.l.b16 %v177
  %v1013 = vunpack.c.h.b16 %v177
  %v1014 = vunpack.c.l.b16 %v178
  %v1015 = vunpack.c.h.b16 %v178
  %v1016 = vunpack.c.l.b16 %v179
  %v1017 = vunpack.c.l.b16 %v180
  %v1018 = vunpack.c.h.b16 %v180
  %v1019 = vunpack.c.l.b16 %v181
  %v1020 = vunpack.c.h.b16 %v181
  %v1021 = vunpack.c.l.b16 %v182
  %v1022 = vunpack.c.l.b16 %v183
  %v1023 = vunpack.c.h.b16 %v183
  %v1024 = vunpack.c.l.b16 %v184
  %v1025 = vunpack.c.h.b16 %v184
  %v1026 = vunpack.c.l.b16 %v185
  %v1027 = vunpack.c.l.b16 %v186
  %v1028 = vunpack.c.h.b16 %v186
  %v1029 = vunpack.c.l.b16 %v187
  %v1030 = vunpack.c.h.b16 %v187
  %v1031 = vunpack.c.l.b16 %v188
  %v1032 = vunpack.c.l.b16 %v189
  %v1033 = vunpack.c.h.b16 %v189
  %v1034 = vunpack.c.l.b16 %v190
  %v1035 = vunpack.c.h.b16 %v190
  %v1036 = vunpack.c.l.b16 %v191
  %v1037 = vunpack.c.l.b16 %v192
  %v1038 = vunpack.c.h.b16 %v192
  %v1039 = vunpack.c.l.b16 %v193
  %v1040 = vunpack.c.h.b16 %v193
  %v1041 = vunpack.c.l.b16 %v194
  %v1042 = vunpack.c.l.b16 %v195
  %v1043 = vunpack.c.h.b16 %v195
  %v1044 = vunpack.c.l.b16 %v196
  %v1045 = vunpack.c.h.b16 %v196
  %v1046 = vunpack.c.l.b16 %v197
  %v1047 = vunpack.c.l.b16 %v198
  %v1048 = vunpack.c.h.b16 %v198
  %v1049 = vunpack.c.l.b16 %v199
  %v1050 = vunpack.c.h.b16 %v199
  %v1051 = vunpack.c.l.b16 %v200
  %v1052 = vunpack.c.l.b16 %v201
  %v1053 = vunpack.c.h.b16 %v201
  %v1054 = vunpack.c.l.b16 %v202
  %v1055 = vunpack.c.h.b16 %v202
  %v1056 = vunpack.c.l.b16 %v203
  %v1057 = vunpack.c.l.b16 %v204
  %v1058 = vunpack.c.h.b16 %v204
  %v1059 = vunpack.c.l.b16 %v205
  %v1060 = vunpack.c.h.b16 %v205
  %v1061 = vunpack.c.l.b16 %v206
  %v1062 = vunpack.c.l.b16 %v207
  %v1063 = vunpack.c.h.b16 %v207
  %v1064 = vunpack.c.l.b16 %v208
  %v1065 = vunpack.c.h.b16 %v208
  %v1066 = vunpack.c.l.b16 %v209
  %v1067 = vunpack.c.l.b16 %v210
  %v1068 = vunpack.c.h.b16 %v210
  %v1069 = vunpack.c.l.b16 %v211
  %v1070 = vunpack.c.h.b16 %v211
  %v1071 = vunpack.c.l.b16 %v212
  %v1072 = vunpack.c.l.b16 %v213
  %v1073 = vunpack.c.h.b16 %v213
  %v1074 = vunpack.c.l.b16 %v214
  %v1075 = vunpack.c.h.b16 %v214
  %v1076 = vunpack.c.l.b16 %v215
  %v1077 = vunpack.c.l.b16 %v216
  %v1078 = vunpack.c.h.b16 %v216
  %v1079 = vunpack.c.l.b16 %v217
  %v1080 = vunpack.c.h.b16 %v217
  %v1081 = vunpack.c.l.b16 %v218
  %v1082 = vunpack.c.l.b16 %v219
  %v1083 = vunpack.c.h.b16 %v219
  %v1084 = vunpack.c.l.b16 %v220
  %v1085 = vunpack.c.h.b16 %v220
  %v1086 = vunpack.c.l.b16 %v221
  %v1087 = vunpack.c.l.b16 %v222
  %v1088 = vunpack.c.h.b16 %v222
  %v1089 = vunpack.c.l.b16 %v223
  %v1090 = vunpack.c.h.b16 %v223
  %v1091 = vunpack.c.l.b16 %v224
  %v1092 = vunpack.c.l.b16 %v225
  %v1093 = vunpack.c.h.b16 %v225
  %v1094 = vunpack.c.l.b16 %v226
  %v1095 = vunpack.c.h.b16 %v226
  %v1096 = vunpack.c.l.b16 %v227
  %v1097 = vunpack.c.l.b16 %v228
  %v1098 = vunpack.c.h.b16 %v228
  %v1099 = vunpack.c.l.b16 %v229
  %v1100 = vunpack.c.h.b16 %v229
  %v1101 = vunpack.c.l.b16 %v230
  %v1102 = vunpack.c.l.b16 %v231
  %v1103 = vunpack.c.h.b16 %v231
  %v1104 = vunpack.c.l.b16 %v232
  %v1105 = vunpack.c.h.b16 %v232
  %v1106 = vunpack.c.l.b16 %v233
  %v1107 = vunpack.c.l.b16 %v234
  %v1108 = vunpack.c.h.b16 %v234
  %v1109 = vunpack.c.l.b16 %v235
  %v1110 = vunpack.c.h.b16 %v235
  %v1111 = vunpack.c.l.b16 %v236
  %v1112 = vunpack.c.l.b16 %v237
  %v1113 = vunpack.c.h.b16 %v237
  %v1114 = vunpack.c.l.b16 %v238
  %v1115 = vunpack.c.h.b16 %v238
  %v1116 = vunpack.c.l.b16 %v239
  %v1117 = vunpack.c.l.b16 %v240
  %v1118 = vunpack.c.h.b16 %v240
  %v1119 = vunpack.c.l.b16 %v241
  %v1120 = vunpack.c.h.b16 %v241
  %v1121 = vunpack.c.l.b16 %v242
  %v1122 = vunpack.c.l.b16 %v243
  %v1123 = vunpack.c.h.b16 %v243
  %v1124 = vunpack.c.l.b16 %v244
  %v1125 = vunpack.c.h.b16 %v244
  %v1126 = vunpack.c.l.b16 %v245
  %v1127 = vunpack.c.l.b16 %v246
  %v1128 = vunpack.c.h.b16 %v246
  %v1129 = vunpack.c.l.b16 %v247
  %v1130 = vunpack.c.h.b16 %v247
  %v1131 = vunpack.c.l.b16 %v248
  %v1132 = vunpack.c.l.b16 %v249
  %v1133 = vunpack.c.h.b16 %v249
  %v1134 = vunpack.c.l.b16 %v250
  %v1135 = vunpack.c.h.b16 %v250
  %v1136 = vunpack.c.l.b16 %v251
  %v1137 = vunpack.c.l.b16 %v252
  %v1138 = vunpack.c.h.b16 %v252
  %v1139 = vunpack.c.l.b16 %v253
  %v1140 = vunpack.c.h.b16 %v253
  %v1141 = vunpack.c.l.b16 %v254
  %v1142 = vunpack.c.l.b16 %v255
  %v1143 = vunpack.c.h.b16 %v255
  %v1144 = vunpack.c.l.b16 %v256
  %v1145 = vunpack.c.h.b16 %v256
  %v1146 = vunpack.c.l.b16 %v257
  %v1147 = vpack.c.b16 %v992, %v987
  %v1148 = vpack.c.b16 %v993, %v988
  %v1149 = vpack.c.b16 %v994, %v989
  %v1150 = vpack.c.b16 %v995, %v990
  %v1151 = vpack.c.b16 %v996, %v991
  %v1152 = vpack.c.b16 %v1002, %v997
  %v1153 = vpack.c.b16 %v1003, %v998
  %v1154 = vpack.c.b16 %v1004, %v999
  %v1155 = vpack.c.b16 %v1005, %v1000
  %v1156 = vpack.c.b16 %v1006, %v1001
  %v1157 = vpack.c.b16 %v1012, %v1007
  %v1158 = vpack.c.b16 %v1013, %v1008
  %v1159 = vpack.c.b16 %v1014, %v1009
  %v1160 = vpack.c.b16 %v1015, %v1010
  %v1161 = vpack.c.b16 %v1016, %v1011
  %v1162 = vpack.c.b16 %v1022, %v1017
  %v1163 = vpack.c.b16 %v1023, %v1018
  %v1164 = vpack.c.b16 %v1024, %v1019
  %v1165 = vpack.c.b16 %v1025, %v1020
  %v1166 = vpack.c.b16 %v1026, %v1021
  %v1167 = vpack.c.b16 %v1032, %v1027
  %v1168 = vpack.c.b16 %v1033, %v1028
  %v1169 = vpack.c.b16 %v1034, %v1029
  %v1170 = vpack.c.b16 %v1035, %v1030
  %v1171 = vpack.c.b16 %v1036, %v1031
  %v1172 = vpack.c.b16 %v1042, %v1037
  %v1173 = vpack.c.b16 %v1043, %v1038
  %v1174 = vpack.c.b16 %v1044, %v1039
  %v1175 = vpack.c.b16 %v1045, %v1040
  %v1176 = vpack.c.b16 %v1046, %v1041
  %v1177 = vpack.c.b16 %v1052, %v1047
  %v1178 = vpack.c.b16 %v1053, %v1048
  %v1179 = vpack.c.b16 %v1054, %v1049
  %v1180 = vpack.c.b16 %v1055, %v1050
  %v1181 = vpack.c.b16 %v1056, %v1051
  %v1182 = vpack.c.b16 %v1062, %v1057
  %v1183 = vpack.c.b16 %v1063, %v1058
  %v1184 = vpack.c.b16 %v1064, %v1059
  %v1185 = vpack.c.b16 %v1065, %v1060
  %v1186 = vpack.c.b16 %v1066, %v1061
  %v1187 = vpack.c.b16 %v1072, %v1067
  %v1188 = vpack.c.b16 %v1073, %v1068
  %v1189 = vpack.c.b16 %v1074, %v1069
  %v1190 = vpack.c.b16 %v1075, %v1070
  %v1191 = vpack.c.b16 %v1076, %v1071
  %v1192 = vpack.c.b16 %v1082, %v1077
  %v1193 = vpack.c.b16 %v1083, %v1078
  %v1194 = vpack.c.b16 %v1084, %v1079
  %v1195 = vpack.c.b16 %v1085, %v1080
  %v1196 = vpack.c.b16 %v1086, %v1081
  %v1197 = vpack.c.b16 %v1092, %v1087
  %v1198 = vpack.c.b16 %v1093, %v1088
  %v1199 = vpack.c.b16 %v1094, %v1089
  %v1200 = vpack.c.b16 %v1095, %v1090
  %v1201 = vpack.c.b16 %v1096, %v1091
  %v1202 = vpack.c.b16 %v1102, %v1097
  %v1203 = vpack.c.b16 %v1103, %v1098
  %v1204 = vpack.c.b16 %v1104, %v1099
  %v1205 = vpack.c.b16 %v1105, %v1100
  %v1206 = vpack.c.b16 %v1106, %v1101
  %v1207 = vpack.c.b16 %v1112, %v1107
  %v1208 = vpack.c.b16 %v1113, %v1108
  %v1209 = vpack.c.b16 %v1114, %v1109
  %v1210 = vpack.c.b16 %v1115, %v1110
  %v1211 = vpack.c.b16 %v1116, %v1111
  %v1212 = vpack.c.b16 %v1122, %v1117
  %v1213 = vpack.c.b16 %v1123, %v1118
  %v1214 = vpack.c.b16 %v1124, %v1119
  %v1215 = vpack.c.b16 %v1125, %v1120
  %v1216 = vpack.c.b16 %v1126, %v1121
  %v1217 = vpack.c.b16 %v1132, %v1127
  %v1218 = vpack.c.b16 %v1133, %v1128
  %v1219 = vpack.c.b16 %v1134, %v1129
  %v1220 = vpack.c.b16 %v1135, %v1130
  %v1221 = vpack.c.b16 %v1136, %v1131
  %v1222 = vpack.c.b16 %v1142, %v1137
  %v1223 = vpack.c.b16 %v1143, %v1138
  %v1224 = vpack.c.b16 %v1144, %v1139
  %v1225 = vpack.c.b16 %v1145, %v1140
  %v1226 = vpack.c.b16 %v1146, %v1141
  %1307 = vmatpush.bf16.msra.mxu0 %v1182
  %1308 = vmatpush.bf16.msra.mxu0 %v1177
  %1309 = vmatpush.bf16.msra.mxu0 %v1172
  %1310 = vmatpush.bf16.msra.mxu0 %v1167
  %1311 = vmatpush.bf16.msra.mxu0 %v1162
  %1312 = vmatpush.bf16.msra.mxu0 %v1157
  %1313 = vmatpush.bf16.msra.mxu0 %v1152
  %1314 = vmatpush.bf16.msra.mxu0 %v1147
  %1315 = vmatmul.bf16.gmra.mxu0 %v890
  %v1316 = vpop.f32.mrf.mxu0
  %v1317 = vadd.f32 0.0, %v1316
  %v1318 = vpop.f32.mrf.mxu0
  %1319 = vdwg.mxu0
  %1320 = vmatpush.bf16.msra.mxu0 %v1222
  %1321 = vmatpush.bf16.msra.mxu0 %v1217
  %1322 = vmatpush.bf16.msra.mxu0 %v1212
  %1323 = vmatpush.bf16.msra.mxu0 %v1207
  %1324 = vmatpush.bf16.msra.mxu0 %v1202
  %1325 = vmatpush.bf16.msra.mxu0 %v1197
  %1326 = vmatpush.bf16.msra.mxu0 %v1192
  %1327 = vmatpush.bf16.msra.mxu0 %v1187
  %1328 = vmatmul.bf16.gmra.mxu0 %v398
  %v1329 = vpop.f32.mrf.mxu0
  %v1330 = vadd.f32 %v1317, %v1329
  %v1331 = vpop.f32.mrf.mxu0
  %1332 = vdwg.mxu0
  %1333 = vmatpush.bf16.msra.mxu0 %v1183
  %1334 = vmatpush.bf16.msra.mxu0 %v1178
  %1335 = vmatpush.bf16.msra.mxu0 %v1173
  %1336 = vmatpush.bf16.msra.mxu0 %v1168
  %1337 = vmatpush.bf16.msra.mxu0 %v1163
  %1338 = vmatpush.bf16.msra.mxu0 %v1158
  %1339 = vmatpush.bf16.msra.mxu0 %v1153
  %1340 = vmatpush.bf16.msra.mxu0 %v1148
  %1341 = vmatmul.bf16.gmra.mxu0 %v890
  %v1342 = vpop.f32.mrf.mxu0
  %v1343 = vadd.f32 0.0, %v1342
  %v1344 = vpop.f32.mrf.mxu0
  %1345 = vdwg.mxu0
  %1346 = vmatpush.bf16.msra.mxu0 %v1223
  %1347 = vmatpush.bf16.msra.mxu0 %v1218
  %1348 = vmatpush.bf16.msra.mxu0 %v1213
  %1349 = vmatpush.bf16.msra.mxu0 %v1208
  %1350 = vmatpush.bf16.msra.mxu0 %v1203
  %1351 = vmatpush.bf16.msra.mxu0 %v1198
  %1352 = vmatpush.bf16.msra.mxu0 %v1193
  %1353 = vmatpush.bf16.msra.mxu0 %v1188
  %1354 = vmatmul.bf16.gmra.mxu0 %v398
  %v1355 = vpop.f32.mrf.mxu0
  %v1356 = vadd.f32 %v1343, %v1355
  %v1357 = vpop.f32.mrf.mxu0
  %1358 = vdwg.mxu0
  %1359 = vmatpush.bf16.msra.mxu0 %v1184
  %1360 = vmatpush.bf16.msra.mxu0 %v1179
  %1361 = vmatpush.bf16.msra.mxu0 %v1174
  %1362 = vmatpush.bf16.msra.mxu0 %v1169
  %1363 = vmatpush.bf16.msra.mxu0 %v1164
  %1364 = vmatpush.bf16.msra.mxu0 %v1159
  %1365 = vmatpush.bf16.msra.mxu0 %v1154
  %1366 = vmatpush.bf16.msra.mxu0 %v1149
  %1367 = vmatmul.bf16.gmra.mxu0 %v890
  %v1368 = vpop.f32.mrf.mxu0
  %v1369 = vadd.f32 0.0, %v1368
  %v1370 = vpop.f32.mrf.mxu0
  %1371 = vdwg.mxu0
  %1372 = vmatpush.bf16.msra.mxu0 %v1224
  %1373 = vmatpush.bf16.msra.mxu0 %v1219
  %1374 = vmatpush.bf16.msra.mxu0 %v1214
  %1375 = vmatpush.bf16.msra.mxu0 %v1209
  %1376 = vmatpush.bf16.msra.mxu0 %v1204
  %1377 = vmatpush.bf16.msra.mxu0 %v1199
  %1378 = vmatpush.bf16.msra.mxu0 %v1194
  %1379 = vmatpush.bf16.msra.mxu0 %v1189
  %1380 = vmatmul.bf16.gmra.mxu0 %v398
  %v1381 = vpop.f32.mrf.mxu0
  %v1382 = vadd.f32 %v1369, %v1381
  %v1383 = vpop.f32.mrf.mxu0
  %1384 = vdwg.mxu0
  %1385 = vmatpush.bf16.msra.mxu0 %v1185
  %1386 = vmatpush.bf16.msra.mxu0 %v1180
  %1387 = vmatpush.bf16.msra.mxu0 %v1175
  %1388 = vmatpush.bf16.msra.mxu0 %v1170
  %1389 = vmatpush.bf16.msra.mxu0 %v1165
  %1390 = vmatpush.bf16.msra.mxu0 %v1160
  %1391 = vmatpush.bf16.msra.mxu0 %v1155
  %1392 = vmatpush.bf16.msra.mxu0 %v1150
  %1393 = vmatmul.bf16.gmra.mxu0 %v890
  %v1394 = vpop.f32.mrf.mxu0
  %v1395 = vadd.f32 0.0, %v1394
  %v1396 = vpop.f32.mrf.mxu0
  %1397 = vdwg.mxu0
  %1398 = vmatpush.bf16.msra.mxu0 %v1225
  %1399 = vmatpush.bf16.msra.mxu0 %v1220
  %1400 = vmatpush.bf16.msra.mxu0 %v1215
  %1401 = vmatpush.bf16.msra.mxu0 %v1210
  %1402 = vmatpush.bf16.msra.mxu0 %v1205
  %1403 = vmatpush.bf16.msra.mxu0 %v1200
  %1404 = vmatpush.bf16.msra.mxu0 %v1195
  %1405 = vmatpush.bf16.msra.mxu0 %v1190
  %1406 = vmatmul.bf16.gmra.mxu0 %v398
  %v1407 = vpop.f32.mrf.mxu0
  %v1408 = vadd.f32 %v1395, %v1407
  %v1409 = vpop.f32.mrf.mxu0
  %1410 = vdwg.mxu0
  %1411 = vmatpush.bf16.msra.mxu0 %v1186
  %1412 = vmatpush.bf16.msra.mxu0 %v1181
  %1413 = vmatpush.bf16.msra.mxu0 %v1176
  %1414 = vmatpush.bf16.msra.mxu0 %v1171
  %1415 = vmatpush.bf16.msra.mxu0 %v1166
  %1416 = vmatpush.bf16.msra.mxu0 %v1161
  %1417 = vmatpush.bf16.msra.mxu0 %v1156
  %1418 = vmatpush.bf16.msra.mxu0 %v1151
  %1419 = vmatmul.bf16.gmra.mxu0 %v890
  %v1420 = vpop.f32.mrf.mxu0
  %v1421 = vadd.f32 0.0, %v1420
  %v1422 = vpop.f32.mrf.mxu0
  %1423 = vdwg.mxu0
  %1424 = vmatpush.bf16.msra.mxu0 %v1226
  %1425 = vmatpush.bf16.msra.mxu0 %v1221
  %1426 = vmatpush.bf16.msra.mxu0 %v1216
  %1427 = vmatpush.bf16.msra.mxu0 %v1211
  %1428 = vmatpush.bf16.msra.mxu0 %v1206
  %1429 = vmatpush.bf16.msra.mxu0 %v1201
  %1430 = vmatpush.bf16.msra.mxu0 %v1196
  %1431 = vmatpush.bf16.msra.mxu0 %v1191
  %1432 = vmatmul.bf16.gmra.mxu0 %v398
  %v1433 = vpop.f32.mrf.mxu0
  %v1434 = vadd.f32 %v1421, %v1433
  %v1435 = vpop.f32.mrf.mxu0
  %1436 = vdwg.mxu0
  %v1437 = vadd.f32 %v1330, %v260
  %v1438 = vadd.f32 %v1356, %v261
  %v1439 = vadd.f32 %v1382, %v262
  %v1440 = vadd.f32 %v1408, %v263
  %v1441 = vxor.u32 %v1437, 2147483648
  %v1442 = vxor.u32 %v1438, 2147483648
  %v1443 = vxor.u32 %v1439, 2147483648
  %v1444 = vmul.f32 %v1441, 1.442695
  %v1445 = vpow.pop %v1444
  %v1446 = vmul.f32 %v1442, 1.442695
  %v1447 = vpow.pop %v1446
  %v1448 = vmul.f32 %v1443, 1.442695
  %v1449 = vpow.pop %v1448
  %v1450 = vadd.f32 %v1445, 1.0
  %v1451 = vadd.f32 %v1447, 1.0
  %v1452 = vadd.f32 %v1449, 1.0
  %v1453 = vrcp.pop %v1450
  %v1454 = vmul.f32 %v1450, %v1453
  %v1455 = vsub.f32 1.0, %v1454
  %v1456 = vmul.f32 %v1453, %v1455
  %v1457 = vadd.f32 %v1453, %v1456
  %vm1458 = vweird.f32 %v1450
  %vm1459 = vweird.f32 %v1453
  %vm1460 = vmor %vm1458, %vm1459
  %v1461 = vsel %vm1460, %v1453, %v1457
  %v1462 = vand.u32 2147483647, %v1450
  %vm1463 = vcmp.eq.f32.partialorder %v1462, 8.507059e+37
  %v1464 = vand.u32 %v1450, 2147483648
  %v1465 = vor.u32 1.1754944e-38, %v1464
  %v1466 = vsel %vm1463, %v1465, %v1461
  %v1467 = vmul.f32 1.0, %v1466
  %v1468 = vrcp.pop %v1451
  %v1469 = vmul.f32 %v1451, %v1468
  %v1470 = vsub.f32 1.0, %v1469
  %v1471 = vmul.f32 %v1468, %v1470
  %v1472 = vadd.f32 %v1468, %v1471
  %vm1473 = vweird.f32 %v1451
  %vm1474 = vweird.f32 %v1468
  %vm1475 = vmor %vm1473, %vm1474
  %v1476 = vsel %vm1475, %v1468, %v1472
  %v1477 = vand.u32 2147483647, %v1451
  %vm1478 = vcmp.eq.f32.partialorder %v1477, 8.507059e+37
  %v1479 = vand.u32 %v1451, 2147483648
  %v1480 = vor.u32 1.1754944e-38, %v1479
  %v1481 = vsel %vm1478, %v1480, %v1476
  %v1482 = vmul.f32 1.0, %v1481
  %v1483 = vrcp.pop %v1452
  %v1484 = vmul.f32 %v1452, %v1483
  %v1485 = vsub.f32 1.0, %v1484
  %v1486 = vmul.f32 %v1483, %v1485
  %v1487 = vadd.f32 %v1483, %v1486
  %vm1488 = vweird.f32 %v1452
  %vm1489 = vweird.f32 %v1483
  %vm1490 = vmor %vm1488, %vm1489
  %v1491 = vsel %vm1490, %v1483, %v1487
  %v1492 = vand.u32 2147483647, %v1452
  %vm1493 = vcmp.eq.f32.partialorder %v1492, 8.507059e+37
  %v1494 = vand.u32 %v1452, 2147483648
  %v1495 = vor.u32 1.1754944e-38, %v1494
  %v1496 = vsel %vm1493, %v1495, %v1491
  %v1497 = vmul.f32 1.0, %v1496
  %v1498 = vtanh.pop %v1440
  %v1499 = vmul.f32 %v1482, 0.0
  %v1500 = vmul.f32 %v1467, %v1498
  %v1501 = vadd.f32 %v1499, %v1500
  %v1502 = vtanh.pop %v1501
  %v1503 = vmul.f32 %v1497, %v1502
  %v1504 = vmul.f32 %v1503, 0.9
  %v1505 = vadd.f32 %v1504, 0.0
  %v1506 = vmul.f32 %v1501, 0.9
  %v1507 = vadd.f32 %v1506, 0.0
  %v1509 = vrot.slane %v395, 7
  %vm1510 = vcmask 1040384
  %v1511 = vsel %vm1510, %v1505, %v1509
  %v1513 = vlaneseq
  %vm1514 = vcmp.ge.s32.totalorder %v1513, 0
  %vm1515 = vcmp.lt.s32.totalorder %v1513, 256
  %vm1516 = vmand %vm1514, %vm1515
  %1517 = vst.msk [vmem:[#allocation2] ss:$8 sm:$0x3] %vm1516, %v1511
  %1518 = vst.msk [vmem:[#allocation2] ss:$8 sm:$0x0] %vm1516, %v1511
  %v1519 = vperm.slane %v372, %v80
  %vm1521 = vcmask 57344
  %1522 = vst.msk [vmem:[#allocation3] sm:$0x1] %vm1521, %v1519
  %1523 = vst [vmem:[#allocation1] sm:$0xff] %v1505
  %1524 = vst [vmem:[#allocation1 + $0x9] sm:$0xff] %v395
  %s1525 = scalar_lea.vmem [#allocation1], 1
  %v1526 = vld [vmem:[%s1525] ss:$9 sm:$0xff]
  %s1528 = scalar_lea.vmem [#allocation2], 6
  %1529 = vst.msk [vmem:[%s1528] ss:$8 sm:$0x3] %vm1516, %v1526
  %1530 = vst.msk [vmem:[%s1528] ss:$8 sm:$0x0] %vm1516, %v1526
  %v1531 = vperm.slane %v377, %v80
  %1533 = vst.msk [vmem:[#allocation3 + $0x6] sm:$0x1] %vm1521, %v1531
  %v1535 = vrot.slane %v1434, 1
  %v1536 = vperm.slane %v1434, 0
  %v1537 = vperm.slane %v1535, 0
  %v1540 = vadd.f32 %v77, %v1536
  %v1541 = vadd.f32 %v78, %v1537
  %v1542 = vtanh.pop %v1540
  %v1543 = vtanh.pop %v1541
  %v1544 = vmul.f32 %v1542, %v273
  %v1545 = vmul.f32 %v1543, %v273
  %v1546 = vsel %vm277, %v1544, 0.0
  %1547 = vadd.xlane.f32.xlu0 %v1546
  %v1548 = vpop.xlane.xlu0 %1547
  %v1549 = vsel %vm277, %v1545, 0.0
  %1550 = vadd.xlane.f32.xlu0 %v1549
  %v1551 = vpop.xlane.xlu0 %1550
  %v1552 = vadd.f32 %v1548, %v291
  %v1553 = vadd.f32 %v1551, %v298
  %1556 = vset.pattern.permute.xlu0 0
  %1557 = vperm.xlu0 %1556, %v1552
  %v1558 = vpop.permute.xlu0 %1557
  %1559 = vset.pattern.permute.xlu0 0
  %1560 = vperm.xlu0 %1559, %v1553
  %v1561 = vpop.permute.xlu0 %1560
  %v1562 = vperm.slane %v1558, %v80
  %v1563 = vperm.slane %v1561, %v80
  %v1564 = vsel %vm313, %v1563, %v1562
  %v1566 = vsel %vm316, %v1564, -inf
  %1567 = vmax.xlane.f32.xlu0 %v1566
  %v1568 = vpop.xlane.xlu0 %1567
  %v1570 = vperm.slane %v1568, 0
  %v1571 = vperm.slane %v1568, 1
  %v1574 = vsub.f32 %v1552, %v1570
  %v1575 = vsub.f32 %v1553, %v1571
  %v1576 = vmul.f32 %v1574, 1.442695
  %v1577 = vpow.pop %v1576
  %v1578 = vmul.f32 %v1575, 1.442695
  %v1579 = vpow.pop %v1578
  %1582 = vset.pattern.permute.xlu0 0
  %1583 = vperm.xlu0 %1582, %v1577
  %v1584 = vpop.permute.xlu0 %1583
  %1585 = vset.pattern.permute.xlu0 0
  %1586 = vperm.xlu0 %1585, %v1579
  %v1587 = vpop.permute.xlu0 %1586
  %v1588 = vperm.slane %v1584, %v80
  %v1589 = vperm.slane %v1587, %v80
  %v1590 = vsel %vm313, %v1589, %v1588
  %v1592 = vsel %vm316, %v1590, 0.0
  %1593 = vadd.xlane.f32.xlu0 %v1592
  %v1594 = vpop.xlane.xlu0 %1593
  %v1595 = vmax.f32 %v1594, 1e-30
  %v1596 = vrcp.pop %v1595
  %v1597 = vmul.f32 %v1595, %v1596
  %v1598 = vsub.f32 1.0, %v1597
  %v1599 = vmul.f32 %v1596, %v1598
  %v1600 = vadd.f32 %v1596, %v1599
  %vm1601 = vweird.f32 %v1595
  %vm1602 = vweird.f32 %v1596
  %vm1603 = vmor %vm1601, %vm1602
  %v1604 = vsel %vm1603, %v1596, %v1600
  %v1605 = vand.u32 2147483647, %v1595
  %vm1606 = vcmp.eq.f32.partialorder %v1605, 8.507059e+37
  %v1607 = vand.u32 %v1595, 2147483648
  %v1608 = vor.u32 1.1754944e-38, %v1607
  %v1609 = vsel %vm1606, %v1608, %v1604
  %v1610 = vmul.f32 1.0, %v1609
  %v1612 = vperm.slane %v1610, 0
  %v1613 = vperm.slane %v1610, 1
  %v1616 = vmul.f32 %v1577, %v1612
  %v1617 = vmul.f32 %v1579, %v1613
  %1619 = vset.pattern.permute.xlu0 0
  %1620 = vperm.xlu0 %1619, %v1616
  %v1621 = vpop.permute.xlu0 %1620
  %1624 = vset.pattern.permute.xlu0 0
  %1625 = vperm.xlu0 %1624, %v1617
  %v1626 = vpop.permute.xlu0 %1625
  %v1628 = vmul.f32 %v1621, %v32
  %v1629 = vmul.f32 %v1626, %v33
  %v1630 = vrot.slane %v1628, 4
  %v1631 = vadd.f32 %v1628, %v1630
  %v1632 = vrot.slane %v1631, 2
  %v1633 = vadd.f32 %v1631, %v1632
  %v1634 = vrot.slane %v1633, 1
  %v1635 = vadd.f32 %v1633, %v1634
  %v1636 = vrot.slane %v1629, 4
  %v1637 = vadd.f32 %v1629, %v1636
  %v1638 = vrot.slane %v1637, 2
  %v1639 = vadd.f32 %v1637, %v1638
  %v1640 = vrot.slane %v1639, 1
  %v1641 = vadd.f32 %v1639, %v1640
  %v1644 = vsel %vm313, %v1641, %v1635
  %v1646 = vpack.c.bf16 %v1644, %v1644
  %1647 = vmatpush.bf16.msra.mxu0 %v619
  %1648 = vmatpush.bf16.msra.mxu0 %v615
  %1649 = vmatpush.bf16.msra.mxu0 %v611
  %1650 = vmatpush.bf16.msra.mxu0 %v607
  %1651 = vmatpush.bf16.msra.mxu0 %v603
  %1652 = vmatpush.bf16.msra.mxu0 %v599
  %1653 = vmatpush.bf16.msra.mxu0 %v595
  %1654 = vmatpush.bf16.msra.mxu0 %v591
  %1655 = vmatmul.bf16.gmra.mxu0 %v1646
  %v1656 = vpop.f32.mrf.mxu0
  %v1657 = vadd.f32 0.0, %v1656
  %v1658 = vpop.f32.mrf.mxu0
  %1659 = vdwg.mxu0
  %1660 = vmatpush.bf16.msra.mxu0 %v651
  %1661 = vmatpush.bf16.msra.mxu0 %v647
  %1662 = vmatpush.bf16.msra.mxu0 %v643
  %1663 = vmatpush.bf16.msra.mxu0 %v639
  %1664 = vmatpush.bf16.msra.mxu0 %v635
  %1665 = vmatpush.bf16.msra.mxu0 %v631
  %1666 = vmatpush.bf16.msra.mxu0 %v627
  %1667 = vmatpush.bf16.msra.mxu0 %v623
  %1668 = vmatmul.bf16.gmra.mxu0 %v890
  %v1669 = vpop.f32.mrf.mxu0
  %v1670 = vadd.f32 %v1657, %v1669
  %v1671 = vpop.f32.mrf.mxu0
  %1672 = vdwg.mxu0
  %1673 = vmatpush.bf16.msra.mxu0 %v620
  %1674 = vmatpush.bf16.msra.mxu0 %v616
  %1675 = vmatpush.bf16.msra.mxu0 %v612
  %1676 = vmatpush.bf16.msra.mxu0 %v608
  %1677 = vmatpush.bf16.msra.mxu0 %v604
  %1678 = vmatpush.bf16.msra.mxu0 %v600
  %1679 = vmatpush.bf16.msra.mxu0 %v596
  %1680 = vmatpush.bf16.msra.mxu0 %v592
  %1681 = vmatmul.bf16.gmra.mxu0 %v1646
  %v1682 = vpop.f32.mrf.mxu0
  %v1683 = vadd.f32 0.0, %v1682
  %v1684 = vpop.f32.mrf.mxu0
  %1685 = vdwg.mxu0
  %1686 = vmatpush.bf16.msra.mxu0 %v652
  %1687 = vmatpush.bf16.msra.mxu0 %v648
  %1688 = vmatpush.bf16.msra.mxu0 %v644
  %1689 = vmatpush.bf16.msra.mxu0 %v640
  %1690 = vmatpush.bf16.msra.mxu0 %v636
  %1691 = vmatpush.bf16.msra.mxu0 %v632
  %1692 = vmatpush.bf16.msra.mxu0 %v628
  %1693 = vmatpush.bf16.msra.mxu0 %v624
  %1694 = vmatmul.bf16.gmra.mxu0 %v890
  %v1695 = vpop.f32.mrf.mxu0
  %v1696 = vadd.f32 %v1683, %v1695
  %v1697 = vpop.f32.mrf.mxu0
  %1698 = vdwg.mxu0
  %1699 = vmatpush.bf16.msra.mxu0 %v621
  %1700 = vmatpush.bf16.msra.mxu0 %v617
  %1701 = vmatpush.bf16.msra.mxu0 %v613
  %1702 = vmatpush.bf16.msra.mxu0 %v609
  %1703 = vmatpush.bf16.msra.mxu0 %v605
  %1704 = vmatpush.bf16.msra.mxu0 %v601
  %1705 = vmatpush.bf16.msra.mxu0 %v597
  %1706 = vmatpush.bf16.msra.mxu0 %v593
  %1707 = vmatmul.bf16.gmra.mxu0 %v1646
  %v1708 = vpop.f32.mrf.mxu0
  %v1709 = vadd.f32 0.0, %v1708
  %v1710 = vpop.f32.mrf.mxu0
  %1711 = vdwg.mxu0
  %1712 = vmatpush.bf16.msra.mxu0 %v653
  %1713 = vmatpush.bf16.msra.mxu0 %v649
  %1714 = vmatpush.bf16.msra.mxu0 %v645
  %1715 = vmatpush.bf16.msra.mxu0 %v641
  %1716 = vmatpush.bf16.msra.mxu0 %v637
  %1717 = vmatpush.bf16.msra.mxu0 %v633
  %1718 = vmatpush.bf16.msra.mxu0 %v629
  %1719 = vmatpush.bf16.msra.mxu0 %v625
  %1720 = vmatmul.bf16.gmra.mxu0 %v890
  %v1721 = vpop.f32.mrf.mxu0
  %v1722 = vadd.f32 %v1709, %v1721
  %v1723 = vpop.f32.mrf.mxu0
  %1724 = vdwg.mxu0
  %1725 = vmatpush.bf16.msra.mxu0 %v622
  %1726 = vmatpush.bf16.msra.mxu0 %v618
  %1727 = vmatpush.bf16.msra.mxu0 %v614
  %1728 = vmatpush.bf16.msra.mxu0 %v610
  %1729 = vmatpush.bf16.msra.mxu0 %v606
  %1730 = vmatpush.bf16.msra.mxu0 %v602
  %1731 = vmatpush.bf16.msra.mxu0 %v598
  %1732 = vmatpush.bf16.msra.mxu0 %v594
  %1733 = vmatmul.bf16.gmra.mxu0 %v1646
  %v1734 = vpop.f32.mrf.mxu0
  %v1735 = vadd.f32 0.0, %v1734
  %v1736 = vpop.f32.mrf.mxu0
  %1737 = vdwg.mxu0
  %1738 = vmatpush.bf16.msra.mxu0 %v654
  %1739 = vmatpush.bf16.msra.mxu0 %v650
  %1740 = vmatpush.bf16.msra.mxu0 %v646
  %1741 = vmatpush.bf16.msra.mxu0 %v642
  %1742 = vmatpush.bf16.msra.mxu0 %v638
  %1743 = vmatpush.bf16.msra.mxu0 %v634
  %1744 = vmatpush.bf16.msra.mxu0 %v630
  %1745 = vmatpush.bf16.msra.mxu0 %v626
  %1746 = vmatmul.bf16.gmra.mxu0 %v890
  %v1747 = vpop.f32.mrf.mxu0
  %v1748 = vadd.f32 %v1735, %v1747
  %v1749 = vpop.f32.mrf.mxu0
  %1750 = vdwg.mxu0
  %v1751 = vxor.u32 %v1670, 2147483648
  %v1752 = vxor.u32 %v1696, 2147483648
  %v1753 = vxor.u32 %v1722, 2147483648
  %v1754 = vmul.f32 %v1751, 1.442695
  %v1755 = vpow.pop %v1754
  %v1756 = vmul.f32 %v1752, 1.442695
  %v1757 = vpow.pop %v1756
  %v1758 = vmul.f32 %v1753, 1.442695
  %v1759 = vpow.pop %v1758
  %v1760 = vadd.f32 %v1755, 1.0
  %v1761 = vadd.f32 %v1757, 1.0
  %v1762 = vadd.f32 %v1759, 1.0
  %v1763 = vrcp.pop %v1760
  %v1764 = vmul.f32 %v1760, %v1763
  %v1765 = vsub.f32 1.0, %v1764
  %v1766 = vmul.f32 %v1763, %v1765
  %v1767 = vadd.f32 %v1763, %v1766
  %vm1768 = vweird.f32 %v1760
  %vm1769 = vweird.f32 %v1763
  %vm1770 = vmor %vm1768, %vm1769
  %v1771 = vsel %vm1770, %v1763, %v1767
  %v1772 = vand.u32 2147483647, %v1760
  %vm1773 = vcmp.eq.f32.partialorder %v1772, 8.507059e+37
  %v1774 = vand.u32 %v1760, 2147483648
  %v1775 = vor.u32 1.1754944e-38, %v1774
  %v1776 = vsel %vm1773, %v1775, %v1771
  %v1777 = vmul.f32 1.0, %v1776
  %v1778 = vrcp.pop %v1761
  %v1779 = vmul.f32 %v1761, %v1778
  %v1780 = vsub.f32 1.0, %v1779
  %v1781 = vmul.f32 %v1778, %v1780
  %v1782 = vadd.f32 %v1778, %v1781
  %vm1783 = vweird.f32 %v1761
  %vm1784 = vweird.f32 %v1778
  %vm1785 = vmor %vm1783, %vm1784
  %v1786 = vsel %vm1785, %v1778, %v1782
  %v1787 = vand.u32 2147483647, %v1761
  %vm1788 = vcmp.eq.f32.partialorder %v1787, 8.507059e+37
  %v1789 = vand.u32 %v1761, 2147483648
  %v1790 = vor.u32 1.1754944e-38, %v1789
  %v1791 = vsel %vm1788, %v1790, %v1786
  %v1792 = vmul.f32 1.0, %v1791
  %v1793 = vrcp.pop %v1762
  %v1794 = vmul.f32 %v1762, %v1793
  %v1795 = vsub.f32 1.0, %v1794
  %v1796 = vmul.f32 %v1793, %v1795
  %v1797 = vadd.f32 %v1793, %v1796
  %vm1798 = vweird.f32 %v1762
  %vm1799 = vweird.f32 %v1793
  %vm1800 = vmor %vm1798, %vm1799
  %v1801 = vsel %vm1800, %v1793, %v1797
  %v1802 = vand.u32 2147483647, %v1762
  %vm1803 = vcmp.eq.f32.partialorder %v1802, 8.507059e+37
  %v1804 = vand.u32 %v1762, 2147483648
  %v1805 = vor.u32 1.1754944e-38, %v1804
  %v1806 = vsel %vm1803, %v1805, %v1801
  %v1807 = vmul.f32 1.0, %v1806
  %v1808 = vtanh.pop %v1748
  %v1809 = vmul.f32 %v1792, %v889
  %v1810 = vmul.f32 %v1777, %v1808
  %v1811 = vadd.f32 %v1809, %v1810
  %v1812 = vtanh.pop %v1811
  %v1813 = vmul.f32 %v1807, %v1812
  %v1814 = vmul.f32 %v887, 0.1
  %v1815 = vmul.f32 %v1813, 0.9
  %v1816 = vadd.f32 %v1814, %v1815
  %v1817 = vmul.f32 %v889, 0.1
  %v1818 = vmul.f32 %v1811, 0.9
  %v1819 = vadd.f32 %v1817, %v1818
  %v1820 = vpack.c.bf16 %v1816, %v1816
  %v1821 = vpack.c.bf16 %v1505, %v1505
  %1822 = vmatpush.bf16.msra.mxu0 %v1182
  %1823 = vmatpush.bf16.msra.mxu0 %v1177
  %1824 = vmatpush.bf16.msra.mxu0 %v1172
  %1825 = vmatpush.bf16.msra.mxu0 %v1167
  %1826 = vmatpush.bf16.msra.mxu0 %v1162
  %1827 = vmatpush.bf16.msra.mxu0 %v1157
  %1828 = vmatpush.bf16.msra.mxu0 %v1152
  %1829 = vmatpush.bf16.msra.mxu0 %v1147
  %1830 = vmatmul.bf16.gmra.mxu0 %v1820
  %v1831 = vpop.f32.mrf.mxu0
  %v1832 = vadd.f32 0.0, %v1831
  %v1833 = vpop.f32.mrf.mxu0
  %1834 = vdwg.mxu0
  %1835 = vmatpush.bf16.msra.mxu0 %v1222
  %1836 = vmatpush.bf16.msra.mxu0 %v1217
  %1837 = vmatpush.bf16.msra.mxu0 %v1212
  %1838 = vmatpush.bf16.msra.mxu0 %v1207
  %1839 = vmatpush.bf16.msra.mxu0 %v1202
  %1840 = vmatpush.bf16.msra.mxu0 %v1197
  %1841 = vmatpush.bf16.msra.mxu0 %v1192
  %1842 = vmatpush.bf16.msra.mxu0 %v1187
  %1843 = vmatmul.bf16.gmra.mxu0 %v1821
  %v1844 = vpop.f32.mrf.mxu0
  %v1845 = vadd.f32 %v1832, %v1844
  %v1846 = vpop.f32.mrf.mxu0
  %1847 = vdwg.mxu0
  %1848 = vmatpush.bf16.msra.mxu0 %v1183
  %1849 = vmatpush.bf16.msra.mxu0 %v1178
  %1850 = vmatpush.bf16.msra.mxu0 %v1173
  %1851 = vmatpush.bf16.msra.mxu0 %v1168
  %1852 = vmatpush.bf16.msra.mxu0 %v1163
  %1853 = vmatpush.bf16.msra.mxu0 %v1158
  %1854 = vmatpush.bf16.msra.mxu0 %v1153
  %1855 = vmatpush.bf16.msra.mxu0 %v1148
  %1856 = vmatmul.bf16.gmra.mxu0 %v1820
  %v1857 = vpop.f32.mrf.mxu0
  %v1858 = vadd.f32 0.0, %v1857
  %v1859 = vpop.f32.mrf.mxu0
  %1860 = vdwg.mxu0
  %1861 = vmatpush.bf16.msra.mxu0 %v1223
  %1862 = vmatpush.bf16.msra.mxu0 %v1218
  %1863 = vmatpush.bf16.msra.mxu0 %v1213
  %1864 = vmatpush.bf16.msra.mxu0 %v1208
  %1865 = vmatpush.bf16.msra.mxu0 %v1203
  %1866 = vmatpush.bf16.msra.mxu0 %v1198
  %1867 = vmatpush.bf16.msra.mxu0 %v1193
  %1868 = vmatpush.bf16.msra.mxu0 %v1188
  %1869 = vmatmul.bf16.gmra.mxu0 %v1821
  %v1870 = vpop.f32.mrf.mxu0
  %v1871 = vadd.f32 %v1858, %v1870
  %v1872 = vpop.f32.mrf.mxu0
  %1873 = vdwg.mxu0
  %1874 = vmatpush.bf16.msra.mxu0 %v1184
  %1875 = vmatpush.bf16.msra.mxu0 %v1179
  %1876 = vmatpush.bf16.msra.mxu0 %v1174
  %1877 = vmatpush.bf16.msra.mxu0 %v1169
  %1878 = vmatpush.bf16.msra.mxu0 %v1164
  %1879 = vmatpush.bf16.msra.mxu0 %v1159
  %1880 = vmatpush.bf16.msra.mxu0 %v1154
  %1881 = vmatpush.bf16.msra.mxu0 %v1149
  %1882 = vmatmul.bf16.gmra.mxu0 %v1820
  %v1883 = vpop.f32.mrf.mxu0
  %v1884 = vadd.f32 0.0, %v1883
  %v1885 = vpop.f32.mrf.mxu0
  %1886 = vdwg.mxu0
  %1887 = vmatpush.bf16.msra.mxu0 %v1224
  %1888 = vmatpush.bf16.msra.mxu0 %v1219
  %1889 = vmatpush.bf16.msra.mxu0 %v1214
  %1890 = vmatpush.bf16.msra.mxu0 %v1209
  %1891 = vmatpush.bf16.msra.mxu0 %v1204
  %1892 = vmatpush.bf16.msra.mxu0 %v1199
  %1893 = vmatpush.bf16.msra.mxu0 %v1194
  %1894 = vmatpush.bf16.msra.mxu0 %v1189
  %1895 = vmatmul.bf16.gmra.mxu0 %v1821
  %v1896 = vpop.f32.mrf.mxu0
  %v1897 = vadd.f32 %v1884, %v1896
  %v1898 = vpop.f32.mrf.mxu0
  %1899 = vdwg.mxu0
  %1900 = vmatpush.bf16.msra.mxu0 %v1185
  %1901 = vmatpush.bf16.msra.mxu0 %v1180
  %1902 = vmatpush.bf16.msra.mxu0 %v1175
  %1903 = vmatpush.bf16.msra.mxu0 %v1170
  %1904 = vmatpush.bf16.msra.mxu0 %v1165
  %1905 = vmatpush.bf16.msra.mxu0 %v1160
  %1906 = vmatpush.bf16.msra.mxu0 %v1155
  %1907 = vmatpush.bf16.msra.mxu0 %v1150
  %1908 = vmatmul.bf16.gmra.mxu0 %v1820
  %v1909 = vpop.f32.mrf.mxu0
  %v1910 = vadd.f32 0.0, %v1909
  %v1911 = vpop.f32.mrf.mxu0
  %1912 = vdwg.mxu0
  %1913 = vmatpush.bf16.msra.mxu0 %v1225
  %1914 = vmatpush.bf16.msra.mxu0 %v1220
  %1915 = vmatpush.bf16.msra.mxu0 %v1215
  %1916 = vmatpush.bf16.msra.mxu0 %v1210
  %1917 = vmatpush.bf16.msra.mxu0 %v1205
  %1918 = vmatpush.bf16.msra.mxu0 %v1200
  %1919 = vmatpush.bf16.msra.mxu0 %v1195
  %1920 = vmatpush.bf16.msra.mxu0 %v1190
  %1921 = vmatmul.bf16.gmra.mxu0 %v1821
  %v1922 = vpop.f32.mrf.mxu0
  %v1923 = vadd.f32 %v1910, %v1922
  %v1924 = vpop.f32.mrf.mxu0
  %1925 = vdwg.mxu0
  %1926 = vmatpush.bf16.msra.mxu0 %v1186
  %1927 = vmatpush.bf16.msra.mxu0 %v1181
  %1928 = vmatpush.bf16.msra.mxu0 %v1176
  %1929 = vmatpush.bf16.msra.mxu0 %v1171
  %1930 = vmatpush.bf16.msra.mxu0 %v1166
  %1931 = vmatpush.bf16.msra.mxu0 %v1161
  %1932 = vmatpush.bf16.msra.mxu0 %v1156
  %1933 = vmatpush.bf16.msra.mxu0 %v1151
  %1934 = vmatmul.bf16.gmra.mxu0 %v1820
  %v1935 = vpop.f32.mrf.mxu0
  %v1936 = vadd.f32 0.0, %v1935
  %v1937 = vpop.f32.mrf.mxu0
  %1938 = vdwg.mxu0
  %1939 = vmatpush.bf16.msra.mxu0 %v1226
  %1940 = vmatpush.bf16.msra.mxu0 %v1221
  %1941 = vmatpush.bf16.msra.mxu0 %v1216
  %1942 = vmatpush.bf16.msra.mxu0 %v1211
  %1943 = vmatpush.bf16.msra.mxu0 %v1206
  %1944 = vmatpush.bf16.msra.mxu0 %v1201
  %1945 = vmatpush.bf16.msra.mxu0 %v1196
  %1946 = vmatpush.bf16.msra.mxu0 %v1191
  %1947 = vmatmul.bf16.gmra.mxu0 %v1821
  %v1948 = vpop.f32.mrf.mxu0
  %v1949 = vadd.f32 %v1936, %v1948
  %v1950 = vpop.f32.mrf.mxu0
  %1951 = vdwg.mxu0
  %v1952 = vadd.f32 %v1845, %v260
  %v1953 = vadd.f32 %v1871, %v261
  %v1954 = vadd.f32 %v1897, %v262
  %v1955 = vadd.f32 %v1923, %v263
  %v1956 = vxor.u32 %v1952, 2147483648
  %v1957 = vxor.u32 %v1953, 2147483648
  %v1958 = vxor.u32 %v1954, 2147483648
  %v1959 = vmul.f32 %v1956, 1.442695
  %v1960 = vpow.pop %v1959
  %v1961 = vmul.f32 %v1957, 1.442695
  %v1962 = vpow.pop %v1961
  %v1963 = vmul.f32 %v1958, 1.442695
  %v1964 = vpow.pop %v1963
  %v1965 = vadd.f32 %v1960, 1.0
  %v1966 = vadd.f32 %v1962, 1.0
  %v1967 = vadd.f32 %v1964, 1.0
  %v1968 = vrcp.pop %v1965
  %v1969 = vmul.f32 %v1965, %v1968
  %v1970 = vsub.f32 1.0, %v1969
  %v1971 = vmul.f32 %v1968, %v1970
  %v1972 = vadd.f32 %v1968, %v1971
  %vm1973 = vweird.f32 %v1965
  %vm1974 = vweird.f32 %v1968
  %vm1975 = vmor %vm1973, %vm1974
  %v1976 = vsel %vm1975, %v1968, %v1972
  %v1977 = vand.u32 2147483647, %v1965
  %vm1978 = vcmp.eq.f32.partialorder %v1977, 8.507059e+37
  %v1979 = vand.u32 %v1965, 2147483648
  %v1980 = vor.u32 1.1754944e-38, %v1979
  %v1981 = vsel %vm1978, %v1980, %v1976
  %v1982 = vmul.f32 1.0, %v1981
  %v1983 = vrcp.pop %v1966
  %v1984 = vmul.f32 %v1966, %v1983
  %v1985 = vsub.f32 1.0, %v1984
  %v1986 = vmul.f32 %v1983, %v1985
  %v1987 = vadd.f32 %v1983, %v1986
  %vm1988 = vweird.f32 %v1966
  %vm1989 = vweird.f32 %v1983
  %vm1990 = vmor %vm1988, %vm1989
  %v1991 = vsel %vm1990, %v1983, %v1987
  %v1992 = vand.u32 2147483647, %v1966
  %vm1993 = vcmp.eq.f32.partialorder %v1992, 8.507059e+37
  %v1994 = vand.u32 %v1966, 2147483648
  %v1995 = vor.u32 1.1754944e-38, %v1994
  %v1996 = vsel %vm1993, %v1995, %v1991
  %v1997 = vmul.f32 1.0, %v1996
  %v1998 = vrcp.pop %v1967
  %v1999 = vmul.f32 %v1967, %v1998
  %v2000 = vsub.f32 1.0, %v1999
  %v2001 = vmul.f32 %v1998, %v2000
  %v2002 = vadd.f32 %v1998, %v2001
  %vm2003 = vweird.f32 %v1967
  %vm2004 = vweird.f32 %v1998
  %vm2005 = vmor %vm2003, %vm2004
  %v2006 = vsel %vm2005, %v1998, %v2002
  %v2007 = vand.u32 2147483647, %v1967
  %vm2008 = vcmp.eq.f32.partialorder %v2007, 8.507059e+37
  %v2009 = vand.u32 %v1967, 2147483648
  %v2010 = vor.u32 1.1754944e-38, %v2009
  %v2011 = vsel %vm2008, %v2010, %v2006
  %v2012 = vmul.f32 1.0, %v2011
  %v2013 = vtanh.pop %v1955
  %v2014 = vmul.f32 %v1997, %v1507
  %v2015 = vmul.f32 %v1982, %v2013
  %v2016 = vadd.f32 %v2014, %v2015
  %v2017 = vtanh.pop %v2016
  %v2018 = vmul.f32 %v2012, %v2017
  %v2019 = vmul.f32 %v1505, 0.1
  %v2020 = vmul.f32 %v2018, 0.9
  %v2021 = vadd.f32 %v2019, %v2020
  %v2022 = vmul.f32 %v1507, 0.1
  %v2023 = vmul.f32 %v2016, 0.9
  %v2024 = vadd.f32 %v2022, %v2023
  %v2026 = vrot.slane %v1644, 7
  %v2027 = vsel %vm1510, %v2021, %v2026
  %s2029 = scalar_lea.vmem [#allocation2], 1
  %2030 = vst.msk [vmem:[%s2029] ss:$8 sm:$0x3] %vm1516, %v2027
  %2031 = vst.msk [vmem:[%s2029] ss:$8 sm:$0x0] %vm1516, %v2027
  %v2032 = vperm.slane %v1621, %v80
  %2034 = vst.msk [vmem:[#allocation3 + $0x1] sm:$0x1] %vm1521, %v2032
  %2035 = vst [vmem:[#allocation1] sm:$0xff] %v2021
  %2036 = vst [vmem:[#allocation1 + $0x9] sm:$0xff] %v1644
  %s2037 = scalar_lea.vmem [#allocation1], 1
  %v2038 = vld [vmem:[%s2037] ss:$9 sm:$0xff]
  %s2040 = scalar_lea.vmem [#allocation2], 7
  %2041 = vst.msk [vmem:[%s2040] ss:$8 sm:$0x3] %vm1516, %v2038
  %2042 = vst.msk [vmem:[%s2040] ss:$8 sm:$0x0] %vm1516, %v2038
  %v2043 = vperm.slane %v1626, %v80
  %2045 = vst.msk [vmem:[#allocation3 + $0x7] sm:$0x1] %vm1521, %v2043
  %v2047 = vrot.slane %v1949, 1
  %v2048 = vperm.slane %v1949, 0
  %v2049 = vperm.slane %v2047, 0
  %v2052 = vadd.f32 %v77, %v2048
  %v2053 = vadd.f32 %v78, %v2049
  %v2054 = vtanh.pop %v2052
  %v2055 = vtanh.pop %v2053
  %v2056 = vmul.f32 %v2054, %v273
  %v2057 = vmul.f32 %v2055, %v273
  %v2058 = vsel %vm277, %v2056, 0.0
  %2059 = vadd.xlane.f32.xlu0 %v2058
  %v2060 = vpop.xlane.xlu0 %2059
  %v2061 = vsel %vm277, %v2057, 0.0
  %2062 = vadd.xlane.f32.xlu0 %v2061
  %v2063 = vpop.xlane.xlu0 %2062
  %v2064 = vadd.f32 %v2060, %v291
  %v2065 = vadd.f32 %v2063, %v298
  %2068 = vset.pattern.permute.xlu0 0
  %2069 = vperm.xlu0 %2068, %v2064
  %v2070 = vpop.permute.xlu0 %2069
  %2071 = vset.pattern.permute.xlu0 0
  %2072 = vperm.xlu0 %2071, %v2065
  %v2073 = vpop.permute.xlu0 %2072
  %v2074 = vperm.slane %v2070, %v80
  %v2075 = vperm.slane %v2073, %v80
  %v2076 = vsel %vm313, %v2075, %v2074
  %v2078 = vsel %vm316, %v2076, -inf
  %2079 = vmax.xlane.f32.xlu0 %v2078
  %v2080 = vpop.xlane.xlu0 %2079
  %v2082 = vperm.slane %v2080, 0
  %v2083 = vperm.slane %v2080, 1
  %v2086 = vsub.f32 %v2064, %v2082
  %v2087 = vsub.f32 %v2065, %v2083
  %v2088 = vmul.f32 %v2086, 1.442695
  %v2089 = vpow.pop %v2088
  %v2090 = vmul.f32 %v2087, 1.442695
  %v2091 = vpow.pop %v2090
  %2094 = vset.pattern.permute.xlu0 0
  %2095 = vperm.xlu0 %2094, %v2089
  %v2096 = vpop.permute.xlu0 %2095
  %2097 = vset.pattern.permute.xlu0 0
  %2098 = vperm.xlu0 %2097, %v2091
  %v2099 = vpop.permute.xlu0 %2098
  %v2100 = vperm.slane %v2096, %v80
  %v2101 = vperm.slane %v2099, %v80
  %v2102 = vsel %vm313, %v2101, %v2100
  %v2104 = vsel %vm316, %v2102, 0.0
  %2105 = vadd.xlane.f32.xlu0 %v2104
  %v2106 = vpop.xlane.xlu0 %2105
  %v2107 = vmax.f32 %v2106, 1e-30
  %v2108 = vrcp.pop %v2107
  %v2109 = vmul.f32 %v2107, %v2108
  %v2110 = vsub.f32 1.0, %v2109
  %v2111 = vmul.f32 %v2108, %v2110
  %v2112 = vadd.f32 %v2108, %v2111
  %vm2113 = vweird.f32 %v2107
  %vm2114 = vweird.f32 %v2108
  %vm2115 = vmor %vm2113, %vm2114
  %v2116 = vsel %vm2115, %v2108, %v2112
  %v2117 = vand.u32 2147483647, %v2107
  %vm2118 = vcmp.eq.f32.partialorder %v2117, 8.507059e+37
  %v2119 = vand.u32 %v2107, 2147483648
  %v2120 = vor.u32 1.1754944e-38, %v2119
  %v2121 = vsel %vm2118, %v2120, %v2116
  %v2122 = vmul.f32 1.0, %v2121
  %v2124 = vperm.slane %v2122, 0
  %v2125 = vperm.slane %v2122, 1
  %v2128 = vmul.f32 %v2089, %v2124
  %v2129 = vmul.f32 %v2091, %v2125
  %2131 = vset.pattern.permute.xlu0 0
  %2132 = vperm.xlu0 %2131, %v2128
  %v2133 = vpop.permute.xlu0 %2132
  %2136 = vset.pattern.permute.xlu0 0
  %2137 = vperm.xlu0 %2136, %v2129
  %v2138 = vpop.permute.xlu0 %2137
  %v2140 = vmul.f32 %v2133, %v32
  %v2141 = vmul.f32 %v2138, %v33
  %v2142 = vrot.slane %v2140, 4
  %v2143 = vadd.f32 %v2140, %v2142
  %v2144 = vrot.slane %v2143, 2
  %v2145 = vadd.f32 %v2143, %v2144
  %v2146 = vrot.slane %v2145, 1
  %v2147 = vadd.f32 %v2145, %v2146
  %v2148 = vrot.slane %v2141, 4
  %v2149 = vadd.f32 %v2141, %v2148
  %v2150 = vrot.slane %v2149, 2
  %v2151 = vadd.f32 %v2149, %v2150
  %v2152 = vrot.slane %v2151, 1
  %v2153 = vadd.f32 %v2151, %v2152
  %v2156 = vsel %vm313, %v2153, %v2147
  %v2158 = vpack.c.bf16 %v2156, %v2156
  %2159 = vmatpush.bf16.msra.mxu0 %v619
  %2160 = vmatpush.bf16.msra.mxu0 %v615
  %2161 = vmatpush.bf16.msra.mxu0 %v611
  %2162 = vmatpush.bf16.msra.mxu0 %v607
  %2163 = vmatpush.bf16.msra.mxu0 %v603
  %2164 = vmatpush.bf16.msra.mxu0 %v599
  %2165 = vmatpush.bf16.msra.mxu0 %v595
  %2166 = vmatpush.bf16.msra.mxu0 %v591
  %2167 = vmatmul.bf16.gmra.mxu0 %v2158
  %v2168 = vpop.f32.mrf.mxu0
  %v2169 = vadd.f32 0.0, %v2168
  %v2170 = vpop.f32.mrf.mxu0
  %2171 = vdwg.mxu0
  %2172 = vmatpush.bf16.msra.mxu0 %v651
  %2173 = vmatpush.bf16.msra.mxu0 %v647
  %2174 = vmatpush.bf16.msra.mxu0 %v643
  %2175 = vmatpush.bf16.msra.mxu0 %v639
  %2176 = vmatpush.bf16.msra.mxu0 %v635
  %2177 = vmatpush.bf16.msra.mxu0 %v631
  %2178 = vmatpush.bf16.msra.mxu0 %v627
  %2179 = vmatpush.bf16.msra.mxu0 %v623
  %2180 = vmatmul.bf16.gmra.mxu0 %v1820
  %v2181 = vpop.f32.mrf.mxu0
  %v2182 = vadd.f32 %v2169, %v2181
  %v2183 = vpop.f32.mrf.mxu0
  %2184 = vdwg.mxu0
  %2185 = vmatpush.bf16.msra.mxu0 %v620
  %2186 = vmatpush.bf16.msra.mxu0 %v616
  %2187 = vmatpush.bf16.msra.mxu0 %v612
  %2188 = vmatpush.bf16.msra.mxu0 %v608
  %2189 = vmatpush.bf16.msra.mxu0 %v604
  %2190 = vmatpush.bf16.msra.mxu0 %v600
  %2191 = vmatpush.bf16.msra.mxu0 %v596
  %2192 = vmatpush.bf16.msra.mxu0 %v592
  %2193 = vmatmul.bf16.gmra.mxu0 %v2158
  %v2194 = vpop.f32.mrf.mxu0
  %v2195 = vadd.f32 0.0, %v2194
  %v2196 = vpop.f32.mrf.mxu0
  %2197 = vdwg.mxu0
  %2198 = vmatpush.bf16.msra.mxu0 %v652
  %2199 = vmatpush.bf16.msra.mxu0 %v648
  %2200 = vmatpush.bf16.msra.mxu0 %v644
  %2201 = vmatpush.bf16.msra.mxu0 %v640
  %2202 = vmatpush.bf16.msra.mxu0 %v636
  %2203 = vmatpush.bf16.msra.mxu0 %v632
  %2204 = vmatpush.bf16.msra.mxu0 %v628
  %2205 = vmatpush.bf16.msra.mxu0 %v624
  %2206 = vmatmul.bf16.gmra.mxu0 %v1820
  %v2207 = vpop.f32.mrf.mxu0
  %v2208 = vadd.f32 %v2195, %v2207
  %v2209 = vpop.f32.mrf.mxu0
  %2210 = vdwg.mxu0
  %2211 = vmatpush.bf16.msra.mxu0 %v621
  %2212 = vmatpush.bf16.msra.mxu0 %v617
  %2213 = vmatpush.bf16.msra.mxu0 %v613
  %2214 = vmatpush.bf16.msra.mxu0 %v609
  %2215 = vmatpush.bf16.msra.mxu0 %v605
  %2216 = vmatpush.bf16.msra.mxu0 %v601
  %2217 = vmatpush.bf16.msra.mxu0 %v597
  %2218 = vmatpush.bf16.msra.mxu0 %v593
  %2219 = vmatmul.bf16.gmra.mxu0 %v2158
  %v2220 = vpop.f32.mrf.mxu0
  %v2221 = vadd.f32 0.0, %v2220
  %v2222 = vpop.f32.mrf.mxu0
  %2223 = vdwg.mxu0
  %2224 = vmatpush.bf16.msra.mxu0 %v653
  %2225 = vmatpush.bf16.msra.mxu0 %v649
  %2226 = vmatpush.bf16.msra.mxu0 %v645
  %2227 = vmatpush.bf16.msra.mxu0 %v641
  %2228 = vmatpush.bf16.msra.mxu0 %v637
  %2229 = vmatpush.bf16.msra.mxu0 %v633
  %2230 = vmatpush.bf16.msra.mxu0 %v629
  %2231 = vmatpush.bf16.msra.mxu0 %v625
  %2232 = vmatmul.bf16.gmra.mxu0 %v1820
  %v2233 = vpop.f32.mrf.mxu0
  %v2234 = vadd.f32 %v2221, %v2233
  %v2235 = vpop.f32.mrf.mxu0
  %2236 = vdwg.mxu0
  %2237 = vmatpush.bf16.msra.mxu0 %v622
  %2238 = vmatpush.bf16.msra.mxu0 %v618
  %2239 = vmatpush.bf16.msra.mxu0 %v614
  %2240 = vmatpush.bf16.msra.mxu0 %v610
  %2241 = vmatpush.bf16.msra.mxu0 %v606
  %2242 = vmatpush.bf16.msra.mxu0 %v602
  %2243 = vmatpush.bf16.msra.mxu0 %v598
  %2244 = vmatpush.bf16.msra.mxu0 %v594
  %2245 = vmatmul.bf16.gmra.mxu0 %v2158
  %v2246 = vpop.f32.mrf.mxu0
  %v2247 = vadd.f32 0.0, %v2246
  %v2248 = vpop.f32.mrf.mxu0
  %2249 = vdwg.mxu0
  %2250 = vmatpush.bf16.msra.mxu0 %v654
  %2251 = vmatpush.bf16.msra.mxu0 %v650
  %2252 = vmatpush.bf16.msra.mxu0 %v646
  %2253 = vmatpush.bf16.msra.mxu0 %v642
  %2254 = vmatpush.bf16.msra.mxu0 %v638
  %2255 = vmatpush.bf16.msra.mxu0 %v634
  %2256 = vmatpush.bf16.msra.mxu0 %v630
  %2257 = vmatpush.bf16.msra.mxu0 %v626
  %2258 = vmatmul.bf16.gmra.mxu0 %v1820
  %v2259 = vpop.f32.mrf.mxu0
  %v2260 = vadd.f32 %v2247, %v2259
  %v2261 = vpop.f32.mrf.mxu0
  %2262 = vdwg.mxu0
  %v2263 = vxor.u32 %v2182, 2147483648
  %v2264 = vxor.u32 %v2208, 2147483648
  %v2265 = vxor.u32 %v2234, 2147483648
  %v2266 = vmul.f32 %v2263, 1.442695
  %v2267 = vpow.pop %v2266
  %v2268 = vmul.f32 %v2264, 1.442695
  %v2269 = vpow.pop %v2268
  %v2270 = vmul.f32 %v2265, 1.442695
  %v2271 = vpow.pop %v2270
  %v2272 = vadd.f32 %v2267, 1.0
  %v2273 = vadd.f32 %v2269, 1.0
  %v2274 = vadd.f32 %v2271, 1.0
  %v2275 = vrcp.pop %v2272
  %v2276 = vmul.f32 %v2272, %v2275
  %v2277 = vsub.f32 1.0, %v2276
  %v2278 = vmul.f32 %v2275, %v2277
  %v2279 = vadd.f32 %v2275, %v2278
  %vm2280 = vweird.f32 %v2272
  %vm2281 = vweird.f32 %v2275
  %vm2282 = vmor %vm2280, %vm2281
  %v2283 = vsel %vm2282, %v2275, %v2279
  %v2284 = vand.u32 2147483647, %v2272
  %vm2285 = vcmp.eq.f32.partialorder %v2284, 8.507059e+37
  %v2286 = vand.u32 %v2272, 2147483648
  %v2287 = vor.u32 1.1754944e-38, %v2286
  %v2288 = vsel %vm2285, %v2287, %v2283
  %v2289 = vmul.f32 1.0, %v2288
  %v2290 = vrcp.pop %v2273
  %v2291 = vmul.f32 %v2273, %v2290
  %v2292 = vsub.f32 1.0, %v2291
  %v2293 = vmul.f32 %v2290, %v2292
  %v2294 = vadd.f32 %v2290, %v2293
  %vm2295 = vweird.f32 %v2273
  %vm2296 = vweird.f32 %v2290
  %vm2297 = vmor %vm2295, %vm2296
  %v2298 = vsel %vm2297, %v2290, %v2294
  %v2299 = vand.u32 2147483647, %v2273
  %vm2300 = vcmp.eq.f32.partialorder %v2299, 8.507059e+37
  %v2301 = vand.u32 %v2273, 2147483648
  %v2302 = vor.u32 1.1754944e-38, %v2301
  %v2303 = vsel %vm2300, %v2302, %v2298
  %v2304 = vmul.f32 1.0, %v2303
  %v2305 = vrcp.pop %v2274
  %v2306 = vmul.f32 %v2274, %v2305
  %v2307 = vsub.f32 1.0, %v2306
  %v2308 = vmul.f32 %v2305, %v2307
  %v2309 = vadd.f32 %v2305, %v2308
  %vm2310 = vweird.f32 %v2274
  %vm2311 = vweird.f32 %v2305
  %vm2312 = vmor %vm2310, %vm2311
  %v2313 = vsel %vm2312, %v2305, %v2309
  %v2314 = vand.u32 2147483647, %v2274
  %vm2315 = vcmp.eq.f32.partialorder %v2314, 8.507059e+37
  %v2316 = vand.u32 %v2274, 2147483648
  %v2317 = vor.u32 1.1754944e-38, %v2316
  %v2318 = vsel %vm2315, %v2317, %v2313
  %v2319 = vmul.f32 1.0, %v2318
  %v2320 = vtanh.pop %v2260
  %v2321 = vmul.f32 %v2304, %v1819
  %v2322 = vmul.f32 %v2289, %v2320
  %v2323 = vadd.f32 %v2321, %v2322
  %v2324 = vtanh.pop %v2323
  %v2325 = vmul.f32 %v2319, %v2324
  %v2326 = vmul.f32 %v1816, 0.1
  %v2327 = vmul.f32 %v2325, 0.9
  %v2328 = vadd.f32 %v2326, %v2327
  %v2329 = vmul.f32 %v1819, 0.1
  %v2330 = vmul.f32 %v2323, 0.9
  %v2331 = vadd.f32 %v2329, %v2330
  %v2332 = vpack.c.bf16 %v2328, %v2328
  %v2333 = vpack.c.bf16 %v2021, %v2021
  %2334 = vmatpush.bf16.msra.mxu0 %v1182
  %2335 = vmatpush.bf16.msra.mxu0 %v1177
  %2336 = vmatpush.bf16.msra.mxu0 %v1172
  %2337 = vmatpush.bf16.msra.mxu0 %v1167
  %2338 = vmatpush.bf16.msra.mxu0 %v1162
  %2339 = vmatpush.bf16.msra.mxu0 %v1157
  %2340 = vmatpush.bf16.msra.mxu0 %v1152
  %2341 = vmatpush.bf16.msra.mxu0 %v1147
  %2342 = vmatmul.bf16.gmra.mxu0 %v2332
  %v2343 = vpop.f32.mrf.mxu0
  %v2344 = vadd.f32 0.0, %v2343
  %v2345 = vpop.f32.mrf.mxu0
  %2346 = vdwg.mxu0
  %2347 = vmatpush.bf16.msra.mxu0 %v1222
  %2348 = vmatpush.bf16.msra.mxu0 %v1217
  %2349 = vmatpush.bf16.msra.mxu0 %v1212
  %2350 = vmatpush.bf16.msra.mxu0 %v1207
  %2351 = vmatpush.bf16.msra.mxu0 %v1202
  %2352 = vmatpush.bf16.msra.mxu0 %v1197
  %2353 = vmatpush.bf16.msra.mxu0 %v1192
  %2354 = vmatpush.bf16.msra.mxu0 %v1187
  %2355 = vmatmul.bf16.gmra.mxu0 %v2333
  %v2356 = vpop.f32.mrf.mxu0
  %v2357 = vadd.f32 %v2344, %v2356
  %v2358 = vpop.f32.mrf.mxu0
  %2359 = vdwg.mxu0
  %2360 = vmatpush.bf16.msra.mxu0 %v1183
  %2361 = vmatpush.bf16.msra.mxu0 %v1178
  %2362 = vmatpush.bf16.msra.mxu0 %v1173
  %2363 = vmatpush.bf16.msra.mxu0 %v1168
  %2364 = vmatpush.bf16.msra.mxu0 %v1163
  %2365 = vmatpush.bf16.msra.mxu0 %v1158
  %2366 = vmatpush.bf16.msra.mxu0 %v1153
  %2367 = vmatpush.bf16.msra.mxu0 %v1148
  %2368 = vmatmul.bf16.gmra.mxu0 %v2332
  %v2369 = vpop.f32.mrf.mxu0
  %v2370 = vadd.f32 0.0, %v2369
  %v2371 = vpop.f32.mrf.mxu0
  %2372 = vdwg.mxu0
  %2373 = vmatpush.bf16.msra.mxu0 %v1223
  %2374 = vmatpush.bf16.msra.mxu0 %v1218
  %2375 = vmatpush.bf16.msra.mxu0 %v1213
  %2376 = vmatpush.bf16.msra.mxu0 %v1208
  %2377 = vmatpush.bf16.msra.mxu0 %v1203
  %2378 = vmatpush.bf16.msra.mxu0 %v1198
  %2379 = vmatpush.bf16.msra.mxu0 %v1193
  %2380 = vmatpush.bf16.msra.mxu0 %v1188
  %2381 = vmatmul.bf16.gmra.mxu0 %v2333
  %v2382 = vpop.f32.mrf.mxu0
  %v2383 = vadd.f32 %v2370, %v2382
  %v2384 = vpop.f32.mrf.mxu0
  %2385 = vdwg.mxu0
  %2386 = vmatpush.bf16.msra.mxu0 %v1184
  %2387 = vmatpush.bf16.msra.mxu0 %v1179
  %2388 = vmatpush.bf16.msra.mxu0 %v1174
  %2389 = vmatpush.bf16.msra.mxu0 %v1169
  %2390 = vmatpush.bf16.msra.mxu0 %v1164
  %2391 = vmatpush.bf16.msra.mxu0 %v1159
  %2392 = vmatpush.bf16.msra.mxu0 %v1154
  %2393 = vmatpush.bf16.msra.mxu0 %v1149
  %2394 = vmatmul.bf16.gmra.mxu0 %v2332
  %v2395 = vpop.f32.mrf.mxu0
  %v2396 = vadd.f32 0.0, %v2395
  %v2397 = vpop.f32.mrf.mxu0
  %2398 = vdwg.mxu0
  %2399 = vmatpush.bf16.msra.mxu0 %v1224
  %2400 = vmatpush.bf16.msra.mxu0 %v1219
  %2401 = vmatpush.bf16.msra.mxu0 %v1214
  %2402 = vmatpush.bf16.msra.mxu0 %v1209
  %2403 = vmatpush.bf16.msra.mxu0 %v1204
  %2404 = vmatpush.bf16.msra.mxu0 %v1199
  %2405 = vmatpush.bf16.msra.mxu0 %v1194
  %2406 = vmatpush.bf16.msra.mxu0 %v1189
  %2407 = vmatmul.bf16.gmra.mxu0 %v2333
  %v2408 = vpop.f32.mrf.mxu0
  %v2409 = vadd.f32 %v2396, %v2408
  %v2410 = vpop.f32.mrf.mxu0
  %2411 = vdwg.mxu0
  %2412 = vmatpush.bf16.msra.mxu0 %v1185
  %2413 = vmatpush.bf16.msra.mxu0 %v1180
  %2414 = vmatpush.bf16.msra.mxu0 %v1175
  %2415 = vmatpush.bf16.msra.mxu0 %v1170
  %2416 = vmatpush.bf16.msra.mxu0 %v1165
  %2417 = vmatpush.bf16.msra.mxu0 %v1160
  %2418 = vmatpush.bf16.msra.mxu0 %v1155
  %2419 = vmatpush.bf16.msra.mxu0 %v1150
  %2420 = vmatmul.bf16.gmra.mxu0 %v2332
  %v2421 = vpop.f32.mrf.mxu0
  %v2422 = vadd.f32 0.0, %v2421
  %v2423 = vpop.f32.mrf.mxu0
  %2424 = vdwg.mxu0
  %2425 = vmatpush.bf16.msra.mxu0 %v1225
  %2426 = vmatpush.bf16.msra.mxu0 %v1220
  %2427 = vmatpush.bf16.msra.mxu0 %v1215
  %2428 = vmatpush.bf16.msra.mxu0 %v1210
  %2429 = vmatpush.bf16.msra.mxu0 %v1205
  %2430 = vmatpush.bf16.msra.mxu0 %v1200
  %2431 = vmatpush.bf16.msra.mxu0 %v1195
  %2432 = vmatpush.bf16.msra.mxu0 %v1190
  %2433 = vmatmul.bf16.gmra.mxu0 %v2333
  %v2434 = vpop.f32.mrf.mxu0
  %v2435 = vadd.f32 %v2422, %v2434
  %v2436 = vpop.f32.mrf.mxu0
  %2437 = vdwg.mxu0
  %2438 = vmatpush.bf16.msra.mxu0 %v1186
  %2439 = vmatpush.bf16.msra.mxu0 %v1181
  %2440 = vmatpush.bf16.msra.mxu0 %v1176
  %2441 = vmatpush.bf16.msra.mxu0 %v1171
  %2442 = vmatpush.bf16.msra.mxu0 %v1166
  %2443 = vmatpush.bf16.msra.mxu0 %v1161
  %2444 = vmatpush.bf16.msra.mxu0 %v1156
  %2445 = vmatpush.bf16.msra.mxu0 %v1151
  %2446 = vmatmul.bf16.gmra.mxu0 %v2332
  %v2447 = vpop.f32.mrf.mxu0
  %v2448 = vadd.f32 0.0, %v2447
  %v2449 = vpop.f32.mrf.mxu0
  %2450 = vdwg.mxu0
  %2451 = vmatpush.bf16.msra.mxu0 %v1226
  %2452 = vmatpush.bf16.msra.mxu0 %v1221
  %2453 = vmatpush.bf16.msra.mxu0 %v1216
  %2454 = vmatpush.bf16.msra.mxu0 %v1211
  %2455 = vmatpush.bf16.msra.mxu0 %v1206
  %2456 = vmatpush.bf16.msra.mxu0 %v1201
  %2457 = vmatpush.bf16.msra.mxu0 %v1196
  %2458 = vmatpush.bf16.msra.mxu0 %v1191
  %2459 = vmatmul.bf16.gmra.mxu0 %v2333
  %v2460 = vpop.f32.mrf.mxu0
  %v2461 = vadd.f32 %v2448, %v2460
  %v2462 = vpop.f32.mrf.mxu0
  %2463 = vdwg.mxu0
  %v2464 = vadd.f32 %v2357, %v260
  %v2465 = vadd.f32 %v2383, %v261
  %v2466 = vadd.f32 %v2409, %v262
  %v2467 = vadd.f32 %v2435, %v263
  %v2468 = vxor.u32 %v2464, 2147483648
  %v2469 = vxor.u32 %v2465, 2147483648
  %v2470 = vxor.u32 %v2466, 2147483648
  %v2471 = vmul.f32 %v2468, 1.442695
  %v2472 = vpow.pop %v2471
  %v2473 = vmul.f32 %v2469, 1.442695
  %v2474 = vpow.pop %v2473
  %v2475 = vmul.f32 %v2470, 1.442695
  %v2476 = vpow.pop %v2475
  %v2477 = vadd.f32 %v2472, 1.0
  %v2478 = vadd.f32 %v2474, 1.0
  %v2479 = vadd.f32 %v2476, 1.0
  %v2480 = vrcp.pop %v2477
  %v2481 = vmul.f32 %v2477, %v2480
  %v2482 = vsub.f32 1.0, %v2481
  %v2483 = vmul.f32 %v2480, %v2482
  %v2484 = vadd.f32 %v2480, %v2483
  %vm2485 = vweird.f32 %v2477
  %vm2486 = vweird.f32 %v2480
  %vm2487 = vmor %vm2485, %vm2486
  %v2488 = vsel %vm2487, %v2480, %v2484
  %v2489 = vand.u32 2147483647, %v2477
  %vm2490 = vcmp.eq.f32.partialorder %v2489, 8.507059e+37
  %v2491 = vand.u32 %v2477, 2147483648
  %v2492 = vor.u32 1.1754944e-38, %v2491
  %v2493 = vsel %vm2490, %v2492, %v2488
  %v2494 = vmul.f32 1.0, %v2493
  %v2495 = vrcp.pop %v2478
  %v2496 = vmul.f32 %v2478, %v2495
  %v2497 = vsub.f32 1.0, %v2496
  %v2498 = vmul.f32 %v2495, %v2497
  %v2499 = vadd.f32 %v2495, %v2498
  %vm2500 = vweird.f32 %v2478
  %vm2501 = vweird.f32 %v2495
  %vm2502 = vmor %vm2500, %vm2501
  %v2503 = vsel %vm2502, %v2495, %v2499
  %v2504 = vand.u32 2147483647, %v2478
  %vm2505 = vcmp.eq.f32.partialorder %v2504, 8.507059e+37
  %v2506 = vand.u32 %v2478, 2147483648
  %v2507 = vor.u32 1.1754944e-38, %v2506
  %v2508 = vsel %vm2505, %v2507, %v2503
  %v2509 = vmul.f32 1.0, %v2508
  %v2510 = vrcp.pop %v2479
  %v2511 = vmul.f32 %v2479, %v2510
  %v2512 = vsub.f32 1.0, %v2511
  %v2513 = vmul.f32 %v2510, %v2512
  %v2514 = vadd.f32 %v2510, %v2513
  %vm2515 = vweird.f32 %v2479
  %vm2516 = vweird.f32 %v2510
  %vm2517 = vmor %vm2515, %vm2516
  %v2518 = vsel %vm2517, %v2510, %v2514
  %v2519 = vand.u32 2147483647, %v2479
  %vm2520 = vcmp.eq.f32.partialorder %v2519, 8.507059e+37
  %v2521 = vand.u32 %v2479, 2147483648
  %v2522 = vor.u32 1.1754944e-38, %v2521
  %v2523 = vsel %vm2520, %v2522, %v2518
  %v2524 = vmul.f32 1.0, %v2523
  %v2525 = vtanh.pop %v2467
  %v2526 = vmul.f32 %v2509, %v2024
  %v2527 = vmul.f32 %v2494, %v2525
  %v2528 = vadd.f32 %v2526, %v2527
  %v2529 = vtanh.pop %v2528
  %v2530 = vmul.f32 %v2524, %v2529
  %v2531 = vmul.f32 %v2021, 0.1
  %v2532 = vmul.f32 %v2530, 0.9
  %v2533 = vadd.f32 %v2531, %v2532
  %v2534 = vmul.f32 %v2024, 0.1
  %v2535 = vmul.f32 %v2528, 0.9
  %v2536 = vadd.f32 %v2534, %v2535
  %v2538 = vrot.slane %v2156, 7
  %v2539 = vsel %vm1510, %v2533, %v2538
  %s2541 = scalar_lea.vmem [#allocation2], 2
  %2542 = vst.msk [vmem:[%s2541] ss:$8 sm:$0x3] %vm1516, %v2539
  %2543 = vst.msk [vmem:[%s2541] ss:$8 sm:$0x0] %vm1516, %v2539
  %v2544 = vperm.slane %v2133, %v80
  %2546 = vst.msk [vmem:[#allocation3 + $0x2] sm:$0x1] %vm1521, %v2544
  %2547 = vst [vmem:[#allocation1] sm:$0xff] %v2533
  %2548 = vst [vmem:[#allocation1 + $0x9] sm:$0xff] %v2156
  %s2549 = scalar_lea.vmem [#allocation1], 1
  %v2550 = vld [vmem:[%s2549] ss:$9 sm:$0xff]
  %s2552 = scalar_lea.vmem [#allocation2], 16
  %2553 = vst.msk [vmem:[%s2552] ss:$8 sm:$0x3] %vm1516, %v2550
  %2554 = vst.msk [vmem:[%s2552] ss:$8 sm:$0x0] %vm1516, %v2550
  %v2555 = vperm.slane %v2138, %v80
  %2557 = vst.msk [vmem:[#allocation3 + $0x8] sm:$0x1] %vm1521, %v2555
  %v2559 = vrot.slane %v2461, 1
  %v2560 = vperm.slane %v2461, 0
  %v2561 = vperm.slane %v2559, 0
  %v2564 = vadd.f32 %v77, %v2560
  %v2565 = vadd.f32 %v78, %v2561
  %v2566 = vtanh.pop %v2564
  %v2567 = vtanh.pop %v2565
  %v2568 = vmul.f32 %v2566, %v273
  %v2569 = vmul.f32 %v2567, %v273
  %v2570 = vsel %vm277, %v2568, 0.0
  %2571 = vadd.xlane.f32.xlu0 %v2570
  %v2572 = vpop.xlane.xlu0 %2571
  %v2573 = vsel %vm277, %v2569, 0.0
  %2574 = vadd.xlane.f32.xlu0 %v2573
  %v2575 = vpop.xlane.xlu0 %2574
  %v2576 = vadd.f32 %v2572, %v291
  %v2577 = vadd.f32 %v2575, %v298
  %2580 = vset.pattern.permute.xlu0 0
  %2581 = vperm.xlu0 %2580, %v2576
  %v2582 = vpop.permute.xlu0 %2581
  %2583 = vset.pattern.permute.xlu0 0
  %2584 = vperm.xlu0 %2583, %v2577
  %v2585 = vpop.permute.xlu0 %2584
  %v2586 = vperm.slane %v2582, %v80
  %v2587 = vperm.slane %v2585, %v80
  %v2588 = vsel %vm313, %v2587, %v2586
  %v2590 = vsel %vm316, %v2588, -inf
  %2591 = vmax.xlane.f32.xlu0 %v2590
  %v2592 = vpop.xlane.xlu0 %2591
  %v2594 = vperm.slane %v2592, 0
  %v2595 = vperm.slane %v2592, 1
  %v2598 = vsub.f32 %v2576, %v2594
  %v2599 = vsub.f32 %v2577, %v2595
  %v2600 = vmul.f32 %v2598, 1.442695
  %v2601 = vpow.pop %v2600
  %v2602 = vmul.f32 %v2599, 1.442695
  %v2603 = vpow.pop %v2602
  %2606 = vset.pattern.permute.xlu0 0
  %2607 = vperm.xlu0 %2606, %v2601
  %v2608 = vpop.permute.xlu0 %2607
  %2609 = vset.pattern.permute.xlu0 0
  %2610 = vperm.xlu0 %2609, %v2603
  %v2611 = vpop.permute.xlu0 %2610
  %v2612 = vperm.slane %v2608, %v80
  %v2613 = vperm.slane %v2611, %v80
  %v2614 = vsel %vm313, %v2613, %v2612
  %v2616 = vsel %vm316, %v2614, 0.0
  %2617 = vadd.xlane.f32.xlu0 %v2616
  %v2618 = vpop.xlane.xlu0 %2617
  %v2619 = vmax.f32 %v2618, 1e-30
  %v2620 = vrcp.pop %v2619
  %v2621 = vmul.f32 %v2619, %v2620
  %v2622 = vsub.f32 1.0, %v2621
  %v2623 = vmul.f32 %v2620, %v2622
  %v2624 = vadd.f32 %v2620, %v2623
  %vm2625 = vweird.f32 %v2619
  %vm2626 = vweird.f32 %v2620
  %vm2627 = vmor %vm2625, %vm2626
  %v2628 = vsel %vm2627, %v2620, %v2624
  %v2629 = vand.u32 2147483647, %v2619
  %vm2630 = vcmp.eq.f32.partialorder %v2629, 8.507059e+37
  %v2631 = vand.u32 %v2619, 2147483648
  %v2632 = vor.u32 1.1754944e-38, %v2631
  %v2633 = vsel %vm2630, %v2632, %v2628
  %v2634 = vmul.f32 1.0, %v2633
  %v2636 = vperm.slane %v2634, 0
  %v2637 = vperm.slane %v2634, 1
  %v2640 = vmul.f32 %v2601, %v2636
  %v2641 = vmul.f32 %v2603, %v2637
  %2643 = vset.pattern.permute.xlu0 0
  %2644 = vperm.xlu0 %2643, %v2640
  %v2645 = vpop.permute.xlu0 %2644
  %2648 = vset.pattern.permute.xlu0 0
  %2649 = vperm.xlu0 %2648, %v2641
  %v2650 = vpop.permute.xlu0 %2649
  %v2652 = vmul.f32 %v2645, %v32
  %v2653 = vmul.f32 %v2650, %v33
  %v2654 = vrot.slane %v2652, 4
  %v2655 = vadd.f32 %v2652, %v2654
  %v2656 = vrot.slane %v2655, 2
  %v2657 = vadd.f32 %v2655, %v2656
  %v2658 = vrot.slane %v2657, 1
  %v2659 = vadd.f32 %v2657, %v2658
  %v2660 = vrot.slane %v2653, 4
  %v2661 = vadd.f32 %v2653, %v2660
  %v2662 = vrot.slane %v2661, 2
  %v2663 = vadd.f32 %v2661, %v2662
  %v2664 = vrot.slane %v2663, 1
  %v2665 = vadd.f32 %v2663, %v2664
  %v2668 = vsel %vm313, %v2665, %v2659
  %v2670 = vpack.c.bf16 %v2668, %v2668
  %2671 = vmatpush.bf16.msra.mxu0 %v619
  %2672 = vmatpush.bf16.msra.mxu0 %v615
  %2673 = vmatpush.bf16.msra.mxu0 %v611
  %2674 = vmatpush.bf16.msra.mxu0 %v607
  %2675 = vmatpush.bf16.msra.mxu0 %v603
  %2676 = vmatpush.bf16.msra.mxu0 %v599
  %2677 = vmatpush.bf16.msra.mxu0 %v595
  %2678 = vmatpush.bf16.msra.mxu0 %v591
  %2679 = vmatmul.bf16.gmra.mxu0 %v2670
  %v2680 = vpop.f32.mrf.mxu0
  %v2681 = vadd.f32 0.0, %v2680
  %v2682 = vpop.f32.mrf.mxu0
  %2683 = vdwg.mxu0
  %2684 = vmatpush.bf16.msra.mxu0 %v651
  %2685 = vmatpush.bf16.msra.mxu0 %v647
  %2686 = vmatpush.bf16.msra.mxu0 %v643
  %2687 = vmatpush.bf16.msra.mxu0 %v639
  %2688 = vmatpush.bf16.msra.mxu0 %v635
  %2689 = vmatpush.bf16.msra.mxu0 %v631
  %2690 = vmatpush.bf16.msra.mxu0 %v627
  %2691 = vmatpush.bf16.msra.mxu0 %v623
  %2692 = vmatmul.bf16.gmra.mxu0 %v2332
  %v2693 = vpop.f32.mrf.mxu0
  %v2694 = vadd.f32 %v2681, %v2693
  %v2695 = vpop.f32.mrf.mxu0
  %2696 = vdwg.mxu0
  %2697 = vmatpush.bf16.msra.mxu0 %v620
  %2698 = vmatpush.bf16.msra.mxu0 %v616
  %2699 = vmatpush.bf16.msra.mxu0 %v612
  %2700 = vmatpush.bf16.msra.mxu0 %v608
  %2701 = vmatpush.bf16.msra.mxu0 %v604
  %2702 = vmatpush.bf16.msra.mxu0 %v600
  %2703 = vmatpush.bf16.msra.mxu0 %v596
  %2704 = vmatpush.bf16.msra.mxu0 %v592
  %2705 = vmatmul.bf16.gmra.mxu0 %v2670
  %v2706 = vpop.f32.mrf.mxu0
  %v2707 = vadd.f32 0.0, %v2706
  %v2708 = vpop.f32.mrf.mxu0
  %2709 = vdwg.mxu0
  %2710 = vmatpush.bf16.msra.mxu0 %v652
  %2711 = vmatpush.bf16.msra.mxu0 %v648
  %2712 = vmatpush.bf16.msra.mxu0 %v644
  %2713 = vmatpush.bf16.msra.mxu0 %v640
  %2714 = vmatpush.bf16.msra.mxu0 %v636
  %2715 = vmatpush.bf16.msra.mxu0 %v632
  %2716 = vmatpush.bf16.msra.mxu0 %v628
  %2717 = vmatpush.bf16.msra.mxu0 %v624
  %2718 = vmatmul.bf16.gmra.mxu0 %v2332
  %v2719 = vpop.f32.mrf.mxu0
  %v2720 = vadd.f32 %v2707, %v2719
  %v2721 = vpop.f32.mrf.mxu0
  %2722 = vdwg.mxu0
  %2723 = vmatpush.bf16.msra.mxu0 %v621
  %2724 = vmatpush.bf16.msra.mxu0 %v617
  %2725 = vmatpush.bf16.msra.mxu0 %v613
  %2726 = vmatpush.bf16.msra.mxu0 %v609
  %2727 = vmatpush.bf16.msra.mxu0 %v605
  %2728 = vmatpush.bf16.msra.mxu0 %v601
  %2729 = vmatpush.bf16.msra.mxu0 %v597
  %2730 = vmatpush.bf16.msra.mxu0 %v593
  %2731 = vmatmul.bf16.gmra.mxu0 %v2670
  %v2732 = vpop.f32.mrf.mxu0
  %v2733 = vadd.f32 0.0, %v2732
  %v2734 = vpop.f32.mrf.mxu0
  %2735 = vdwg.mxu0
  %2736 = vmatpush.bf16.msra.mxu0 %v653
  %2737 = vmatpush.bf16.msra.mxu0 %v649
  %2738 = vmatpush.bf16.msra.mxu0 %v645
  %2739 = vmatpush.bf16.msra.mxu0 %v641
  %2740 = vmatpush.bf16.msra.mxu0 %v637
  %2741 = vmatpush.bf16.msra.mxu0 %v633
  %2742 = vmatpush.bf16.msra.mxu0 %v629
  %2743 = vmatpush.bf16.msra.mxu0 %v625
  %2744 = vmatmul.bf16.gmra.mxu0 %v2332
  %v2745 = vpop.f32.mrf.mxu0
  %v2746 = vadd.f32 %v2733, %v2745
  %v2747 = vpop.f32.mrf.mxu0
  %2748 = vdwg.mxu0
  %2749 = vmatpush.bf16.msra.mxu0 %v622
  %2750 = vmatpush.bf16.msra.mxu0 %v618
  %2751 = vmatpush.bf16.msra.mxu0 %v614
  %2752 = vmatpush.bf16.msra.mxu0 %v610
  %2753 = vmatpush.bf16.msra.mxu0 %v606
  %2754 = vmatpush.bf16.msra.mxu0 %v602
  %2755 = vmatpush.bf16.msra.mxu0 %v598
  %2756 = vmatpush.bf16.msra.mxu0 %v594
  %2757 = vmatmul.bf16.gmra.mxu0 %v2670
  %v2758 = vpop.f32.mrf.mxu0
  %v2759 = vadd.f32 0.0, %v2758
  %v2760 = vpop.f32.mrf.mxu0
  %2761 = vdwg.mxu0
  %2762 = vmatpush.bf16.msra.mxu0 %v654
  %2763 = vmatpush.bf16.msra.mxu0 %v650
  %2764 = vmatpush.bf16.msra.mxu0 %v646
  %2765 = vmatpush.bf16.msra.mxu0 %v642
  %2766 = vmatpush.bf16.msra.mxu0 %v638
  %2767 = vmatpush.bf16.msra.mxu0 %v634
  %2768 = vmatpush.bf16.msra.mxu0 %v630
  %2769 = vmatpush.bf16.msra.mxu0 %v626
  %2770 = vmatmul.bf16.gmra.mxu0 %v2332
  %v2771 = vpop.f32.mrf.mxu0
  %v2772 = vadd.f32 %v2759, %v2771
  %v2773 = vpop.f32.mrf.mxu0
  %2774 = vdwg.mxu0
  %v2775 = vxor.u32 %v2694, 2147483648
  %v2776 = vxor.u32 %v2720, 2147483648
  %v2777 = vxor.u32 %v2746, 2147483648
  %v2778 = vmul.f32 %v2775, 1.442695
  %v2779 = vpow.pop %v2778
  %v2780 = vmul.f32 %v2776, 1.442695
  %v2781 = vpow.pop %v2780
  %v2782 = vmul.f32 %v2777, 1.442695
  %v2783 = vpow.pop %v2782
  %v2784 = vadd.f32 %v2779, 1.0
  %v2785 = vadd.f32 %v2781, 1.0
  %v2786 = vadd.f32 %v2783, 1.0
  %v2787 = vrcp.pop %v2784
  %v2788 = vmul.f32 %v2784, %v2787
  %v2789 = vsub.f32 1.0, %v2788
  %v2790 = vmul.f32 %v2787, %v2789
  %v2791 = vadd.f32 %v2787, %v2790
  %vm2792 = vweird.f32 %v2784
  %vm2793 = vweird.f32 %v2787
  %vm2794 = vmor %vm2792, %vm2793
  %v2795 = vsel %vm2794, %v2787, %v2791
  %v2796 = vand.u32 2147483647, %v2784
  %vm2797 = vcmp.eq.f32.partialorder %v2796, 8.507059e+37
  %v2798 = vand.u32 %v2784, 2147483648
  %v2799 = vor.u32 1.1754944e-38, %v2798
  %v2800 = vsel %vm2797, %v2799, %v2795
  %v2801 = vmul.f32 1.0, %v2800
  %v2802 = vrcp.pop %v2785
  %v2803 = vmul.f32 %v2785, %v2802
  %v2804 = vsub.f32 1.0, %v2803
  %v2805 = vmul.f32 %v2802, %v2804
  %v2806 = vadd.f32 %v2802, %v2805
  %vm2807 = vweird.f32 %v2785
  %vm2808 = vweird.f32 %v2802
  %vm2809 = vmor %vm2807, %vm2808
  %v2810 = vsel %vm2809, %v2802, %v2806
  %v2811 = vand.u32 2147483647, %v2785
  %vm2812 = vcmp.eq.f32.partialorder %v2811, 8.507059e+37
  %v2813 = vand.u32 %v2785, 2147483648
  %v2814 = vor.u32 1.1754944e-38, %v2813
  %v2815 = vsel %vm2812, %v2814, %v2810
  %v2816 = vmul.f32 1.0, %v2815
  %v2817 = vrcp.pop %v2786
  %v2818 = vmul.f32 %v2786, %v2817
  %v2819 = vsub.f32 1.0, %v2818
  %v2820 = vmul.f32 %v2817, %v2819
  %v2821 = vadd.f32 %v2817, %v2820
  %vm2822 = vweird.f32 %v2786
  %vm2823 = vweird.f32 %v2817
  %vm2824 = vmor %vm2822, %vm2823
  %v2825 = vsel %vm2824, %v2817, %v2821
  %v2826 = vand.u32 2147483647, %v2786
  %vm2827 = vcmp.eq.f32.partialorder %v2826, 8.507059e+37
  %v2828 = vand.u32 %v2786, 2147483648
  %v2829 = vor.u32 1.1754944e-38, %v2828
  %v2830 = vsel %vm2827, %v2829, %v2825
  %v2831 = vmul.f32 1.0, %v2830
  %v2832 = vtanh.pop %v2772
  %v2833 = vmul.f32 %v2816, %v2331
  %v2834 = vmul.f32 %v2801, %v2832
  %v2835 = vadd.f32 %v2833, %v2834
  %v2836 = vtanh.pop %v2835
  %v2837 = vmul.f32 %v2831, %v2836
  %v2838 = vmul.f32 %v2328, 0.1
  %v2839 = vmul.f32 %v2837, 0.9
  %v2840 = vadd.f32 %v2838, %v2839
  %v2841 = vmul.f32 %v2331, 0.1
  %v2842 = vmul.f32 %v2835, 0.9
  %v2843 = vadd.f32 %v2841, %v2842
  %v2844 = vpack.c.bf16 %v2840, %v2840
  %v2845 = vpack.c.bf16 %v2533, %v2533
  %2846 = vmatpush.bf16.msra.mxu0 %v1182
  %2847 = vmatpush.bf16.msra.mxu0 %v1177
  %2848 = vmatpush.bf16.msra.mxu0 %v1172
  %2849 = vmatpush.bf16.msra.mxu0 %v1167
  %2850 = vmatpush.bf16.msra.mxu0 %v1162
  %2851 = vmatpush.bf16.msra.mxu0 %v1157
  %2852 = vmatpush.bf16.msra.mxu0 %v1152
  %2853 = vmatpush.bf16.msra.mxu0 %v1147
  %2854 = vmatmul.bf16.gmra.mxu0 %v2844
  %v2855 = vpop.f32.mrf.mxu0
  %v2856 = vadd.f32 0.0, %v2855
  %v2857 = vpop.f32.mrf.mxu0
  %2858 = vdwg.mxu0
  %2859 = vmatpush.bf16.msra.mxu0 %v1222
  %2860 = vmatpush.bf16.msra.mxu0 %v1217
  %2861 = vmatpush.bf16.msra.mxu0 %v1212
  %2862 = vmatpush.bf16.msra.mxu0 %v1207
  %2863 = vmatpush.bf16.msra.mxu0 %v1202
  %2864 = vmatpush.bf16.msra.mxu0 %v1197
  %2865 = vmatpush.bf16.msra.mxu0 %v1192
  %2866 = vmatpush.bf16.msra.mxu0 %v1187
  %2867 = vmatmul.bf16.gmra.mxu0 %v2845
  %v2868 = vpop.f32.mrf.mxu0
  %v2869 = vadd.f32 %v2856, %v2868
  %v2870 = vpop.f32.mrf.mxu0
  %2871 = vdwg.mxu0
  %2872 = vmatpush.bf16.msra.mxu0 %v1183
  %2873 = vmatpush.bf16.msra.mxu0 %v1178
  %2874 = vmatpush.bf16.msra.mxu0 %v1173
  %2875 = vmatpush.bf16.msra.mxu0 %v1168
  %2876 = vmatpush.bf16.msra.mxu0 %v1163
  %2877 = vmatpush.bf16.msra.mxu0 %v1158
  %2878 = vmatpush.bf16.msra.mxu0 %v1153
  %2879 = vmatpush.bf16.msra.mxu0 %v1148
  %2880 = vmatmul.bf16.gmra.mxu0 %v2844
  %v2881 = vpop.f32.mrf.mxu0
  %v2882 = vadd.f32 0.0, %v2881
  %v2883 = vpop.f32.mrf.mxu0
  %2884 = vdwg.mxu0
  %2885 = vmatpush.bf16.msra.mxu0 %v1223
  %2886 = vmatpush.bf16.msra.mxu0 %v1218
  %2887 = vmatpush.bf16.msra.mxu0 %v1213
  %2888 = vmatpush.bf16.msra.mxu0 %v1208
  %2889 = vmatpush.bf16.msra.mxu0 %v1203
  %2890 = vmatpush.bf16.msra.mxu0 %v1198
  %2891 = vmatpush.bf16.msra.mxu0 %v1193
  %2892 = vmatpush.bf16.msra.mxu0 %v1188
  %2893 = vmatmul.bf16.gmra.mxu0 %v2845
  %v2894 = vpop.f32.mrf.mxu0
  %v2895 = vadd.f32 %v2882, %v2894
  %v2896 = vpop.f32.mrf.mxu0
  %2897 = vdwg.mxu0
  %2898 = vmatpush.bf16.msra.mxu0 %v1184
  %2899 = vmatpush.bf16.msra.mxu0 %v1179
  %2900 = vmatpush.bf16.msra.mxu0 %v1174
  %2901 = vmatpush.bf16.msra.mxu0 %v1169
  %2902 = vmatpush.bf16.msra.mxu0 %v1164
  %2903 = vmatpush.bf16.msra.mxu0 %v1159
  %2904 = vmatpush.bf16.msra.mxu0 %v1154
  %2905 = vmatpush.bf16.msra.mxu0 %v1149
  %2906 = vmatmul.bf16.gmra.mxu0 %v2844
  %v2907 = vpop.f32.mrf.mxu0
  %v2908 = vadd.f32 0.0, %v2907
  %v2909 = vpop.f32.mrf.mxu0
  %2910 = vdwg.mxu0
  %2911 = vmatpush.bf16.msra.mxu0 %v1224
  %2912 = vmatpush.bf16.msra.mxu0 %v1219
  %2913 = vmatpush.bf16.msra.mxu0 %v1214
  %2914 = vmatpush.bf16.msra.mxu0 %v1209
  %2915 = vmatpush.bf16.msra.mxu0 %v1204
  %2916 = vmatpush.bf16.msra.mxu0 %v1199
  %2917 = vmatpush.bf16.msra.mxu0 %v1194
  %2918 = vmatpush.bf16.msra.mxu0 %v1189
  %2919 = vmatmul.bf16.gmra.mxu0 %v2845
  %v2920 = vpop.f32.mrf.mxu0
  %v2921 = vadd.f32 %v2908, %v2920
  %v2922 = vpop.f32.mrf.mxu0
  %2923 = vdwg.mxu0
  %2924 = vmatpush.bf16.msra.mxu0 %v1185
  %2925 = vmatpush.bf16.msra.mxu0 %v1180
  %2926 = vmatpush.bf16.msra.mxu0 %v1175
  %2927 = vmatpush.bf16.msra.mxu0 %v1170
  %2928 = vmatpush.bf16.msra.mxu0 %v1165
  %2929 = vmatpush.bf16.msra.mxu0 %v1160
  %2930 = vmatpush.bf16.msra.mxu0 %v1155
  %2931 = vmatpush.bf16.msra.mxu0 %v1150
  %2932 = vmatmul.bf16.gmra.mxu0 %v2844
  %v2933 = vpop.f32.mrf.mxu0
  %v2934 = vadd.f32 0.0, %v2933
  %v2935 = vpop.f32.mrf.mxu0
  %2936 = vdwg.mxu0
  %2937 = vmatpush.bf16.msra.mxu0 %v1225
  %2938 = vmatpush.bf16.msra.mxu0 %v1220
  %2939 = vmatpush.bf16.msra.mxu0 %v1215
  %2940 = vmatpush.bf16.msra.mxu0 %v1210
  %2941 = vmatpush.bf16.msra.mxu0 %v1205
  %2942 = vmatpush.bf16.msra.mxu0 %v1200
  %2943 = vmatpush.bf16.msra.mxu0 %v1195
  %2944 = vmatpush.bf16.msra.mxu0 %v1190
  %2945 = vmatmul.bf16.gmra.mxu0 %v2845
  %v2946 = vpop.f32.mrf.mxu0
  %v2947 = vadd.f32 %v2934, %v2946
  %v2948 = vpop.f32.mrf.mxu0
  %2949 = vdwg.mxu0
  %2950 = vmatpush.bf16.msra.mxu0 %v1186
  %2951 = vmatpush.bf16.msra.mxu0 %v1181
  %2952 = vmatpush.bf16.msra.mxu0 %v1176
  %2953 = vmatpush.bf16.msra.mxu0 %v1171
  %2954 = vmatpush.bf16.msra.mxu0 %v1166
  %2955 = vmatpush.bf16.msra.mxu0 %v1161
  %2956 = vmatpush.bf16.msra.mxu0 %v1156
  %2957 = vmatpush.bf16.msra.mxu0 %v1151
  %2958 = vmatmul.bf16.gmra.mxu0 %v2844
  %v2959 = vpop.f32.mrf.mxu0
  %v2960 = vadd.f32 0.0, %v2959
  %v2961 = vpop.f32.mrf.mxu0
  %2962 = vdwg.mxu0
  %2963 = vmatpush.bf16.msra.mxu0 %v1226
  %2964 = vmatpush.bf16.msra.mxu0 %v1221
  %2965 = vmatpush.bf16.msra.mxu0 %v1216
  %2966 = vmatpush.bf16.msra.mxu0 %v1211
  %2967 = vmatpush.bf16.msra.mxu0 %v1206
  %2968 = vmatpush.bf16.msra.mxu0 %v1201
  %2969 = vmatpush.bf16.msra.mxu0 %v1196
  %2970 = vmatpush.bf16.msra.mxu0 %v1191
  %2971 = vmatmul.bf16.gmra.mxu0 %v2845
  %v2972 = vpop.f32.mrf.mxu0
  %v2973 = vadd.f32 %v2960, %v2972
  %v2974 = vpop.f32.mrf.mxu0
  %2975 = vdwg.mxu0
  %v2976 = vadd.f32 %v2869, %v260
  %v2977 = vadd.f32 %v2895, %v261
  %v2978 = vadd.f32 %v2921, %v262
  %v2979 = vadd.f32 %v2947, %v263
  %v2980 = vxor.u32 %v2976, 2147483648
  %v2981 = vxor.u32 %v2977, 2147483648
  %v2982 = vxor.u32 %v2978, 2147483648
  %v2983 = vmul.f32 %v2980, 1.442695
  %v2984 = vpow.pop %v2983
  %v2985 = vmul.f32 %v2981, 1.442695
  %v2986 = vpow.pop %v2985
  %v2987 = vmul.f32 %v2982, 1.442695
  %v2988 = vpow.pop %v2987
  %v2989 = vadd.f32 %v2984, 1.0
  %v2990 = vadd.f32 %v2986, 1.0
  %v2991 = vadd.f32 %v2988, 1.0
  %v2992 = vrcp.pop %v2989
  %v2993 = vmul.f32 %v2989, %v2992
  %v2994 = vsub.f32 1.0, %v2993
  %v2995 = vmul.f32 %v2992, %v2994
  %v2996 = vadd.f32 %v2992, %v2995
  %vm2997 = vweird.f32 %v2989
  %vm2998 = vweird.f32 %v2992
  %vm2999 = vmor %vm2997, %vm2998
  %v3000 = vsel %vm2999, %v2992, %v2996
  %v3001 = vand.u32 2147483647, %v2989
  %vm3002 = vcmp.eq.f32.partialorder %v3001, 8.507059e+37
  %v3003 = vand.u32 %v2989, 2147483648
  %v3004 = vor.u32 1.1754944e-38, %v3003
  %v3005 = vsel %vm3002, %v3004, %v3000
  %v3006 = vmul.f32 1.0, %v3005
  %v3007 = vrcp.pop %v2990
  %v3008 = vmul.f32 %v2990, %v3007
  %v3009 = vsub.f32 1.0, %v3008
  %v3010 = vmul.f32 %v3007, %v3009
  %v3011 = vadd.f32 %v3007, %v3010
  %vm3012 = vweird.f32 %v2990
  %vm3013 = vweird.f32 %v3007
  %vm3014 = vmor %vm3012, %vm3013
  %v3015 = vsel %vm3014, %v3007, %v3011
  %v3016 = vand.u32 2147483647, %v2990
  %vm3017 = vcmp.eq.f32.partialorder %v3016, 8.507059e+37
  %v3018 = vand.u32 %v2990, 2147483648
  %v3019 = vor.u32 1.1754944e-38, %v3018
  %v3020 = vsel %vm3017, %v3019, %v3015
  %v3021 = vmul.f32 1.0, %v3020
  %v3022 = vrcp.pop %v2991
  %v3023 = vmul.f32 %v2991, %v3022
  %v3024 = vsub.f32 1.0, %v3023
  %v3025 = vmul.f32 %v3022, %v3024
  %v3026 = vadd.f32 %v3022, %v3025
  %vm3027 = vweird.f32 %v2991
  %vm3028 = vweird.f32 %v3022
  %vm3029 = vmor %vm3027, %vm3028
  %v3030 = vsel %vm3029, %v3022, %v3026
  %v3031 = vand.u32 2147483647, %v2991
  %vm3032 = vcmp.eq.f32.partialorder %v3031, 8.507059e+37
  %v3033 = vand.u32 %v2991, 2147483648
  %v3034 = vor.u32 1.1754944e-38, %v3033
  %v3035 = vsel %vm3032, %v3034, %v3030
  %v3036 = vmul.f32 1.0, %v3035
  %v3037 = vtanh.pop %v2979
  %v3038 = vmul.f32 %v3021, %v2536
  %v3039 = vmul.f32 %v3006, %v3037
  %v3040 = vadd.f32 %v3038, %v3039
  %v3041 = vtanh.pop %v3040
  %v3042 = vmul.f32 %v3036, %v3041
  %v3043 = vmul.f32 %v2533, 0.1
  %v3044 = vmul.f32 %v3042, 0.9
  %v3045 = vadd.f32 %v3043, %v3044
  %v3046 = vmul.f32 %v2536, 0.1
  %v3047 = vmul.f32 %v3040, 0.9
  %v3048 = vadd.f32 %v3046, %v3047
  %v3050 = vrot.slane %v2668, 7
  %v3051 = vsel %vm1510, %v3045, %v3050
  %s3053 = scalar_lea.vmem [#allocation2], 3
  %3054 = vst.msk [vmem:[%s3053] ss:$8 sm:$0x3] %vm1516, %v3051
  %3055 = vst.msk [vmem:[%s3053] ss:$8 sm:$0x0] %vm1516, %v3051
  %v3056 = vperm.slane %v2645, %v80
  %3058 = vst.msk [vmem:[#allocation3 + $0x3] sm:$0x1] %vm1521, %v3056
  %3059 = vst [vmem:[#allocation1] sm:$0xff] %v3045
  %3060 = vst [vmem:[#allocation1 + $0x9] sm:$0xff] %v2668
  %s3061 = scalar_lea.vmem [#allocation1], 1
  %v3062 = vld [vmem:[%s3061] ss:$9 sm:$0xff]
  %s3064 = scalar_lea.vmem [#allocation2], 17
  %3065 = vst.msk [vmem:[%s3064] ss:$8 sm:$0x3] %vm1516, %v3062
  %3066 = vst.msk [vmem:[%s3064] ss:$8 sm:$0x0] %vm1516, %v3062
  %v3067 = vperm.slane %v2650, %v80
  %3069 = vst.msk [vmem:[#allocation3 + $0x9] sm:$0x1] %vm1521, %v3067
  %v3071 = vrot.slane %v2973, 1
  %v3072 = vperm.slane %v2973, 0
  %v3073 = vperm.slane %v3071, 0
  %v3076 = vadd.f32 %v77, %v3072
  %v3077 = vadd.f32 %v78, %v3073
  %v3078 = vtanh.pop %v3076
  %v3079 = vtanh.pop %v3077
  %v3080 = vmul.f32 %v3078, %v273
  %v3081 = vmul.f32 %v3079, %v273
  %v3082 = vsel %vm277, %v3080, 0.0
  %3083 = vadd.xlane.f32.xlu0 %v3082
  %v3084 = vpop.xlane.xlu0 %3083
  %v3085 = vsel %vm277, %v3081, 0.0
  %3086 = vadd.xlane.f32.xlu0 %v3085
  %v3087 = vpop.xlane.xlu0 %3086
  %v3088 = vadd.f32 %v3084, %v291
  %v3089 = vadd.f32 %v3087, %v298
  %3092 = vset.pattern.permute.xlu0 0
  %3093 = vperm.xlu0 %3092, %v3088
  %v3094 = vpop.permute.xlu0 %3093
  %3095 = vset.pattern.permute.xlu0 0
  %3096 = vperm.xlu0 %3095, %v3089
  %v3097 = vpop.permute.xlu0 %3096
  %v3098 = vperm.slane %v3094, %v80
  %v3099 = vperm.slane %v3097, %v80
  %v3100 = vsel %vm313, %v3099, %v3098
  %v3102 = vsel %vm316, %v3100, -inf
  %3103 = vmax.xlane.f32.xlu0 %v3102
  %v3104 = vpop.xlane.xlu0 %3103
  %v3106 = vperm.slane %v3104, 0
  %v3107 = vperm.slane %v3104, 1
  %v3110 = vsub.f32 %v3088, %v3106
  %v3111 = vsub.f32 %v3089, %v3107
  %v3112 = vmul.f32 %v3110, 1.442695
  %v3113 = vpow.pop %v3112
  %v3114 = vmul.f32 %v3111, 1.442695
  %v3115 = vpow.pop %v3114
  %3118 = vset.pattern.permute.xlu0 0
  %3119 = vperm.xlu0 %3118, %v3113
  %v3120 = vpop.permute.xlu0 %3119
  %3121 = vset.pattern.permute.xlu0 0
  %3122 = vperm.xlu0 %3121, %v3115
  %v3123 = vpop.permute.xlu0 %3122
  %v3124 = vperm.slane %v3120, %v80
  %v3125 = vperm.slane %v3123, %v80
  %v3126 = vsel %vm313, %v3125, %v3124
  %v3128 = vsel %vm316, %v3126, 0.0
  %3129 = vadd.xlane.f32.xlu0 %v3128
  %v3130 = vpop.xlane.xlu0 %3129
  %v3131 = vmax.f32 %v3130, 1e-30
  %v3132 = vrcp.pop %v3131
  %v3133 = vmul.f32 %v3131, %v3132
  %v3134 = vsub.f32 1.0, %v3133
  %v3135 = vmul.f32 %v3132, %v3134
  %v3136 = vadd.f32 %v3132, %v3135
  %vm3137 = vweird.f32 %v3131
  %vm3138 = vweird.f32 %v3132
  %vm3139 = vmor %vm3137, %vm3138
  %v3140 = vsel %vm3139, %v3132, %v3136
  %v3141 = vand.u32 2147483647, %v3131
  %vm3142 = vcmp.eq.f32.partialorder %v3141, 8.507059e+37
  %v3143 = vand.u32 %v3131, 2147483648
  %v3144 = vor.u32 1.1754944e-38, %v3143
  %v3145 = vsel %vm3142, %v3144, %v3140
  %v3146 = vmul.f32 1.0, %v3145
  %v3148 = vperm.slane %v3146, 0
  %v3149 = vperm.slane %v3146, 1
  %v3152 = vmul.f32 %v3113, %v3148
  %v3153 = vmul.f32 %v3115, %v3149
  %3155 = vset.pattern.permute.xlu0 0
  %3156 = vperm.xlu0 %3155, %v3152
  %v3157 = vpop.permute.xlu0 %3156
  %3160 = vset.pattern.permute.xlu0 0
  %3161 = vperm.xlu0 %3160, %v3153
  %v3162 = vpop.permute.xlu0 %3161
  %v3164 = vmul.f32 %v3157, %v32
  %v3165 = vmul.f32 %v3162, %v33
  %v3166 = vrot.slane %v3164, 4
  %v3167 = vadd.f32 %v3164, %v3166
  %v3168 = vrot.slane %v3167, 2
  %v3169 = vadd.f32 %v3167, %v3168
  %v3170 = vrot.slane %v3169, 1
  %v3171 = vadd.f32 %v3169, %v3170
  %v3172 = vrot.slane %v3165, 4
  %v3173 = vadd.f32 %v3165, %v3172
  %v3174 = vrot.slane %v3173, 2
  %v3175 = vadd.f32 %v3173, %v3174
  %v3176 = vrot.slane %v3175, 1
  %v3177 = vadd.f32 %v3175, %v3176
  %v3180 = vsel %vm313, %v3177, %v3171
  %v3182 = vpack.c.bf16 %v3180, %v3180
  %3183 = vmatpush.bf16.msra.mxu0 %v619
  %3184 = vmatpush.bf16.msra.mxu0 %v615
  %3185 = vmatpush.bf16.msra.mxu0 %v611
  %3186 = vmatpush.bf16.msra.mxu0 %v607
  %3187 = vmatpush.bf16.msra.mxu0 %v603
  %3188 = vmatpush.bf16.msra.mxu0 %v599
  %3189 = vmatpush.bf16.msra.mxu0 %v595
  %3190 = vmatpush.bf16.msra.mxu0 %v591
  %3191 = vmatmul.bf16.gmra.mxu0 %v3182
  %v3192 = vpop.f32.mrf.mxu0
  %v3193 = vadd.f32 0.0, %v3192
  %v3194 = vpop.f32.mrf.mxu0
  %3195 = vdwg.mxu0
  %3196 = vmatpush.bf16.msra.mxu0 %v651
  %3197 = vmatpush.bf16.msra.mxu0 %v647
  %3198 = vmatpush.bf16.msra.mxu0 %v643
  %3199 = vmatpush.bf16.msra.mxu0 %v639
  %3200 = vmatpush.bf16.msra.mxu0 %v635
  %3201 = vmatpush.bf16.msra.mxu0 %v631
  %3202 = vmatpush.bf16.msra.mxu0 %v627
  %3203 = vmatpush.bf16.msra.mxu0 %v623
  %3204 = vmatmul.bf16.gmra.mxu0 %v2844
  %v3205 = vpop.f32.mrf.mxu0
  %v3206 = vadd.f32 %v3193, %v3205
  %v3207 = vpop.f32.mrf.mxu0
  %3208 = vdwg.mxu0
  %3209 = vmatpush.bf16.msra.mxu0 %v620
  %3210 = vmatpush.bf16.msra.mxu0 %v616
  %3211 = vmatpush.bf16.msra.mxu0 %v612
  %3212 = vmatpush.bf16.msra.mxu0 %v608
  %3213 = vmatpush.bf16.msra.mxu0 %v604
  %3214 = vmatpush.bf16.msra.mxu0 %v600
  %3215 = vmatpush.bf16.msra.mxu0 %v596
  %3216 = vmatpush.bf16.msra.mxu0 %v592
  %3217 = vmatmul.bf16.gmra.mxu0 %v3182
  %v3218 = vpop.f32.mrf.mxu0
  %v3219 = vadd.f32 0.0, %v3218
  %v3220 = vpop.f32.mrf.mxu0
  %3221 = vdwg.mxu0
  %3222 = vmatpush.bf16.msra.mxu0 %v652
  %3223 = vmatpush.bf16.msra.mxu0 %v648
  %3224 = vmatpush.bf16.msra.mxu0 %v644
  %3225 = vmatpush.bf16.msra.mxu0 %v640
  %3226 = vmatpush.bf16.msra.mxu0 %v636
  %3227 = vmatpush.bf16.msra.mxu0 %v632
  %3228 = vmatpush.bf16.msra.mxu0 %v628
  %3229 = vmatpush.bf16.msra.mxu0 %v624
  %3230 = vmatmul.bf16.gmra.mxu0 %v2844
  %v3231 = vpop.f32.mrf.mxu0
  %v3232 = vadd.f32 %v3219, %v3231
  %v3233 = vpop.f32.mrf.mxu0
  %3234 = vdwg.mxu0
  %3235 = vmatpush.bf16.msra.mxu0 %v621
  %3236 = vmatpush.bf16.msra.mxu0 %v617
  %3237 = vmatpush.bf16.msra.mxu0 %v613
  %3238 = vmatpush.bf16.msra.mxu0 %v609
  %3239 = vmatpush.bf16.msra.mxu0 %v605
  %3240 = vmatpush.bf16.msra.mxu0 %v601
  %3241 = vmatpush.bf16.msra.mxu0 %v597
  %3242 = vmatpush.bf16.msra.mxu0 %v593
  %3243 = vmatmul.bf16.gmra.mxu0 %v3182
  %v3244 = vpop.f32.mrf.mxu0
  %v3245 = vadd.f32 0.0, %v3244
  %v3246 = vpop.f32.mrf.mxu0
  %3247 = vdwg.mxu0
  %3248 = vmatpush.bf16.msra.mxu0 %v653
  %3249 = vmatpush.bf16.msra.mxu0 %v649
  %3250 = vmatpush.bf16.msra.mxu0 %v645
  %3251 = vmatpush.bf16.msra.mxu0 %v641
  %3252 = vmatpush.bf16.msra.mxu0 %v637
  %3253 = vmatpush.bf16.msra.mxu0 %v633
  %3254 = vmatpush.bf16.msra.mxu0 %v629
  %3255 = vmatpush.bf16.msra.mxu0 %v625
  %3256 = vmatmul.bf16.gmra.mxu0 %v2844
  %v3257 = vpop.f32.mrf.mxu0
  %v3258 = vadd.f32 %v3245, %v3257
  %v3259 = vpop.f32.mrf.mxu0
  %3260 = vdwg.mxu0
  %3261 = vmatpush.bf16.msra.mxu0 %v622
  %3262 = vmatpush.bf16.msra.mxu0 %v618
  %3263 = vmatpush.bf16.msra.mxu0 %v614
  %3264 = vmatpush.bf16.msra.mxu0 %v610
  %3265 = vmatpush.bf16.msra.mxu0 %v606
  %3266 = vmatpush.bf16.msra.mxu0 %v602
  %3267 = vmatpush.bf16.msra.mxu0 %v598
  %3268 = vmatpush.bf16.msra.mxu0 %v594
  %3269 = vmatmul.bf16.gmra.mxu0 %v3182
  %v3270 = vpop.f32.mrf.mxu0
  %v3271 = vadd.f32 0.0, %v3270
  %v3272 = vpop.f32.mrf.mxu0
  %3273 = vdwg.mxu0
  %3274 = vmatpush.bf16.msra.mxu0 %v654
  %3275 = vmatpush.bf16.msra.mxu0 %v650
  %3276 = vmatpush.bf16.msra.mxu0 %v646
  %3277 = vmatpush.bf16.msra.mxu0 %v642
  %3278 = vmatpush.bf16.msra.mxu0 %v638
  %3279 = vmatpush.bf16.msra.mxu0 %v634
  %3280 = vmatpush.bf16.msra.mxu0 %v630
  %3281 = vmatpush.bf16.msra.mxu0 %v626
  %3282 = vmatmul.bf16.gmra.mxu0 %v2844
  %v3283 = vpop.f32.mrf.mxu0
  %v3284 = vadd.f32 %v3271, %v3283
  %v3285 = vpop.f32.mrf.mxu0
  %3286 = vdwg.mxu0
  %v3287 = vxor.u32 %v3206, 2147483648
  %v3288 = vxor.u32 %v3232, 2147483648
  %v3289 = vxor.u32 %v3258, 2147483648
  %v3290 = vmul.f32 %v3287, 1.442695
  %v3291 = vpow.pop %v3290
  %v3292 = vmul.f32 %v3288, 1.442695
  %v3293 = vpow.pop %v3292
  %v3294 = vmul.f32 %v3289, 1.442695
  %v3295 = vpow.pop %v3294
  %v3296 = vadd.f32 %v3291, 1.0
  %v3297 = vadd.f32 %v3293, 1.0
  %v3298 = vadd.f32 %v3295, 1.0
  %v3299 = vrcp.pop %v3296
  %v3300 = vmul.f32 %v3296, %v3299
  %v3301 = vsub.f32 1.0, %v3300
  %v3302 = vmul.f32 %v3299, %v3301
  %v3303 = vadd.f32 %v3299, %v3302
  %vm3304 = vweird.f32 %v3296
  %vm3305 = vweird.f32 %v3299
  %vm3306 = vmor %vm3304, %vm3305
  %v3307 = vsel %vm3306, %v3299, %v3303
  %v3308 = vand.u32 2147483647, %v3296
  %vm3309 = vcmp.eq.f32.partialorder %v3308, 8.507059e+37
  %v3310 = vand.u32 %v3296, 2147483648
  %v3311 = vor.u32 1.1754944e-38, %v3310
  %v3312 = vsel %vm3309, %v3311, %v3307
  %v3313 = vmul.f32 1.0, %v3312
  %v3314 = vrcp.pop %v3297
  %v3315 = vmul.f32 %v3297, %v3314
  %v3316 = vsub.f32 1.0, %v3315
  %v3317 = vmul.f32 %v3314, %v3316
  %v3318 = vadd.f32 %v3314, %v3317
  %vm3319 = vweird.f32 %v3297
  %vm3320 = vweird.f32 %v3314
  %vm3321 = vmor %vm3319, %vm3320
  %v3322 = vsel %vm3321, %v3314, %v3318
  %v3323 = vand.u32 2147483647, %v3297
  %vm3324 = vcmp.eq.f32.partialorder %v3323, 8.507059e+37
  %v3325 = vand.u32 %v3297, 2147483648
  %v3326 = vor.u32 1.1754944e-38, %v3325
  %v3327 = vsel %vm3324, %v3326, %v3322
  %v3328 = vmul.f32 1.0, %v3327
  %v3329 = vrcp.pop %v3298
  %v3330 = vmul.f32 %v3298, %v3329
  %v3331 = vsub.f32 1.0, %v3330
  %v3332 = vmul.f32 %v3329, %v3331
  %v3333 = vadd.f32 %v3329, %v3332
  %vm3334 = vweird.f32 %v3298
  %vm3335 = vweird.f32 %v3329
  %vm3336 = vmor %vm3334, %vm3335
  %v3337 = vsel %vm3336, %v3329, %v3333
  %v3338 = vand.u32 2147483647, %v3298
  %vm3339 = vcmp.eq.f32.partialorder %v3338, 8.507059e+37
  %v3340 = vand.u32 %v3298, 2147483648
  %v3341 = vor.u32 1.1754944e-38, %v3340
  %v3342 = vsel %vm3339, %v3341, %v3337
  %v3343 = vmul.f32 1.0, %v3342
  %v3344 = vtanh.pop %v3284
  %v3345 = vmul.f32 %v3328, %v2843
  %v3346 = vmul.f32 %v3313, %v3344
  %v3347 = vadd.f32 %v3345, %v3346
  %v3348 = vtanh.pop %v3347
  %v3349 = vmul.f32 %v3343, %v3348
  %v3350 = vmul.f32 %v2840, 0.1
  %v3351 = vmul.f32 %v3349, 0.9
  %v3352 = vadd.f32 %v3350, %v3351
  %v3353 = vmul.f32 %v2843, 0.1
  %v3354 = vmul.f32 %v3347, 0.9
  %v3355 = vadd.f32 %v3353, %v3354
  %v3356 = vpack.c.bf16 %v3352, %v3352
  %v3357 = vpack.c.bf16 %v3045, %v3045
  %3358 = vmatpush.bf16.msra.mxu0 %v1182
  %3359 = vmatpush.bf16.msra.mxu0 %v1177
  %3360 = vmatpush.bf16.msra.mxu0 %v1172
  %3361 = vmatpush.bf16.msra.mxu0 %v1167
  %3362 = vmatpush.bf16.msra.mxu0 %v1162
  %3363 = vmatpush.bf16.msra.mxu0 %v1157
  %3364 = vmatpush.bf16.msra.mxu0 %v1152
  %3365 = vmatpush.bf16.msra.mxu0 %v1147
  %3366 = vmatmul.bf16.gmra.mxu0 %v3356
  %v3367 = vpop.f32.mrf.mxu0
  %v3368 = vadd.f32 0.0, %v3367
  %v3369 = vpop.f32.mrf.mxu0
  %3370 = vdwg.mxu0
  %3371 = vmatpush.bf16.msra.mxu0 %v1222
  %3372 = vmatpush.bf16.msra.mxu0 %v1217
  %3373 = vmatpush.bf16.msra.mxu0 %v1212
  %3374 = vmatpush.bf16.msra.mxu0 %v1207
  %3375 = vmatpush.bf16.msra.mxu0 %v1202
  %3376 = vmatpush.bf16.msra.mxu0 %v1197
  %3377 = vmatpush.bf16.msra.mxu0 %v1192
  %3378 = vmatpush.bf16.msra.mxu0 %v1187
  %3379 = vmatmul.bf16.gmra.mxu0 %v3357
  %v3380 = vpop.f32.mrf.mxu0
  %v3381 = vadd.f32 %v3368, %v3380
  %v3382 = vpop.f32.mrf.mxu0
  %3383 = vdwg.mxu0
  %3384 = vmatpush.bf16.msra.mxu0 %v1183
  %3385 = vmatpush.bf16.msra.mxu0 %v1178
  %3386 = vmatpush.bf16.msra.mxu0 %v1173
  %3387 = vmatpush.bf16.msra.mxu0 %v1168
  %3388 = vmatpush.bf16.msra.mxu0 %v1163
  %3389 = vmatpush.bf16.msra.mxu0 %v1158
  %3390 = vmatpush.bf16.msra.mxu0 %v1153
  %3391 = vmatpush.bf16.msra.mxu0 %v1148
  %3392 = vmatmul.bf16.gmra.mxu0 %v3356
  %v3393 = vpop.f32.mrf.mxu0
  %v3394 = vadd.f32 0.0, %v3393
  %v3395 = vpop.f32.mrf.mxu0
  %3396 = vdwg.mxu0
  %3397 = vmatpush.bf16.msra.mxu0 %v1223
  %3398 = vmatpush.bf16.msra.mxu0 %v1218
  %3399 = vmatpush.bf16.msra.mxu0 %v1213
  %3400 = vmatpush.bf16.msra.mxu0 %v1208
  %3401 = vmatpush.bf16.msra.mxu0 %v1203
  %3402 = vmatpush.bf16.msra.mxu0 %v1198
  %3403 = vmatpush.bf16.msra.mxu0 %v1193
  %3404 = vmatpush.bf16.msra.mxu0 %v1188
  %3405 = vmatmul.bf16.gmra.mxu0 %v3357
  %v3406 = vpop.f32.mrf.mxu0
  %v3407 = vadd.f32 %v3394, %v3406
  %v3408 = vpop.f32.mrf.mxu0
  %3409 = vdwg.mxu0
  %3410 = vmatpush.bf16.msra.mxu0 %v1184
  %3411 = vmatpush.bf16.msra.mxu0 %v1179
  %3412 = vmatpush.bf16.msra.mxu0 %v1174
  %3413 = vmatpush.bf16.msra.mxu0 %v1169
  %3414 = vmatpush.bf16.msra.mxu0 %v1164
  %3415 = vmatpush.bf16.msra.mxu0 %v1159
  %3416 = vmatpush.bf16.msra.mxu0 %v1154
  %3417 = vmatpush.bf16.msra.mxu0 %v1149
  %3418 = vmatmul.bf16.gmra.mxu0 %v3356
  %v3419 = vpop.f32.mrf.mxu0
  %v3420 = vadd.f32 0.0, %v3419
  %v3421 = vpop.f32.mrf.mxu0
  %3422 = vdwg.mxu0
  %3423 = vmatpush.bf16.msra.mxu0 %v1224
  %3424 = vmatpush.bf16.msra.mxu0 %v1219
  %3425 = vmatpush.bf16.msra.mxu0 %v1214
  %3426 = vmatpush.bf16.msra.mxu0 %v1209
  %3427 = vmatpush.bf16.msra.mxu0 %v1204
  %3428 = vmatpush.bf16.msra.mxu0 %v1199
  %3429 = vmatpush.bf16.msra.mxu0 %v1194
  %3430 = vmatpush.bf16.msra.mxu0 %v1189
  %3431 = vmatmul.bf16.gmra.mxu0 %v3357
  %v3432 = vpop.f32.mrf.mxu0
  %v3433 = vadd.f32 %v3420, %v3432
  %v3434 = vpop.f32.mrf.mxu0
  %3435 = vdwg.mxu0
  %3436 = vmatpush.bf16.msra.mxu0 %v1185
  %3437 = vmatpush.bf16.msra.mxu0 %v1180
  %3438 = vmatpush.bf16.msra.mxu0 %v1175
  %3439 = vmatpush.bf16.msra.mxu0 %v1170
  %3440 = vmatpush.bf16.msra.mxu0 %v1165
  %3441 = vmatpush.bf16.msra.mxu0 %v1160
  %3442 = vmatpush.bf16.msra.mxu0 %v1155
  %3443 = vmatpush.bf16.msra.mxu0 %v1150
  %3444 = vmatmul.bf16.gmra.mxu0 %v3356
  %v3445 = vpop.f32.mrf.mxu0
  %v3446 = vadd.f32 0.0, %v3445
  %v3447 = vpop.f32.mrf.mxu0
  %3448 = vdwg.mxu0
  %3449 = vmatpush.bf16.msra.mxu0 %v1225
  %3450 = vmatpush.bf16.msra.mxu0 %v1220
  %3451 = vmatpush.bf16.msra.mxu0 %v1215
  %3452 = vmatpush.bf16.msra.mxu0 %v1210
  %3453 = vmatpush.bf16.msra.mxu0 %v1205
  %3454 = vmatpush.bf16.msra.mxu0 %v1200
  %3455 = vmatpush.bf16.msra.mxu0 %v1195
  %3456 = vmatpush.bf16.msra.mxu0 %v1190
  %3457 = vmatmul.bf16.gmra.mxu0 %v3357
  %v3458 = vpop.f32.mrf.mxu0
  %v3459 = vadd.f32 %v3446, %v3458
  %v3460 = vpop.f32.mrf.mxu0
  %3461 = vdwg.mxu0
  %3462 = vmatpush.bf16.msra.mxu0 %v1186
  %3463 = vmatpush.bf16.msra.mxu0 %v1181
  %3464 = vmatpush.bf16.msra.mxu0 %v1176
  %3465 = vmatpush.bf16.msra.mxu0 %v1171
  %3466 = vmatpush.bf16.msra.mxu0 %v1166
  %3467 = vmatpush.bf16.msra.mxu0 %v1161
  %3468 = vmatpush.bf16.msra.mxu0 %v1156
  %3469 = vmatpush.bf16.msra.mxu0 %v1151
  %3470 = vmatmul.bf16.gmra.mxu0 %v3356
  %v3471 = vpop.f32.mrf.mxu0
  %v3472 = vadd.f32 0.0, %v3471
  %v3473 = vpop.f32.mrf.mxu0
  %3474 = vdwg.mxu0
  %3475 = vmatpush.bf16.msra.mxu0 %v1226
  %3476 = vmatpush.bf16.msra.mxu0 %v1221
  %3477 = vmatpush.bf16.msra.mxu0 %v1216
  %3478 = vmatpush.bf16.msra.mxu0 %v1211
  %3479 = vmatpush.bf16.msra.mxu0 %v1206
  %3480 = vmatpush.bf16.msra.mxu0 %v1201
  %3481 = vmatpush.bf16.msra.mxu0 %v1196
  %3482 = vmatpush.bf16.msra.mxu0 %v1191
  %3483 = vmatmul.bf16.gmra.mxu0 %v3357
  %v3484 = vpop.f32.mrf.mxu0
  %v3485 = vadd.f32 %v3472, %v3484
  %v3486 = vpop.f32.mrf.mxu0
  %3487 = vdwg.mxu0
  %v3488 = vadd.f32 %v3381, %v260
  %v3489 = vadd.f32 %v3407, %v261
  %v3490 = vadd.f32 %v3433, %v262
  %v3491 = vadd.f32 %v3459, %v263
  %v3492 = vxor.u32 %v3488, 2147483648
  %v3493 = vxor.u32 %v3489, 2147483648
  %v3494 = vxor.u32 %v3490, 2147483648
  %v3495 = vmul.f32 %v3492, 1.442695
  %v3496 = vpow.pop %v3495
  %v3497 = vmul.f32 %v3493, 1.442695
  %v3498 = vpow.pop %v3497
  %v3499 = vmul.f32 %v3494, 1.442695
  %v3500 = vpow.pop %v3499
  %v3501 = vadd.f32 %v3496, 1.0
  %v3502 = vadd.f32 %v3498, 1.0
  %v3503 = vadd.f32 %v3500, 1.0
  %v3504 = vrcp.pop %v3501
  %v3505 = vmul.f32 %v3501, %v3504
  %v3506 = vsub.f32 1.0, %v3505
  %v3507 = vmul.f32 %v3504, %v3506
  %v3508 = vadd.f32 %v3504, %v3507
  %vm3509 = vweird.f32 %v3501
  %vm3510 = vweird.f32 %v3504
  %vm3511 = vmor %vm3509, %vm3510
  %v3512 = vsel %vm3511, %v3504, %v3508
  %v3513 = vand.u32 2147483647, %v3501
  %vm3514 = vcmp.eq.f32.partialorder %v3513, 8.507059e+37
  %v3515 = vand.u32 %v3501, 2147483648
  %v3516 = vor.u32 1.1754944e-38, %v3515
  %v3517 = vsel %vm3514, %v3516, %v3512
  %v3518 = vmul.f32 1.0, %v3517
  %v3519 = vrcp.pop %v3502
  %v3520 = vmul.f32 %v3502, %v3519
  %v3521 = vsub.f32 1.0, %v3520
  %v3522 = vmul.f32 %v3519, %v3521
  %v3523 = vadd.f32 %v3519, %v3522
  %vm3524 = vweird.f32 %v3502
  %vm3525 = vweird.f32 %v3519
  %vm3526 = vmor %vm3524, %vm3525
  %v3527 = vsel %vm3526, %v3519, %v3523
  %v3528 = vand.u32 2147483647, %v3502
  %vm3529 = vcmp.eq.f32.partialorder %v3528, 8.507059e+37
  %v3530 = vand.u32 %v3502, 2147483648
  %v3531 = vor.u32 1.1754944e-38, %v3530
  %v3532 = vsel %vm3529, %v3531, %v3527
  %v3533 = vmul.f32 1.0, %v3532
  %v3534 = vrcp.pop %v3503
  %v3535 = vmul.f32 %v3503, %v3534
  %v3536 = vsub.f32 1.0, %v3535
  %v3537 = vmul.f32 %v3534, %v3536
  %v3538 = vadd.f32 %v3534, %v3537
  %vm3539 = vweird.f32 %v3503
  %vm3540 = vweird.f32 %v3534
  %vm3541 = vmor %vm3539, %vm3540
  %v3542 = vsel %vm3541, %v3534, %v3538
  %v3543 = vand.u32 2147483647, %v3503
  %vm3544 = vcmp.eq.f32.partialorder %v3543, 8.507059e+37
  %v3545 = vand.u32 %v3503, 2147483648
  %v3546 = vor.u32 1.1754944e-38, %v3545
  %v3547 = vsel %vm3544, %v3546, %v3542
  %v3548 = vmul.f32 1.0, %v3547
  %v3549 = vtanh.pop %v3491
  %v3550 = vmul.f32 %v3533, %v3048
  %v3551 = vmul.f32 %v3518, %v3549
  %v3552 = vadd.f32 %v3550, %v3551
  %v3553 = vtanh.pop %v3552
  %v3554 = vmul.f32 %v3548, %v3553
  %v3555 = vmul.f32 %v3045, 0.1
  %v3556 = vmul.f32 %v3554, 0.9
  %v3557 = vadd.f32 %v3555, %v3556
  %v3558 = vmul.f32 %v3048, 0.1
  %v3559 = vmul.f32 %v3552, 0.9
  %v3560 = vadd.f32 %v3558, %v3559
  %v3562 = vrot.slane %v3180, 7
  %v3563 = vsel %vm1510, %v3557, %v3562
  %s3565 = scalar_lea.vmem [#allocation2], 4
  %3566 = vst.msk [vmem:[%s3565] ss:$8 sm:$0x3] %vm1516, %v3563
  %3567 = vst.msk [vmem:[%s3565] ss:$8 sm:$0x0] %vm1516, %v3563
  %v3568 = vperm.slane %v3157, %v80
  %3570 = vst.msk [vmem:[#allocation3 + $0x4] sm:$0x1] %vm1521, %v3568
  %3571 = vst [vmem:[#allocation1] sm:$0xff] %v3557
  %3572 = vst [vmem:[#allocation1 + $0x9] sm:$0xff] %v3180
  %s3573 = scalar_lea.vmem [#allocation1], 1
  %v3574 = vld [vmem:[%s3573] ss:$9 sm:$0xff]
  %s3576 = scalar_lea.vmem [#allocation2], 18
  %3577 = vst.msk [vmem:[%s3576] ss:$8 sm:$0x3] %vm1516, %v3574
  %3578 = vst.msk [vmem:[%s3576] ss:$8 sm:$0x0] %vm1516, %v3574
  %v3579 = vperm.slane %v3162, %v80
  %3581 = vst.msk [vmem:[#allocation3 + $0xa] sm:$0x1] %vm1521, %v3579
  %v3583 = vrot.slane %v3485, 1
  %v3584 = vperm.slane %v3485, 0
  %v3585 = vperm.slane %v3583, 0
  %v3588 = vadd.f32 %v77, %v3584
  %v3589 = vadd.f32 %v78, %v3585
  %v3590 = vtanh.pop %v3588
  %v3591 = vtanh.pop %v3589
  %v3592 = vmul.f32 %v3590, %v273
  %v3593 = vmul.f32 %v3591, %v273
  %v3594 = vsel %vm277, %v3592, 0.0
  %3595 = vadd.xlane.f32.xlu0 %v3594
  %v3596 = vpop.xlane.xlu0 %3595
  %v3597 = vsel %vm277, %v3593, 0.0
  %3598 = vadd.xlane.f32.xlu0 %v3597
  %v3599 = vpop.xlane.xlu0 %3598
  %v3600 = vadd.f32 %v3596, %v291
  %v3601 = vadd.f32 %v3599, %v298
  %3604 = vset.pattern.permute.xlu0 0
  %3605 = vperm.xlu0 %3604, %v3600
  %v3606 = vpop.permute.xlu0 %3605
  %3607 = vset.pattern.permute.xlu0 0
  %3608 = vperm.xlu0 %3607, %v3601
  %v3609 = vpop.permute.xlu0 %3608
  %v3610 = vperm.slane %v3606, %v80
  %v3611 = vperm.slane %v3609, %v80
  %v3612 = vsel %vm313, %v3611, %v3610
  %v3614 = vsel %vm316, %v3612, -inf
  %3615 = vmax.xlane.f32.xlu0 %v3614
  %v3616 = vpop.xlane.xlu0 %3615
  %v3618 = vperm.slane %v3616, 0
  %v3619 = vperm.slane %v3616, 1
  %v3622 = vsub.f32 %v3600, %v3618
  %v3623 = vsub.f32 %v3601, %v3619
  %v3624 = vmul.f32 %v3622, 1.442695
  %v3625 = vpow.pop %v3624
  %v3626 = vmul.f32 %v3623, 1.442695
  %v3627 = vpow.pop %v3626
  %3630 = vset.pattern.permute.xlu0 0
  %3631 = vperm.xlu0 %3630, %v3625
  %v3632 = vpop.permute.xlu0 %3631
  %3633 = vset.pattern.permute.xlu0 0
  %3634 = vperm.xlu0 %3633, %v3627
  %v3635 = vpop.permute.xlu0 %3634
  %v3636 = vperm.slane %v3632, %v80
  %v3637 = vperm.slane %v3635, %v80
  %v3638 = vsel %vm313, %v3637, %v3636
  %v3640 = vsel %vm316, %v3638, 0.0
  %3641 = vadd.xlane.f32.xlu0 %v3640
  %v3642 = vpop.xlane.xlu0 %3641
  %v3643 = vmax.f32 %v3642, 1e-30
  %v3644 = vrcp.pop %v3643
  %v3645 = vmul.f32 %v3643, %v3644
  %v3646 = vsub.f32 1.0, %v3645
  %v3647 = vmul.f32 %v3644, %v3646
  %v3648 = vadd.f32 %v3644, %v3647
  %vm3649 = vweird.f32 %v3643
  %vm3650 = vweird.f32 %v3644
  %vm3651 = vmor %vm3649, %vm3650
  %v3652 = vsel %vm3651, %v3644, %v3648
  %v3653 = vand.u32 2147483647, %v3643
  %vm3654 = vcmp.eq.f32.partialorder %v3653, 8.507059e+37
  %v3655 = vand.u32 %v3643, 2147483648
  %v3656 = vor.u32 1.1754944e-38, %v3655
  %v3657 = vsel %vm3654, %v3656, %v3652
  %v3658 = vmul.f32 1.0, %v3657
  %v3660 = vperm.slane %v3658, 0
  %v3661 = vperm.slane %v3658, 1
  %v3664 = vmul.f32 %v3625, %v3660
  %v3665 = vmul.f32 %v3627, %v3661
  %3667 = vset.pattern.permute.xlu0 0
  %3668 = vperm.xlu0 %3667, %v3664
  %v3669 = vpop.permute.xlu0 %3668
  %3672 = vset.pattern.permute.xlu0 0
  %3673 = vperm.xlu0 %3672, %v3665
  %v3674 = vpop.permute.xlu0 %3673
  %v3676 = vmul.f32 %v3669, %v32
  %v3677 = vmul.f32 %v3674, %v33
  %v3678 = vrot.slane %v3676, 4
  %v3679 = vadd.f32 %v3676, %v3678
  %v3680 = vrot.slane %v3679, 2
  %v3681 = vadd.f32 %v3679, %v3680
  %v3682 = vrot.slane %v3681, 1
  %v3683 = vadd.f32 %v3681, %v3682
  %v3684 = vrot.slane %v3677, 4
  %v3685 = vadd.f32 %v3677, %v3684
  %v3686 = vrot.slane %v3685, 2
  %v3687 = vadd.f32 %v3685, %v3686
  %v3688 = vrot.slane %v3687, 1
  %v3689 = vadd.f32 %v3687, %v3688
  %v3692 = vsel %vm313, %v3689, %v3683
  %v3694 = vpack.c.bf16 %v3692, %v3692
  %3695 = vmatpush.bf16.msra.mxu0 %v619
  %3696 = vmatpush.bf16.msra.mxu0 %v615
  %3697 = vmatpush.bf16.msra.mxu0 %v611
  %3698 = vmatpush.bf16.msra.mxu0 %v607
  %3699 = vmatpush.bf16.msra.mxu0 %v603
  %3700 = vmatpush.bf16.msra.mxu0 %v599
  %3701 = vmatpush.bf16.msra.mxu0 %v595
  %3702 = vmatpush.bf16.msra.mxu0 %v591
  %3703 = vmatmul.bf16.gmra.mxu0 %v3694
  %v3704 = vpop.f32.mrf.mxu0
  %v3705 = vadd.f32 0.0, %v3704
  %v3706 = vpop.f32.mrf.mxu0
  %3707 = vdwg.mxu0
  %3708 = vmatpush.bf16.msra.mxu0 %v651
  %3709 = vmatpush.bf16.msra.mxu0 %v647
  %3710 = vmatpush.bf16.msra.mxu0 %v643
  %3711 = vmatpush.bf16.msra.mxu0 %v639
  %3712 = vmatpush.bf16.msra.mxu0 %v635
  %3713 = vmatpush.bf16.msra.mxu0 %v631
  %3714 = vmatpush.bf16.msra.mxu0 %v627
  %3715 = vmatpush.bf16.msra.mxu0 %v623
  %3716 = vmatmul.bf16.gmra.mxu0 %v3356
  %v3717 = vpop.f32.mrf.mxu0
  %v3718 = vadd.f32 %v3705, %v3717
  %v3719 = vpop.f32.mrf.mxu0
  %3720 = vdwg.mxu0
  %3721 = vmatpush.bf16.msra.mxu0 %v620
  %3722 = vmatpush.bf16.msra.mxu0 %v616
  %3723 = vmatpush.bf16.msra.mxu0 %v612
  %3724 = vmatpush.bf16.msra.mxu0 %v608
  %3725 = vmatpush.bf16.msra.mxu0 %v604
  %3726 = vmatpush.bf16.msra.mxu0 %v600
  %3727 = vmatpush.bf16.msra.mxu0 %v596
  %3728 = vmatpush.bf16.msra.mxu0 %v592
  %3729 = vmatmul.bf16.gmra.mxu0 %v3694
  %v3730 = vpop.f32.mrf.mxu0
  %v3731 = vadd.f32 0.0, %v3730
  %v3732 = vpop.f32.mrf.mxu0
  %3733 = vdwg.mxu0
  %3734 = vmatpush.bf16.msra.mxu0 %v652
  %3735 = vmatpush.bf16.msra.mxu0 %v648
  %3736 = vmatpush.bf16.msra.mxu0 %v644
  %3737 = vmatpush.bf16.msra.mxu0 %v640
  %3738 = vmatpush.bf16.msra.mxu0 %v636
  %3739 = vmatpush.bf16.msra.mxu0 %v632
  %3740 = vmatpush.bf16.msra.mxu0 %v628
  %3741 = vmatpush.bf16.msra.mxu0 %v624
  %3742 = vmatmul.bf16.gmra.mxu0 %v3356
  %v3743 = vpop.f32.mrf.mxu0
  %v3744 = vadd.f32 %v3731, %v3743
  %v3745 = vpop.f32.mrf.mxu0
  %3746 = vdwg.mxu0
  %3747 = vmatpush.bf16.msra.mxu0 %v621
  %3748 = vmatpush.bf16.msra.mxu0 %v617
  %3749 = vmatpush.bf16.msra.mxu0 %v613
  %3750 = vmatpush.bf16.msra.mxu0 %v609
  %3751 = vmatpush.bf16.msra.mxu0 %v605
  %3752 = vmatpush.bf16.msra.mxu0 %v601
  %3753 = vmatpush.bf16.msra.mxu0 %v597
  %3754 = vmatpush.bf16.msra.mxu0 %v593
  %3755 = vmatmul.bf16.gmra.mxu0 %v3694
  %v3756 = vpop.f32.mrf.mxu0
  %v3757 = vadd.f32 0.0, %v3756
  %v3758 = vpop.f32.mrf.mxu0
  %3759 = vdwg.mxu0
  %3760 = vmatpush.bf16.msra.mxu0 %v653
  %3761 = vmatpush.bf16.msra.mxu0 %v649
  %3762 = vmatpush.bf16.msra.mxu0 %v645
  %3763 = vmatpush.bf16.msra.mxu0 %v641
  %3764 = vmatpush.bf16.msra.mxu0 %v637
  %3765 = vmatpush.bf16.msra.mxu0 %v633
  %3766 = vmatpush.bf16.msra.mxu0 %v629
  %3767 = vmatpush.bf16.msra.mxu0 %v625
  %3768 = vmatmul.bf16.gmra.mxu0 %v3356
  %v3769 = vpop.f32.mrf.mxu0
  %v3770 = vadd.f32 %v3757, %v3769
  %v3771 = vpop.f32.mrf.mxu0
  %3772 = vdwg.mxu0
  %3773 = vmatpush.bf16.msra.mxu0 %v622
  %3774 = vmatpush.bf16.msra.mxu0 %v618
  %3775 = vmatpush.bf16.msra.mxu0 %v614
  %3776 = vmatpush.bf16.msra.mxu0 %v610
  %3777 = vmatpush.bf16.msra.mxu0 %v606
  %3778 = vmatpush.bf16.msra.mxu0 %v602
  %3779 = vmatpush.bf16.msra.mxu0 %v598
  %3780 = vmatpush.bf16.msra.mxu0 %v594
  %3781 = vmatmul.bf16.gmra.mxu0 %v3694
  %v3782 = vpop.f32.mrf.mxu0
  %v3783 = vadd.f32 0.0, %v3782
  %v3784 = vpop.f32.mrf.mxu0
  %3785 = vdwg.mxu0
  %3786 = vmatpush.bf16.msra.mxu0 %v654
  %3787 = vmatpush.bf16.msra.mxu0 %v650
  %3788 = vmatpush.bf16.msra.mxu0 %v646
  %3789 = vmatpush.bf16.msra.mxu0 %v642
  %3790 = vmatpush.bf16.msra.mxu0 %v638
  %3791 = vmatpush.bf16.msra.mxu0 %v634
  %3792 = vmatpush.bf16.msra.mxu0 %v630
  %3793 = vmatpush.bf16.msra.mxu0 %v626
  %3794 = vmatmul.bf16.gmra.mxu0 %v3356
  %v3795 = vpop.f32.mrf.mxu0
  %v3796 = vadd.f32 %v3783, %v3795
  %v3797 = vpop.f32.mrf.mxu0
  %3798 = vdwg.mxu0
  %v3799 = vxor.u32 %v3718, 2147483648
  %v3800 = vxor.u32 %v3744, 2147483648
  %v3801 = vxor.u32 %v3770, 2147483648
  %v3802 = vmul.f32 %v3799, 1.442695
  %v3803 = vpow.pop %v3802
  %v3804 = vmul.f32 %v3800, 1.442695
  %v3805 = vpow.pop %v3804
  %v3806 = vmul.f32 %v3801, 1.442695
  %v3807 = vpow.pop %v3806
  %v3808 = vadd.f32 %v3803, 1.0
  %v3809 = vadd.f32 %v3805, 1.0
  %v3810 = vadd.f32 %v3807, 1.0
  %v3811 = vrcp.pop %v3808
  %v3812 = vmul.f32 %v3808, %v3811
  %v3813 = vsub.f32 1.0, %v3812
  %v3814 = vmul.f32 %v3811, %v3813
  %v3815 = vadd.f32 %v3811, %v3814
  %vm3816 = vweird.f32 %v3808
  %vm3817 = vweird.f32 %v3811
  %vm3818 = vmor %vm3816, %vm3817
  %v3819 = vsel %vm3818, %v3811, %v3815
  %v3820 = vand.u32 2147483647, %v3808
  %vm3821 = vcmp.eq.f32.partialorder %v3820, 8.507059e+37
  %v3822 = vand.u32 %v3808, 2147483648
  %v3823 = vor.u32 1.1754944e-38, %v3822
  %v3824 = vsel %vm3821, %v3823, %v3819
  %v3825 = vmul.f32 1.0, %v3824
  %v3826 = vrcp.pop %v3809
  %v3827 = vmul.f32 %v3809, %v3826
  %v3828 = vsub.f32 1.0, %v3827
  %v3829 = vmul.f32 %v3826, %v3828
  %v3830 = vadd.f32 %v3826, %v3829
  %vm3831 = vweird.f32 %v3809
  %vm3832 = vweird.f32 %v3826
  %vm3833 = vmor %vm3831, %vm3832
  %v3834 = vsel %vm3833, %v3826, %v3830
  %v3835 = vand.u32 2147483647, %v3809
  %vm3836 = vcmp.eq.f32.partialorder %v3835, 8.507059e+37
  %v3837 = vand.u32 %v3809, 2147483648
  %v3838 = vor.u32 1.1754944e-38, %v3837
  %v3839 = vsel %vm3836, %v3838, %v3834
  %v3840 = vmul.f32 1.0, %v3839
  %v3841 = vrcp.pop %v3810
  %v3842 = vmul.f32 %v3810, %v3841
  %v3843 = vsub.f32 1.0, %v3842
  %v3844 = vmul.f32 %v3841, %v3843
  %v3845 = vadd.f32 %v3841, %v3844
  %vm3846 = vweird.f32 %v3810
  %vm3847 = vweird.f32 %v3841
  %vm3848 = vmor %vm3846, %vm3847
  %v3849 = vsel %vm3848, %v3841, %v3845
  %v3850 = vand.u32 2147483647, %v3810
  %vm3851 = vcmp.eq.f32.partialorder %v3850, 8.507059e+37
  %v3852 = vand.u32 %v3810, 2147483648
  %v3853 = vor.u32 1.1754944e-38, %v3852
  %v3854 = vsel %vm3851, %v3853, %v3849
  %v3855 = vmul.f32 1.0, %v3854
  %v3856 = vtanh.pop %v3796
  %v3857 = vmul.f32 %v3840, %v3355
  %v3858 = vmul.f32 %v3825, %v3856
  %v3859 = vadd.f32 %v3857, %v3858
  %v3860 = vtanh.pop %v3859
  %v3861 = vmul.f32 %v3855, %v3860
  %v3862 = vmul.f32 %v3352, 0.1
  %v3863 = vmul.f32 %v3861, 0.9
  %v3864 = vadd.f32 %v3862, %v3863
  %v3865 = vpack.c.bf16 %v3864, %v3864
  %v3866 = vpack.c.bf16 %v3557, %v3557
  %3867 = vmatpush.bf16.msra.mxu0 %v1182
  %3868 = vmatpush.bf16.msra.mxu0 %v1177
  %3869 = vmatpush.bf16.msra.mxu0 %v1172
  %3870 = vmatpush.bf16.msra.mxu0 %v1167
  %3871 = vmatpush.bf16.msra.mxu0 %v1162
  %3872 = vmatpush.bf16.msra.mxu0 %v1157
  %3873 = vmatpush.bf16.msra.mxu0 %v1152
  %3874 = vmatpush.bf16.msra.mxu0 %v1147
  %3875 = vmatmul.bf16.gmra.mxu0 %v3865
  %v3876 = vpop.f32.mrf.mxu0
  %v3877 = vadd.f32 0.0, %v3876
  %v3878 = vpop.f32.mrf.mxu0
  %3879 = vdwg.mxu0
  %3880 = vmatpush.bf16.msra.mxu0 %v1222
  %3881 = vmatpush.bf16.msra.mxu0 %v1217
  %3882 = vmatpush.bf16.msra.mxu0 %v1212
  %3883 = vmatpush.bf16.msra.mxu0 %v1207
  %3884 = vmatpush.bf16.msra.mxu0 %v1202
  %3885 = vmatpush.bf16.msra.mxu0 %v1197
  %3886 = vmatpush.bf16.msra.mxu0 %v1192
  %3887 = vmatpush.bf16.msra.mxu0 %v1187
  %3888 = vmatmul.bf16.gmra.mxu0 %v3866
  %v3889 = vpop.f32.mrf.mxu0
  %v3890 = vadd.f32 %v3877, %v3889
  %v3891 = vpop.f32.mrf.mxu0
  %3892 = vdwg.mxu0
  %3893 = vmatpush.bf16.msra.mxu0 %v1183
  %3894 = vmatpush.bf16.msra.mxu0 %v1178
  %3895 = vmatpush.bf16.msra.mxu0 %v1173
  %3896 = vmatpush.bf16.msra.mxu0 %v1168
  %3897 = vmatpush.bf16.msra.mxu0 %v1163
  %3898 = vmatpush.bf16.msra.mxu0 %v1158
  %3899 = vmatpush.bf16.msra.mxu0 %v1153
  %3900 = vmatpush.bf16.msra.mxu0 %v1148
  %3901 = vmatmul.bf16.gmra.mxu0 %v3865
  %v3902 = vpop.f32.mrf.mxu0
  %v3903 = vadd.f32 0.0, %v3902
  %v3904 = vpop.f32.mrf.mxu0
  %3905 = vdwg.mxu0
  %3906 = vmatpush.bf16.msra.mxu0 %v1223
  %3907 = vmatpush.bf16.msra.mxu0 %v1218
  %3908 = vmatpush.bf16.msra.mxu0 %v1213
  %3909 = vmatpush.bf16.msra.mxu0 %v1208
  %3910 = vmatpush.bf16.msra.mxu0 %v1203
  %3911 = vmatpush.bf16.msra.mxu0 %v1198
  %3912 = vmatpush.bf16.msra.mxu0 %v1193
  %3913 = vmatpush.bf16.msra.mxu0 %v1188
  %3914 = vmatmul.bf16.gmra.mxu0 %v3866
  %v3915 = vpop.f32.mrf.mxu0
  %v3916 = vadd.f32 %v3903, %v3915
  %v3917 = vpop.f32.mrf.mxu0
  %3918 = vdwg.mxu0
  %3919 = vmatpush.bf16.msra.mxu0 %v1184
  %3920 = vmatpush.bf16.msra.mxu0 %v1179
  %3921 = vmatpush.bf16.msra.mxu0 %v1174
  %3922 = vmatpush.bf16.msra.mxu0 %v1169
  %3923 = vmatpush.bf16.msra.mxu0 %v1164
  %3924 = vmatpush.bf16.msra.mxu0 %v1159
  %3925 = vmatpush.bf16.msra.mxu0 %v1154
  %3926 = vmatpush.bf16.msra.mxu0 %v1149
  %3927 = vmatmul.bf16.gmra.mxu0 %v3865
  %v3928 = vpop.f32.mrf.mxu0
  %v3929 = vadd.f32 0.0, %v3928
  %v3930 = vpop.f32.mrf.mxu0
  %3931 = vdwg.mxu0
  %3932 = vmatpush.bf16.msra.mxu0 %v1224
  %3933 = vmatpush.bf16.msra.mxu0 %v1219
  %3934 = vmatpush.bf16.msra.mxu0 %v1214
  %3935 = vmatpush.bf16.msra.mxu0 %v1209
  %3936 = vmatpush.bf16.msra.mxu0 %v1204
  %3937 = vmatpush.bf16.msra.mxu0 %v1199
  %3938 = vmatpush.bf16.msra.mxu0 %v1194
  %3939 = vmatpush.bf16.msra.mxu0 %v1189
  %3940 = vmatmul.bf16.gmra.mxu0 %v3866
  %v3941 = vpop.f32.mrf.mxu0
  %v3942 = vadd.f32 %v3929, %v3941
  %v3943 = vpop.f32.mrf.mxu0
  %3944 = vdwg.mxu0
  %3945 = vmatpush.bf16.msra.mxu0 %v1185
  %3946 = vmatpush.bf16.msra.mxu0 %v1180
  %3947 = vmatpush.bf16.msra.mxu0 %v1175
  %3948 = vmatpush.bf16.msra.mxu0 %v1170
  %3949 = vmatpush.bf16.msra.mxu0 %v1165
  %3950 = vmatpush.bf16.msra.mxu0 %v1160
  %3951 = vmatpush.bf16.msra.mxu0 %v1155
  %3952 = vmatpush.bf16.msra.mxu0 %v1150
  %3953 = vmatmul.bf16.gmra.mxu0 %v3865
  %v3954 = vpop.f32.mrf.mxu0
  %v3955 = vadd.f32 0.0, %v3954
  %v3956 = vpop.f32.mrf.mxu0
  %3957 = vdwg.mxu0
  %3958 = vmatpush.bf16.msra.mxu0 %v1225
  %3959 = vmatpush.bf16.msra.mxu0 %v1220
  %3960 = vmatpush.bf16.msra.mxu0 %v1215
  %3961 = vmatpush.bf16.msra.mxu0 %v1210
  %3962 = vmatpush.bf16.msra.mxu0 %v1205
  %3963 = vmatpush.bf16.msra.mxu0 %v1200
  %3964 = vmatpush.bf16.msra.mxu0 %v1195
  %3965 = vmatpush.bf16.msra.mxu0 %v1190
  %3966 = vmatmul.bf16.gmra.mxu0 %v3866
  %v3967 = vpop.f32.mrf.mxu0
  %v3968 = vadd.f32 %v3955, %v3967
  %v3969 = vpop.f32.mrf.mxu0
  %3970 = vdwg.mxu0
  %v3971 = vadd.f32 %v3890, %v260
  %v3972 = vadd.f32 %v3916, %v261
  %v3973 = vadd.f32 %v3942, %v262
  %v3974 = vadd.f32 %v3968, %v263
  %v3975 = vxor.u32 %v3971, 2147483648
  %v3976 = vxor.u32 %v3972, 2147483648
  %v3977 = vxor.u32 %v3973, 2147483648
  %v3978 = vmul.f32 %v3975, 1.442695
  %v3979 = vpow.pop %v3978
  %v3980 = vmul.f32 %v3976, 1.442695
  %v3981 = vpow.pop %v3980
  %v3982 = vmul.f32 %v3977, 1.442695
  %v3983 = vpow.pop %v3982
  %v3984 = vadd.f32 %v3979, 1.0
  %v3985 = vadd.f32 %v3981, 1.0
  %v3986 = vadd.f32 %v3983, 1.0
  %v3987 = vrcp.pop %v3984
  %v3988 = vmul.f32 %v3984, %v3987
  %v3989 = vsub.f32 1.0, %v3988
  %v3990 = vmul.f32 %v3987, %v3989
  %v3991 = vadd.f32 %v3987, %v3990
  %vm3992 = vweird.f32 %v3984
  %vm3993 = vweird.f32 %v3987
  %vm3994 = vmor %vm3992, %vm3993
  %v3995 = vsel %vm3994, %v3987, %v3991
  %v3996 = vand.u32 2147483647, %v3984
  %vm3997 = vcmp.eq.f32.partialorder %v3996, 8.507059e+37
  %v3998 = vand.u32 %v3984, 2147483648
  %v3999 = vor.u32 1.1754944e-38, %v3998
  %v4000 = vsel %vm3997, %v3999, %v3995
  %v4001 = vmul.f32 1.0, %v4000
  %v4002 = vrcp.pop %v3985
  %v4003 = vmul.f32 %v3985, %v4002
  %v4004 = vsub.f32 1.0, %v4003
  %v4005 = vmul.f32 %v4002, %v4004
  %v4006 = vadd.f32 %v4002, %v4005
  %vm4007 = vweird.f32 %v3985
  %vm4008 = vweird.f32 %v4002
  %vm4009 = vmor %vm4007, %vm4008
  %v4010 = vsel %vm4009, %v4002, %v4006
  %v4011 = vand.u32 2147483647, %v3985
  %vm4012 = vcmp.eq.f32.partialorder %v4011, 8.507059e+37
  %v4013 = vand.u32 %v3985, 2147483648
  %v4014 = vor.u32 1.1754944e-38, %v4013
  %v4015 = vsel %vm4012, %v4014, %v4010
  %v4016 = vmul.f32 1.0, %v4015
  %v4017 = vrcp.pop %v3986
  %v4018 = vmul.f32 %v3986, %v4017
  %v4019 = vsub.f32 1.0, %v4018
  %v4020 = vmul.f32 %v4017, %v4019
  %v4021 = vadd.f32 %v4017, %v4020
  %vm4022 = vweird.f32 %v3986
  %vm4023 = vweird.f32 %v4017
  %vm4024 = vmor %vm4022, %vm4023
  %v4025 = vsel %vm4024, %v4017, %v4021
  %v4026 = vand.u32 2147483647, %v3986
  %vm4027 = vcmp.eq.f32.partialorder %v4026, 8.507059e+37
  %v4028 = vand.u32 %v3986, 2147483648
  %v4029 = vor.u32 1.1754944e-38, %v4028
  %v4030 = vsel %vm4027, %v4029, %v4025
  %v4031 = vmul.f32 1.0, %v4030
  %v4032 = vtanh.pop %v3974
  %v4033 = vmul.f32 %v4016, %v3560
  %v4034 = vmul.f32 %v4001, %v4032
  %v4035 = vadd.f32 %v4033, %v4034
  %v4036 = vtanh.pop %v4035
  %v4037 = vmul.f32 %v4031, %v4036
  %v4038 = vmul.f32 %v3557, 0.1
  %v4039 = vmul.f32 %v4037, 0.9
  %v4040 = vadd.f32 %v4038, %v4039
  %v4042 = vrot.slane %v3692, 7
  %v4043 = vsel %vm1510, %v4040, %v4042
  %s4045 = scalar_lea.vmem [#allocation2], 5
  %4046 = vst.msk [vmem:[%s4045] ss:$8 sm:$0x3] %vm1516, %v4043
  %4047 = vst.msk [vmem:[%s4045] ss:$8 sm:$0x0] %vm1516, %v4043
  %v4048 = vperm.slane %v3669, %v80
  %4050 = vst.msk [vmem:[#allocation3 + $0x5] sm:$0x1] %vm1521, %v4048
  %4051 = vst [vmem:[#allocation1] sm:$0xff] %v4040
  %4052 = vst [vmem:[#allocation1 + $0x9] sm:$0xff] %v3692
  %s4053 = scalar_lea.vmem [#allocation1], 1
  %v4054 = vld [vmem:[%s4053] ss:$9 sm:$0xff]
  %s4056 = scalar_lea.vmem [#allocation2], 19
  %4057 = vst.msk [vmem:[%s4056] ss:$8 sm:$0x3] %vm1516, %v4054
  %4058 = vst.msk [vmem:[%s4056] ss:$8 sm:$0x0] %vm1516, %v4054
  %v4059 = vperm.slane %v3674, %v80
  %4061 = vst.msk [vmem:[#allocation3 + $0xb] sm:$0x1] %vm1521, %v4059
  %v4062 = vld [vmem:[#allocation2] sm:$0xff]
  %v4063 = vld [vmem:[#allocation2 + $0x8] sm:$0xff]
  %v4064 = vld [vmem:[#allocation2 + $0x10] sm:$0xf]
  %v4065 = vld [vmem:[#allocation2 + $0x18] sm:$0xf]
  %v4066 = vld [vmem:[%s8] sm:$0xff]
  %v4067 = vld [vmem:[%s8 + $0x8] sm:$0xff]
  %v4068 = vld [vmem:[%s8 + $0x10] sm:$0xff]
  %v4069 = vld [vmem:[%s8 + $0x18] sm:$0xff]
  %v4070 = vld [vmem:[%s8 + $0x20] sm:$0xff]
  %v4071 = vld [vmem:[%s8 + $0x28] sm:$0xff]
  %v4072 = vld [vmem:[%s8 + $0x30] sm:$0xff]
  %v4073 = vld [vmem:[%s8 + $0x38] sm:$0xff]
  %v4074 = vld [vmem:[%s8 + $0x40] sm:$0xff]
  %v4075 = vld [vmem:[%s8 + $0x48] sm:$0xff]
  %v4076 = vld [vmem:[%s8 + $0x50] sm:$0xff]
  %v4077 = vld [vmem:[%s8 + $0x58] sm:$0xff]
  %v4078 = vld [vmem:[%s8 + $0x60] sm:$0xff]
  %v4079 = vld [vmem:[%s8 + $0x68] sm:$0xff]
  %v4080 = vld [vmem:[%s8 + $0x70] sm:$0xff]
  %v4081 = vld [vmem:[%s8 + $0x78] sm:$0xff]
  %v4082 = vld [vmem:[%s8 + $0x80] sm:$0xff]
  %v4083 = vld [vmem:[%s8 + $0x88] sm:$0xff]
  %v4084 = vld [vmem:[%s8 + $0x90] sm:$0xff]
  %v4085 = vld [vmem:[%s8 + $0x98] sm:$0xff]
  %v4086 = vld [vmem:[%s8 + $0xa0] sm:$0xff]
  %v4087 = vld [vmem:[%s8 + $0xa8] sm:$0xff]
  %v4088 = vld [vmem:[%s8 + $0xb0] sm:$0xff]
  %v4089 = vld [vmem:[%s8 + $0xb8] sm:$0xff]
  %v4090 = vld [vmem:[%s8 + $0xc0] sm:$0xff]
  %v4091 = vld [vmem:[%s8 + $0xc8] sm:$0xff]
  %v4092 = vld [vmem:[%s8 + $0xd0] sm:$0xff]
  %v4093 = vld [vmem:[%s8 + $0xd8] sm:$0xff]
  %v4094 = vld [vmem:[%s8 + $0xe0] sm:$0xff]
  %v4095 = vld [vmem:[%s8 + $0xe8] sm:$0xff]
  %v4096 = vld [vmem:[%s8 + $0xf0] sm:$0xff]
  %v4097 = vld [vmem:[%s8 + $0xf8] sm:$0xff]
  %4098 = vmatpush.msra.mxu0 %v4081
  %4099 = vmatpush.msra.mxu0 %v4080
  %4100 = vmatpush.msra.mxu0 %v4079
  %4101 = vmatpush.msra.mxu0 %v4078
  %4102 = vmatpush.msra.mxu0 %v4077
  %4103 = vmatpush.msra.mxu0 %v4076
  %4104 = vmatpush.msra.mxu0 %v4075
  %4105 = vmatpush.msra.mxu0 %v4074
  %4106 = vmatpush.msra.mxu0 %v4073
  %4107 = vmatpush.msra.mxu0 %v4072
  %4108 = vmatpush.msra.mxu0 %v4071
  %4109 = vmatpush.msra.mxu0 %v4070
  %4110 = vmatpush.msra.mxu0 %v4069
  %4111 = vmatpush.msra.mxu0 %v4068
  %4112 = vmatpush.msra.mxu0 %v4067
  %4113 = vmatpush.msra.mxu0 %v4066
  %4114 = vmatmul.f32.gmra.mxu0 %v4062
  %v4115 = vpop.f32.mrf.mxu0
  %v4116 = vadd.f32 0.0, %v4115
  %4117 = vmatmul.f32.gmra.mxu0 %v4064
  %v4118 = vpop.f32.mrf.mxu0
  %v4119 = vadd.f32 0.0, %v4118
  %4120 = vdwg.mxu0
  %4121 = vmatpush.msra.mxu0 %v4097
  %4122 = vmatpush.msra.mxu0 %v4096
  %4123 = vmatpush.msra.mxu0 %v4095
  %4124 = vmatpush.msra.mxu0 %v4094
  %4125 = vmatpush.msra.mxu0 %v4093
  %4126 = vmatpush.msra.mxu0 %v4092
  %4127 = vmatpush.msra.mxu0 %v4091
  %4128 = vmatpush.msra.mxu0 %v4090
  %4129 = vmatpush.msra.mxu0 %v4089
  %4130 = vmatpush.msra.mxu0 %v4088
  %4131 = vmatpush.msra.mxu0 %v4087
  %4132 = vmatpush.msra.mxu0 %v4086
  %4133 = vmatpush.msra.mxu0 %v4085
  %4134 = vmatpush.msra.mxu0 %v4084
  %4135 = vmatpush.msra.mxu0 %v4083
  %4136 = vmatpush.msra.mxu0 %v4082
  %4137 = vmatmul.f32.gmra.mxu0 %v4063
  %v4138 = vpop.f32.mrf.mxu0
  %v4139 = vadd.f32 %v4116, %v4138
  %4140 = vmatmul.f32.gmra.mxu0 %v4065
  %v4141 = vpop.f32.mrf.mxu0
  %v4142 = vadd.f32 %v4119, %v4141
  %4143 = vdwg.mxu0
  %v4144 = vxor.u32 %v4139, 2147483648
  %v4145 = vxor.u32 %v4142, 2147483648
  %v4146 = vmul.f32 %v4144, 1.442695
  %v4147 = vpow.pop %v4146
  %v4148 = vmul.f32 %v4145, 1.442695
  %v4149 = vpow.pop %v4148
  %v4150 = vadd.f32 %v4147, 1.0
  %v4151 = vadd.f32 %v4149, 1.0
  %v4152 = vrcp.pop %v4150
  %v4153 = vmul.f32 %v4150, %v4152
  %v4154 = vsub.f32 1.0, %v4153
  %v4155 = vmul.f32 %v4152, %v4154
  %v4156 = vadd.f32 %v4152, %v4155
  %vm4157 = vweird.f32 %v4150
  %vm4158 = vweird.f32 %v4152
  %vm4159 = vmor %vm4157, %vm4158
  %v4160 = vsel %vm4159, %v4152, %v4156
  %v4161 = vand.u32 2147483647, %v4150
  %vm4162 = vcmp.eq.f32.partialorder %v4161, 8.507059e+37
  %v4163 = vand.u32 %v4150, 2147483648
  %v4164 = vor.u32 1.1754944e-38, %v4163
  %v4165 = vsel %vm4162, %v4164, %v4160
  %v4166 = vmul.f32 1.0, %v4165
  %v4167 = vrcp.pop %v4151
  %v4168 = vmul.f32 %v4151, %v4167
  %v4169 = vsub.f32 1.0, %v4168
  %v4170 = vmul.f32 %v4167, %v4169
  %v4171 = vadd.f32 %v4167, %v4170
  %vm4172 = vweird.f32 %v4151
  %vm4173 = vweird.f32 %v4167
  %vm4174 = vmor %vm4172, %vm4173
  %v4175 = vsel %vm4174, %v4167, %v4171
  %v4176 = vand.u32 2147483647, %v4151
  %vm4177 = vcmp.eq.f32.partialorder %v4176, 8.507059e+37
  %v4178 = vand.u32 %v4151, 2147483648
  %v4179 = vor.u32 1.1754944e-38, %v4178
  %v4180 = vsel %vm4177, %v4179, %v4175
  %v4181 = vmul.f32 1.0, %v4180
  %v4182 = vld [vmem:[#allocation3] sm:$0xff]
  %v4183 = vld [vmem:[#allocation3 + $0x8] sm:$0xf]
  %4186 = vrot.lane.b32.xlu0 %v4182, 17
  %v4187 = vpop.permute.xlu0 %4186
  %4188 = vrot.lane.b32.xlu0 %v4183, 17
  %v4189 = vpop.permute.xlu0 %4188
  %vm4192 = vcmask 130048
  %v4193 = vsel %vm4192, %v4139, %v4166
  %v4194 = vsel %vm4192, %v4142, %v4181
  %vm4195 = vcmask 138240
  %v4196 = vsel %vm4195, %v4193, %v4187
  %v4197 = vsel %vm4195, %v4194, %v4189
  %vm4198 = vcmask 203776
  %v4199 = vsel %vm4198, %v4196, 0.0
  %v4200 = vsel %vm4198, %v4197, 0.0
  %v4203 = vrot.slane %v4199, 2
  %v4204 = vrot.slane %v4199, 4
  %v4205 = vrot.slane %v4199, 6
  %v4206 = vrot.slane %v4200, 2
  %4207 = vst [vmem:[#allocation1] ss:$4 sm:$0xff] %v4199
  %s4208 = scalar_lea.vmem [#allocation1], 1
  %4209 = vst [vmem:[%s4208] ss:$4 sm:$0xff] %v4203
  %s4210 = scalar_lea.vmem [#allocation1], 2
  %4211 = vst [vmem:[%s4210] ss:$4 sm:$0xff] %v4204
  %v4212 = vld.sshfl [vmem:[#allocation1] sm:$0xff pattern:$0x73625140]
  %s4213 = scalar_lea.vmem [#allocation1], 32
  %4214 = vst [vmem:[%s4213] ss:$4 sm:$0xff] %v4205
  %s4215 = scalar_lea.vmem [#allocation1], 33
  %4216 = vst [vmem:[%s4215] ss:$4 sm:$0xff] %v4200
  %s4217 = scalar_lea.vmem [#allocation1], 34
  %4218 = vst [vmem:[%s4217] ss:$4 sm:$0xff] %v4206
  %v4219 = vld.sshfl [vmem:[#allocation1 + $0x20] sm:$0xff pattern:$0x73625140]
  %4222 = vst [vmem:[%s9] sm:$0x3f] %v4212
  %4223 = vst [vmem:[%s9 + $0x8] sm:$0x3f] %v4219
  // Predicated region
  $region38: #{tpu_custom_call.1} parent=0 // pred_check
    _
  $region39: #{tpu_custom_call.1} parent=0 // pred_check_branch
    %4225 = sbr.rel (0) target = $region41
  $region40: #{tpu_custom_call.1} parent=0 // pred_region
    _
  $region41: #{tpu_custom_call.1} parent=0 // pred_fallthru
    _
  // Predicated region
  $region42: #{tpu_custom_call.1} parent=0 // pred_check
    _
  $region43: #{tpu_custom_call.1} parent=0 // pred_check_branch
    %4227 = sbr.rel (0) target = $region45
  $region44: #{tpu_custom_call.1} parent=0 // pred_region
    _
  $region45: #{tpu_custom_call.1} parent=0 // pred_fallthru
    _

</llo_original>
